<compile_context>
chip_gen: v6e
topology: v6e:2x2x1
jax: 0.10.0
libtpu: 0.0.40
codegen_flags: <defaults>
</compile_context>

<pallas_src>
import functools

import jax
import jax.numpy as jnp
from jax.experimental import pallas as pl
from jax.experimental.pallas import tpu as pltpu


_NEG_BIG = -1e30  # finite "-inf": masks padded atom slots out of max / exp


def _round_up(x, m):
    return (x + m - 1) // m * m


def _cdiv(a, b):
    return -(-a // b)


# ----------------------------------------------------------------------------
# Fused kernel: stem(Conv3x3 + folded BN + global avg pool) -> Rainbow dueling
# head (NoisyLinear eval mode) -> per-action softmax / log_softmax.
# One grid step processes TB images; all weights stay VMEM-resident via
# constant index_maps.
# ----------------------------------------------------------------------------
def _dqnas_kernel(colm_ref, wcol_ref, shift_ref, whva_ref, bhva_ref,
                  wza_ref, wzv_ref, mvbc_ref, bq_ref, msum_ref, mbc_ref,
                  q_ref, *, log, hidden, actions, pad_atoms):
    # --- stem conv + BN + AdaptiveAvgPool2d(1), all folded into one tiny
    # matmul: mean_{HW} commutes with the im2col matmul, so the kernel only
    # ever sees the per-tap spatial means (pool-before-conv fold).
    pooled = (jnp.dot(colm_ref[...], wcol_ref[...],
                      preferred_element_type=jnp.float32)
              + shift_ref[...])                                    # (TB, Cp)

    # --- Rainbow head: value + advantage hidden layers in ONE bf16 matmul ---
    h = jnp.maximum(
        jnp.dot(pooled.astype(whva_ref.dtype), whva_ref[...],
                preferred_element_type=jnp.float32) + bhva_ref[...], 0.0)
    h_v = h[:, :hidden].astype(wzv_ref.dtype)                      # (TB, hid)
    h_a = h[:, hidden:].astype(wza_ref.dtype)                      # (TB, hid)

    # dueling logits: advantage weights are pre-centered (a - mean_a folded
    # into the packed weights); the value stream is computed once over
    # `pad_atoms` columns and broadcast across actions with a one-hot matmul
    # (no 10x weight replication).
    a_c = jnp.dot(h_a, wza_ref[...], preferred_element_type=jnp.float32)
    v = jnp.dot(h_v, wzv_ref[...], preferred_element_type=jnp.float32)
    v_bc = jnp.dot(v, mvbc_ref[...], preferred_element_type=jnp.float32)
    qlog = a_c + v_bc + bq_ref[...]          # (TB, A*PA); pad slots == -1e30

    # --- per-action softmax over atoms, stabilized with a PER-GROUP max.
    # (max has no matmul form: A static 64-lane slices on a ~5-vreg tensor.)
    mbc = mbc_ref[...]                                             # (A, A*PA)
    m_bc = None
    for j in range(actions):
        mj = jnp.max(qlog[:, j * pad_atoms:(j + 1) * pad_atoms],
                     axis=1, keepdims=True)                        # (TB, 1)
        t = mj * mbc[j:j + 1, :]
        m_bc = t if m_bc is None else m_bc + t                     # (TB, A*PA)

    e = jnp.exp(qlog - m_bc)                 # padded slots -> exp(-1e30) == 0
    gsum = jnp.dot(e, msum_ref[...], preferred_element_type=jnp.float32)
    gbc = jnp.dot(gsum, mbc, preferred_element_type=jnp.float32)   # (TB, A*PA)
    if log:
        out = (qlog - m_bc) - jnp.log(gbc)
    else:
        # exact reciprocal keeps per-action sums == 1 to f32 rounding
        out = e * pl.reciprocal(gbc, approx=False)
    q_ref[...] = out.astype(q_ref.dtype)                  # lane-dense store


# ----------------------------------------------------------------------------
# Wrapper-side layout helper (fused by XLA under jit; input is a few KB)
# ----------------------------------------------------------------------------
def _pooled_im2col_3x3(x_nhwc):
    """Mean over H*W of the 3x3 im2col patches: (N,H,W,C) -> (N, 9*C).

    Column order (dy*3+dx)*C + c matches the packed conv weight rows.
    """
    N, H, W, C = x_nhwc.shape
    xp = jnp.pad(x_nhwc, ((0, 0), (1, 1), (1, 1), (0, 0)))
    taps = [jnp.mean(xp[:, dy:dy + H, dx:dx + W, :], axis=(1, 2))
            for dy in range(3) for dx in range(3)]
    return jnp.concatenate(taps, axis=1)


# ----------------------------------------------------------------------------
# Parameter init (mirrors the PyTorch __init__ shapes, eval-mode semantics)
# ----------------------------------------------------------------------------
def init_params(key, *, C=8, in_channels=3, num_classes=10,
                hidden_size=512, atoms=51):
    stem_multiplier = 3
    c_stem = stem_multiplier * C                 # stem output channels
    c_in = c_stem                                # classifier input (cells omitted)
    keys = jax.random.split(key, 9)

    def uni(k, shape, bound):
        return jax.random.uniform(k, shape, jnp.float32, -bound, bound)

    mu1 = 1.0 / (c_in ** 0.5)
    mu2 = 1.0 / (hidden_size ** 0.5)
    fan_in_conv = in_channels * 9
    return {
        # stem conv weight stored HWIO: (kh, kw, Cin, Cout)
        "stem_w": uni(keys[0], (3, 3, in_channels, c_stem),
                      1.0 / (fan_in_conv ** 0.5)),
        "bn_gamma": jnp.ones((c_stem,), jnp.float32),
        "bn_beta": jnp.zeros((c_stem,), jnp.float32),
        "bn_mean": jnp.zeros((c_stem,), jnp.float32),
        "bn_var": jnp.ones((c_stem,), jnp.float32),
        # NoisyLinear mu parameters (eval mode -> mu only), stored (in, out)
        "whv": uni(keys[1], (c_in, hidden_size), mu1),
        "bhv": uni(keys[2], (1, hidden_size), mu1),
        "wha": uni(keys[3], (c_in, hidden_size), mu1),
        "bha": uni(keys[4], (1, hidden_size), mu1),
        "wzv": uni(keys[5], (hidden_size, atoms), mu2),
        "bzv": uni(keys[6], (1, atoms), mu2),
        # fc_z_a kept flat as (hidden, A*T); column j*T + t == (action j, atom t)
        "wza": uni(keys[7], (hidden_size, num_classes * atoms), mu2),
        "bza": uni(keys[8], (1, num_classes * atoms), mu2),
    }


# ----------------------------------------------------------------------------
# One-time packing: BN fold, im2col weight, fused value/advantage hidden layer,
# centered dueling weights, minimal lane padding, one-hot broadcast matrices.
# ----------------------------------------------------------------------------
def pack_params(p, *, action_space, atoms, eps=1e-5, weight_dtype=jnp.bfloat16):
    kh, kw, cin, cout = p["stem_w"].shape
    hid = p["whv"].shape[1]
    k9 = kh * kw * cin
    k9p = _round_up(k9, 8)               # 27 -> 32 (dense vreg loads)
    cp = _round_up(cout, 8)              # 24 -> 32 (NOT 128: avoid 5/6-zero weights)
    pa = _round_up(atoms, 64)            # per-action atom block: 51 -> 64 lanes
    atp = action_space * pa              # 640, multiple of 128 -> lane-dense output

    # stem: fold BN scale into conv weight, reshape to im2col layout, pad
    inv = p["bn_gamma"] / jnp.sqrt(p["bn_var"] + eps)
    w_fold = p["stem_w"] * inv[None, None, None, :]
    wcol = jnp.pad(w_fold.reshape(k9, cout), ((0, k9p - k9), (0, cp - cout)))
    shift = jnp.pad(p["bn_beta"] - p["bn_mean"] * inv,
                    (0, cp - cout)).reshape(1, cp)

    # hidden layers: fuse value+advantage heads into one (cp, 2*hid) matmul;
    # zero-padded weight rows match the zero-padded pooled channels exactly.
    whva = jnp.concatenate(
        [jnp.pad(p["whv"], ((0, cp - cout), (0, 0))),
         jnp.pad(p["wha"], ((0, cp - cout), (0, 0)))], axis=1)     # (cp, 2*hid)
    bhva = jnp.concatenate([p["bhv"], p["bha"]], axis=1)           # (1, 2*hid)

    # dueling head (deduplicated): centered advantage weights, one value block
    wza3 = p["wza"].reshape(hid, action_space, atoms)
    bza3 = p["bza"].reshape(1, action_space, atoms)
    wza_c = wza3 - wza3.mean(axis=1, keepdims=True)
    bza_c = bza3 - bza3.mean(axis=1, keepdims=True)
    wza = jnp.pad(wza_c, ((0, 0), (0, 0), (0, pa - atoms))).reshape(hid, atp)
    wzv = jnp.pad(p["wzv"], ((0, 0), (0, pa - atoms)))             # (hid, pa)
    # fused logits bias; padded atom slots get -1e30 so they never win the
    # per-action max and their exp is exactly 0.
    bq = jnp.pad(bza_c + p["bzv"][:, None, :],
                 ((0, 0), (0, 0), (0, pa - atoms)),
                 constant_values=_NEG_BIG).reshape(1, atp)

    # one-hot helpers (exact; kept f32 — tiny)
    col = jnp.arange(atp)
    grp = col // pa
    real = ((col % pa) < atoms).astype(jnp.float32)
    mbc = jax.nn.one_hot(grp, action_space, dtype=jnp.float32).T        # (A, atp)
    msum = jax.nn.one_hot(grp, action_space, dtype=jnp.float32) * real[:, None]
    mvbc = jax.nn.one_hot(col % pa, pa, dtype=jnp.float32).T            # (pa, atp)

    return dict(
        wcol=wcol.astype(jnp.float32),
        shift=shift.astype(jnp.float32),
        whva=whva.astype(weight_dtype),
        bhva=bhva.astype(jnp.float32),
        wza=wza.astype(weight_dtype),
        wzv=wzv.astype(weight_dtype),
        mvbc=mvbc,
        bq=bq.astype(jnp.float32),
        msum=msum,
        mbc=mbc,
    )


# ----------------------------------------------------------------------------
# Fused forward (single pallas_call)
# ----------------------------------------------------------------------------
@functools.partial(jax.jit, static_argnames=("action_space", "atoms", "log"))
def dqnas_forward(packed, x_nchw, *, action_space, atoms, log=False):
    x = jnp.transpose(x_nchw, (0, 2, 3, 1))            # NCHW -> NHWC
    n = x.shape[0]
    colm = _pooled_im2col_3x3(x)                       # (N, 9*Cin)
    k9 = colm.shape[1]
    k9p = packed["wcol"].shape[0]
    pa = packed["wzv"].shape[1]
    hid = packed["wza"].shape[0]
    atp = packed["bq"].shape[1]
    assert atp == action_space * pa

    # Batch tiling: >=8 rows per grid step (full f32 sublane tiles); split into
    # 2 parallel blocks once there is enough work so both v7x TensorCores get a
    # block; a single block (TB == N) on tiny batches is best for 1-TC chips.
    max_tb = 512
    num_blocks = max(2 if n > 8 else 1, _cdiv(n, max_tb))
    n_pad = _round_up(n, 8 * num_blocks)
    tb = n_pad // num_blocks

    colm = jnp.pad(colm, ((0, n_pad - n), (0, k9p - k9)))

    def const(arr):                       # weights: constant block -> resident
        return pl.BlockSpec(arr.shape, lambda i: (0, 0))

    q_flat = pl.pallas_call(
        functools.partial(_dqnas_kernel, log=log, hidden=hid,
                          actions=action_space, pad_atoms=pa),
        out_shape=jax.ShapeDtypeStruct((n_pad, atp), jnp.float32),
        grid=(num_blocks,),
        in_specs=[
            pl.BlockSpec((tb, k9p), lambda i: (i, 0)),
            const(packed["wcol"]), const(packed["shift"]),
            const(packed["whva"]), const(packed["bhva"]),
            const(packed["wza"]), const(packed["wzv"]),
            const(packed["mvbc"]), const(packed["bq"]),
            const(packed["msum"]), const(packed["mbc"]),
        ],
        out_specs=pl.BlockSpec((tb, atp), lambda i: (i, 0)),
        compiler_params=pltpu.CompilerParams(
            dimension_semantics=("parallel",)),
    )(colm, packed["wcol"], packed["shift"], packed["whva"], packed["bhva"],
      packed["wza"], packed["wzv"], packed["mvbc"], packed["bq"],
      packed["msum"], packed["mbc"])

    # lane-dense (Np, A*PA) slab -> (N, action_space, atoms) in the wrapper
    return q_flat[:n].reshape(n, action_space, pa)[:, :, :atoms]


# ----------------------------------------------------------------------------
# Pure-JAX reference (same eval-mode math) for correctness checking
# ----------------------------------------------------------------------------
def dqnas_reference(p, x_nchw, *, action_space, atoms, log=False, eps=1e-5):
    hi = jax.lax.Precision.HIGHEST
    x = jnp.transpose(x_nchw, (0, 2, 3, 1))
    y = jax.lax.conv_general_dilated(
        x, p["stem_w"], window_strides=(1, 1), padding="SAME",
        dimension_numbers=("NHWC", "HWIO", "NHWC"), precision=hi)
    inv = p["bn_gamma"] / jnp.sqrt(p["bn_var"] + eps)
    y = y * inv + (p["bn_beta"] - p["bn_mean"] * inv)
    pooled = jnp.mean(y, axis=(1, 2))                               # (N, C)
    hv = jax.nn.relu(jnp.dot(pooled, p["whv"], precision=hi) + p["bhv"])
    ha = jax.nn.relu(jnp.dot(pooled, p["wha"], precision=hi) + p["bha"])
    v = jnp.dot(hv, p["wzv"], precision=hi) + p["bzv"]              # (N, T)
    a = (jnp.dot(ha, p["wza"], precision=hi) + p["bza"]).reshape(
        -1, action_space, atoms)
    q = v[:, None, :] + a - a.mean(axis=1, keepdims=True)
    return jax.nn.log_softmax(q, axis=2) if log else jax.nn.softmax(q, axis=2)


if __name__ == "__main__":
    key = jax.random.PRNGKey(0)
    kx, kp, kx2 = jax.random.split(key, 3)

    N, Cin, H, W = 2, 3, 16, 16
    num_classes, atoms, hidden = 10, 51, 512

    x = jax.random.normal(kx, (N, Cin, H, W), jnp.float32)
    raw = init_params(kp, C=8, in_channels=Cin, num_classes=num_classes,
                      hidden_size=hidden, atoms=atoms)
    packed = pack_params(raw, action_space=num_classes, atoms=atoms)

    # softmax path
    q = dqnas_forward(packed, x, action_space=num_classes, atoms=atoms,
                      log=False)
    q = jax.block_until_ready(q)
    assert q.shape == (N, num_classes, atoms), q.shape
    assert bool(jnp.all(jnp.isfinite(q)))
    sums = jnp.sum(q, axis=2)
    assert bool(jnp.allclose(sums, 1.0, atol=1e-4)), sums

    q_ref = dqnas_reference(raw, x, action_space=num_classes, atoms=atoms,
                            log=False)
    err = float(jnp.max(jnp.abs(q - q_ref)))
    assert err < 2e-3, err          # bf16 weight storage, f32 accumulation

    # log_softmax path
    ql = jax.block_until_ready(
        dqnas_forward(packed, x, action_space=num_classes, atoms=atoms,
                      log=True))
    ql_ref = dqnas_reference(raw, x, action_space=num_classes, atoms=atoms,
                             log=True)
    assert bool(jnp.all(jnp.isfinite(ql)))
    err_l = float(jnp.max(jnp.abs(ql - ql_ref)))
    assert err_l < 1e-2, err_l

    # larger batch exercises the multi-block (2 TensorCore) path
    x16 = jax.random.normal(kx2, (16, Cin, H, W), jnp.float32)
    q16 = jax.block_until_ready(
        dqnas_forward(packed, x16, action_space=num_classes, atoms=atoms,
                      log=False))
    q16_ref = dqnas_reference(raw, x16, action_space=num_classes, atoms=atoms,
                              log=False)
    assert q16.shape == (16, num_classes, atoms)
    err16 = float(jnp.max(jnp.abs(q16 - q16_ref)))
    assert err16 < 2e-3, err16

    print("KERNEL_OK")
</pallas_src>

<mosaic_0001>
module attributes {stable_mosaic.version = 11 : i64} {
  func.func @_dqnas_kernel(%arg0: i32, %arg1: memref<8x32xf32, #tpu.memory_space<vmem>>, %arg2: memref<32x24xf32, #tpu.memory_space<vmem>>, %arg3: memref<1x24xf32, #tpu.memory_space<vmem>>, %arg4: memref<24x1024xbf16, #tpu.memory_space<vmem>>, %arg5: memref<1x1024xf32, #tpu.memory_space<vmem>>, %arg6: memref<512x640xbf16, #tpu.memory_space<vmem>>, %arg7: memref<512x64xbf16, #tpu.memory_space<vmem>>, %arg8: memref<64x640xf32, #tpu.memory_space<vmem>>, %arg9: memref<1x640xf32, #tpu.memory_space<vmem>>, %arg10: memref<640x10xf32, #tpu.memory_space<vmem>>, %arg11: memref<10x640xf32, #tpu.memory_space<vmem>>, %arg12: memref<8x640xf32, #tpu.memory_space<vmem>>) attributes {dimension_semantics = [#tpu.dimension_semantics<parallel>], iteration_bounds = array<i64: 1>, scalar_prefetch = 0 : i64, scratch_operands = 0 : i64, tpu.core_type = #tpu.core_type<tc>, window_params = [{transform_indices = @transform_0, window_bounds = array<i64: 8, 32>}, {pipeline_mode = #tpu.pipeline_mode<synchronous>, transform_indices = @transform_1, window_bounds = array<i64: 32, 24>}, {pipeline_mode = #tpu.pipeline_mode<synchronous>, transform_indices = @transform_2, window_bounds = array<i64: 1, 24>}, {pipeline_mode = #tpu.pipeline_mode<synchronous>, transform_indices = @transform_3, window_bounds = array<i64: 24, 1024>}, {pipeline_mode = #tpu.pipeline_mode<synchronous>, transform_indices = @transform_4, window_bounds = array<i64: 1, 1024>}, {pipeline_mode = #tpu.pipeline_mode<synchronous>, transform_indices = @transform_5, window_bounds = array<i64: 512, 640>}, {pipeline_mode = #tpu.pipeline_mode<synchronous>, transform_indices = @transform_6, window_bounds = array<i64: 512, 64>}, {pipeline_mode = #tpu.pipeline_mode<synchronous>, transform_indices = @transform_7, window_bounds = array<i64: 64, 640>}, {pipeline_mode = #tpu.pipeline_mode<synchronous>, transform_indices = @transform_8, window_bounds = array<i64: 1, 640>}, {pipeline_mode = #tpu.pipeline_mode<synchronous>, transform_indices = @transform_9, window_bounds = array<i64: 640, 10>}, {pipeline_mode = #tpu.pipeline_mode<synchronous>, transform_indices = @transform_10, window_bounds = array<i64: 10, 640>}, {transform_indices = @transform_11, window_bounds = array<i64: 8, 640>}]} {
    %c0 = arith.constant 0 : index
    %c0_0 = arith.constant 0 : index
    %0 = vector.load %arg1[%c0, %c0_0] : memref<8x32xf32, #tpu.memory_space<vmem>>, vector<8x32xf32>
    %c0_1 = arith.constant 0 : index
    %c0_2 = arith.constant 0 : index
    %1 = vector.load %arg2[%c0_1, %c0_2] : memref<32x24xf32, #tpu.memory_space<vmem>>, vector<32x24xf32>
    %cst = arith.constant dense<0.000000e+00> : vector<8x24xf32>
    %2 = tpu.matmul %0, %1, %cst {dimension_numbers = #tpu.dot_dimension_numbers<[1], [0], [0], [1], [0, 0, 1, 1], [], []>} : vector<8x32xf32>, vector<32x24xf32>, vector<8x24xf32> -> vector<8x24xf32>
    %c0_3 = arith.constant 0 : index
    %c0_4 = arith.constant 0 : index
    %3 = vector.load %arg3[%c0_3, %c0_4] : memref<1x24xf32, #tpu.memory_space<vmem>>, vector<1x24xf32>
    %4 = vector.broadcast %3 : vector<1x24xf32> to vector<8x24xf32>
    %5 = arith.addf %2, %4 : vector<8x24xf32>
    %6 = arith.truncf %5 : vector<8x24xf32> to vector<8x24xbf16>
    %c0_5 = arith.constant 0 : index
    %c0_6 = arith.constant 0 : index
    %7 = vector.load %arg4[%c0_5, %c0_6] : memref<24x1024xbf16, #tpu.memory_space<vmem>>, vector<24x1024xbf16>
    %cst_7 = arith.constant dense<0.000000e+00> : vector<8x1024xf32>
    %8 = tpu.matmul %6, %7, %cst_7 {dimension_numbers = #tpu.dot_dimension_numbers<[1], [0], [0], [1], [0, 0, 1, 1], [], []>} : vector<8x24xbf16>, vector<24x1024xbf16>, vector<8x1024xf32> -> vector<8x1024xf32>
    %c0_8 = arith.constant 0 : index
    %c0_9 = arith.constant 0 : index
    %9 = vector.load %arg5[%c0_8, %c0_9] : memref<1x1024xf32, #tpu.memory_space<vmem>>, vector<1x1024xf32>
    %10 = vector.broadcast %9 : vector<1x1024xf32> to vector<8x1024xf32>
    %11 = arith.addf %8, %10 : vector<8x1024xf32>
    %cst_10 = arith.constant 0.000000e+00 : f32
    %12 = vector.broadcast %cst_10 : f32 to vector<8x1024xf32>
    %13 = arith.maximumf %11, %12 : vector<8x1024xf32>
    %14 = vector.extract_strided_slice %13 {offsets = [0, 0], sizes = [8, 512], strides = [1, 1]} : vector<8x1024xf32> to vector<8x512xf32>
    %15 = arith.truncf %14 : vector<8x512xf32> to vector<8x512xbf16>
    %16 = vector.extract_strided_slice %13 {offsets = [0, 512], sizes = [8, 512], strides = [1, 1]} : vector<8x1024xf32> to vector<8x512xf32>
    %17 = arith.truncf %16 : vector<8x512xf32> to vector<8x512xbf16>
    %c0_11 = arith.constant 0 : index
    %c0_12 = arith.constant 0 : index
    %18 = vector.load %arg6[%c0_11, %c0_12] : memref<512x640xbf16, #tpu.memory_space<vmem>>, vector<512x640xbf16>
    %cst_13 = arith.constant dense<0.000000e+00> : vector<8x640xf32>
    %19 = tpu.matmul %17, %18, %cst_13 {dimension_numbers = #tpu.dot_dimension_numbers<[1], [0], [0], [1], [0, 0, 1, 1], [], []>} : vector<8x512xbf16>, vector<512x640xbf16>, vector<8x640xf32> -> vector<8x640xf32>
    %c0_14 = arith.constant 0 : index
    %c0_15 = arith.constant 0 : index
    %20 = vector.load %arg7[%c0_14, %c0_15] : memref<512x64xbf16, #tpu.memory_space<vmem>>, vector<512x64xbf16>
    %cst_16 = arith.constant dense<0.000000e+00> : vector<8x64xf32>
    %21 = tpu.matmul %15, %20, %cst_16 {dimension_numbers = #tpu.dot_dimension_numbers<[1], [0], [0], [1], [0, 0, 1, 1], [], []>} : vector<8x512xbf16>, vector<512x64xbf16>, vector<8x64xf32> -> vector<8x64xf32>
    %c0_17 = arith.constant 0 : index
    %c0_18 = arith.constant 0 : index
    %22 = vector.load %arg8[%c0_17, %c0_18] : memref<64x640xf32, #tpu.memory_space<vmem>>, vector<64x640xf32>
    %cst_19 = arith.constant dense<0.000000e+00> : vector<8x640xf32>
    %23 = tpu.matmul %21, %22, %cst_19 {dimension_numbers = #tpu.dot_dimension_numbers<[1], [0], [0], [1], [0, 0, 1, 1], [], []>} : vector<8x64xf32>, vector<64x640xf32>, vector<8x640xf32> -> vector<8x640xf32>
    %24 = arith.addf %19, %23 : vector<8x640xf32>
    %c0_20 = arith.constant 0 : index
    %c0_21 = arith.constant 0 : index
    %25 = vector.load %arg9[%c0_20, %c0_21] : memref<1x640xf32, #tpu.memory_space<vmem>>, vector<1x640xf32>
    %26 = vector.broadcast %25 : vector<1x640xf32> to vector<8x640xf32>
    %27 = arith.addf %24, %26 : vector<8x640xf32>
    %c0_22 = arith.constant 0 : index
    %c0_23 = arith.constant 0 : index
    %28 = vector.load %arg11[%c0_22, %c0_23] : memref<10x640xf32, #tpu.memory_space<vmem>>, vector<10x640xf32>
    %29 = vector.extract_strided_slice %27 {offsets = [0, 0], sizes = [8, 64], strides = [1, 1]} : vector<8x640xf32> to vector<8x64xf32>
    %cst_24 = arith.constant dense<0xFF800000> : vector<8xf32>
    %30 = vector.multi_reduction <maximumf>, %29, %cst_24 [1] : vector<8x64xf32> to vector<8xf32>
    %31 = vector.shape_cast %30 : vector<8xf32> to vector<8x1xf32>
    %32 = vector.extract_strided_slice %28 {offsets = [0, 0], sizes = [1, 640], strides = [1, 1]} : vector<10x640xf32> to vector<1x640xf32>
    %33 = vector.broadcast %31 : vector<8x1xf32> to vector<8x640xf32>
    %34 = vector.broadcast %32 : vector<1x640xf32> to vector<8x640xf32>
    %35 = arith.mulf %33, %34 : vector<8x640xf32>
    %36 = vector.extract_strided_slice %27 {offsets = [0, 64], sizes = [8, 64], strides = [1, 1]} : vector<8x640xf32> to vector<8x64xf32>
    %cst_25 = arith.constant dense<0xFF800000> : vector<8xf32>
    %37 = vector.multi_reduction <maximumf>, %36, %cst_25 [1] : vector<8x64xf32> to vector<8xf32>
    %38 = vector.shape_cast %37 : vector<8xf32> to vector<8x1xf32>
    %39 = vector.extract_strided_slice %28 {offsets = [1, 0], sizes = [1, 640], strides = [1, 1]} : vector<10x640xf32> to vector<1x640xf32>
    %40 = vector.broadcast %38 : vector<8x1xf32> to vector<8x640xf32>
    %41 = vector.broadcast %39 : vector<1x640xf32> to vector<8x640xf32>
    %42 = arith.mulf %40, %41 : vector<8x640xf32>
    %43 = arith.addf %35, %42 : vector<8x640xf32>
    %44 = vector.extract_strided_slice %27 {offsets = [0, 128], sizes = [8, 64], strides = [1, 1]} : vector<8x640xf32> to vector<8x64xf32>
    %cst_26 = arith.constant dense<0xFF800000> : vector<8xf32>
    %45 = vector.multi_reduction <maximumf>, %44, %cst_26 [1] : vector<8x64xf32> to vector<8xf32>
    %46 = vector.shape_cast %45 : vector<8xf32> to vector<8x1xf32>
    %47 = vector.extract_strided_slice %28 {offsets = [2, 0], sizes = [1, 640], strides = [1, 1]} : vector<10x640xf32> to vector<1x640xf32>
    %48 = vector.broadcast %46 : vector<8x1xf32> to vector<8x640xf32>
    %49 = vector.broadcast %47 : vector<1x640xf32> to vector<8x640xf32>
    %50 = arith.mulf %48, %49 : vector<8x640xf32>
    %51 = arith.addf %43, %50 : vector<8x640xf32>
    %52 = vector.extract_strided_slice %27 {offsets = [0, 192], sizes = [8, 64], strides = [1, 1]} : vector<8x640xf32> to vector<8x64xf32>
    %cst_27 = arith.constant dense<0xFF800000> : vector<8xf32>
    %53 = vector.multi_reduction <maximumf>, %52, %cst_27 [1] : vector<8x64xf32> to vector<8xf32>
    %54 = vector.shape_cast %53 : vector<8xf32> to vector<8x1xf32>
    %55 = vector.extract_strided_slice %28 {offsets = [3, 0], sizes = [1, 640], strides = [1, 1]} : vector<10x640xf32> to vector<1x640xf32>
    %56 = vector.broadcast %54 : vector<8x1xf32> to vector<8x640xf32>
    %57 = vector.broadcast %55 : vector<1x640xf32> to vector<8x640xf32>
    %58 = arith.mulf %56, %57 : vector<8x640xf32>
    %59 = arith.addf %51, %58 : vector<8x640xf32>
    %60 = vector.extract_strided_slice %27 {offsets = [0, 256], sizes = [8, 64], strides = [1, 1]} : vector<8x640xf32> to vector<8x64xf32>
    %cst_28 = arith.constant dense<0xFF800000> : vector<8xf32>
    %61 = vector.multi_reduction <maximumf>, %60, %cst_28 [1] : vector<8x64xf32> to vector<8xf32>
    %62 = vector.shape_cast %61 : vector<8xf32> to vector<8x1xf32>
    %63 = vector.extract_strided_slice %28 {offsets = [4, 0], sizes = [1, 640], strides = [1, 1]} : vector<10x640xf32> to vector<1x640xf32>
    %64 = vector.broadcast %62 : vector<8x1xf32> to vector<8x640xf32>
    %65 = vector.broadcast %63 : vector<1x640xf32> to vector<8x640xf32>
    %66 = arith.mulf %64, %65 : vector<8x640xf32>
    %67 = arith.addf %59, %66 : vector<8x640xf32>
    %68 = vector.extract_strided_slice %27 {offsets = [0, 320], sizes = [8, 64], strides = [1, 1]} : vector<8x640xf32> to vector<8x64xf32>
    %cst_29 = arith.constant dense<0xFF800000> : vector<8xf32>
    %69 = vector.multi_reduction <maximumf>, %68, %cst_29 [1] : vector<8x64xf32> to vector<8xf32>
    %70 = vector.shape_cast %69 : vector<8xf32> to vector<8x1xf32>
    %71 = vector.extract_strided_slice %28 {offsets = [5, 0], sizes = [1, 640], strides = [1, 1]} : vector<10x640xf32> to vector<1x640xf32>
    %72 = vector.broadcast %70 : vector<8x1xf32> to vector<8x640xf32>
    %73 = vector.broadcast %71 : vector<1x640xf32> to vector<8x640xf32>
    %74 = arith.mulf %72, %73 : vector<8x640xf32>
    %75 = arith.addf %67, %74 : vector<8x640xf32>
    %76 = vector.extract_strided_slice %27 {offsets = [0, 384], sizes = [8, 64], strides = [1, 1]} : vector<8x640xf32> to vector<8x64xf32>
    %cst_30 = arith.constant dense<0xFF800000> : vector<8xf32>
    %77 = vector.multi_reduction <maximumf>, %76, %cst_30 [1] : vector<8x64xf32> to vector<8xf32>
    %78 = vector.shape_cast %77 : vector<8xf32> to vector<8x1xf32>
    %79 = vector.extract_strided_slice %28 {offsets = [6, 0], sizes = [1, 640], strides = [1, 1]} : vector<10x640xf32> to vector<1x640xf32>
    %80 = vector.broadcast %78 : vector<8x1xf32> to vector<8x640xf32>
    %81 = vector.broadcast %79 : vector<1x640xf32> to vector<8x640xf32>
    %82 = arith.mulf %80, %81 : vector<8x640xf32>
    %83 = arith.addf %75, %82 : vector<8x640xf32>
    %84 = vector.extract_strided_slice %27 {offsets = [0, 448], sizes = [8, 64], strides = [1, 1]} : vector<8x640xf32> to vector<8x64xf32>
    %cst_31 = arith.constant dense<0xFF800000> : vector<8xf32>
    %85 = vector.multi_reduction <maximumf>, %84, %cst_31 [1] : vector<8x64xf32> to vector<8xf32>
    %86 = vector.shape_cast %85 : vector<8xf32> to vector<8x1xf32>
    %87 = vector.extract_strided_slice %28 {offsets = [7, 0], sizes = [1, 640], strides = [1, 1]} : vector<10x640xf32> to vector<1x640xf32>
    %88 = vector.broadcast %86 : vector<8x1xf32> to vector<8x640xf32>
    %89 = vector.broadcast %87 : vector<1x640xf32> to vector<8x640xf32>
    %90 = arith.mulf %88, %89 : vector<8x640xf32>
    %91 = arith.addf %83, %90 : vector<8x640xf32>
    %92 = vector.extract_strided_slice %27 {offsets = [0, 512], sizes = [8, 64], strides = [1, 1]} : vector<8x640xf32> to vector<8x64xf32>
    %cst_32 = arith.constant dense<0xFF800000> : vector<8xf32>
    %93 = vector.multi_reduction <maximumf>, %92, %cst_32 [1] : vector<8x64xf32> to vector<8xf32>
    %94 = vector.shape_cast %93 : vector<8xf32> to vector<8x1xf32>
    %95 = vector.extract_strided_slice %28 {offsets = [8, 0], sizes = [1, 640], strides = [1, 1]} : vector<10x640xf32> to vector<1x640xf32>
    %96 = vector.broadcast %94 : vector<8x1xf32> to vector<8x640xf32>
    %97 = vector.broadcast %95 : vector<1x640xf32> to vector<8x640xf32>
    %98 = arith.mulf %96, %97 : vector<8x640xf32>
    %99 = arith.addf %91, %98 : vector<8x640xf32>
    %100 = vector.extract_strided_slice %27 {offsets = [0, 576], sizes = [8, 64], strides = [1, 1]} : vector<8x640xf32> to vector<8x64xf32>
    %cst_33 = arith.constant dense<0xFF800000> : vector<8xf32>
    %101 = vector.multi_reduction <maximumf>, %100, %cst_33 [1] : vector<8x64xf32> to vector<8xf32>
    %102 = vector.shape_cast %101 : vector<8xf32> to vector<8x1xf32>
    %103 = vector.extract_strided_slice %28 {offsets = [9, 0], sizes = [1, 640], strides = [1, 1]} : vector<10x640xf32> to vector<1x640xf32>
    %104 = vector.broadcast %102 : vector<8x1xf32> to vector<8x640xf32>
    %105 = vector.broadcast %103 : vector<1x640xf32> to vector<8x640xf32>
    %106 = arith.mulf %104, %105 : vector<8x640xf32>
    %107 = arith.addf %99, %106 : vector<8x640xf32>
    %108 = arith.subf %27, %107 : vector<8x640xf32>
    %109 = math.exp %108 : vector<8x640xf32>
    %c0_34 = arith.constant 0 : index
    %c0_35 = arith.constant 0 : index
    %110 = vector.load %arg10[%c0_34, %c0_35] : memref<640x10xf32, #tpu.memory_space<vmem>>, vector<640x10xf32>
    %cst_36 = arith.constant dense<0.000000e+00> : vector<8x10xf32>
    %111 = tpu.matmul %109, %110, %cst_36 {dimension_numbers = #tpu.dot_dimension_numbers<[1], [0], [0], [1], [0, 0, 1, 1], [], []>} : vector<8x640xf32>, vector<640x10xf32>, vector<8x10xf32> -> vector<8x10xf32>
    %cst_37 = arith.constant dense<0.000000e+00> : vector<8x640xf32>
    %112 = tpu.matmul %111, %28, %cst_37 {dimension_numbers = #tpu.dot_dimension_numbers<[1], [0], [0], [1], [0, 0, 1, 1], [], []>} : vector<8x10xf32>, vector<10x640xf32>, vector<8x640xf32> -> vector<8x640xf32>
    %113 = tpu.reciprocal %112 : vector<8x640xf32> -> vector<8x640xf32>
    %114 = arith.mulf %109, %113 : vector<8x640xf32>
    %c0_38 = arith.constant 0 : index
    %c0_39 = arith.constant 0 : index
    %115 = vector.load %arg12[%c0_38, %c0_39] : memref<8x640xf32, #tpu.memory_space<vmem>>, vector<8x640xf32>
    tpu.vector_store %arg12[%c0_38, %c0_39], %114 {strides = array<i32>} : memref<8x640xf32, #tpu.memory_space<vmem>>, vector<8x640xf32>,
    return
  }
  func.func @transform_0(%arg0: i32) -> (i32, i32) {
    %c0_i32 = arith.constant 0 : i32
    %c0_i32_0 = arith.constant 0 : i32
    return %arg0, %c0_i32 : i32, i32
  }
  func.func @transform_1(%arg0: i32) -> (i32, i32) {
    %c0_i32 = arith.constant 0 : i32
    %c0_i32_0 = arith.constant 0 : i32
    %c0_i32_1 = arith.constant 0 : i32
    return %c0_i32, %c0_i32_0 : i32, i32
  }
  func.func @transform_2(%arg0: i32) -> (i32, i32) {
    %c0_i32 = arith.constant 0 : i32
    %c0_i32_0 = arith.constant 0 : i32
    %c0_i32_1 = arith.constant 0 : i32
    return %c0_i32, %c0_i32_0 : i32, i32
  }
  func.func @transform_3(%arg0: i32) -> (i32, i32) {
    %c0_i32 = arith.constant 0 : i32
    %c0_i32_0 = arith.constant 0 : i32
    %c0_i32_1 = arith.constant 0 : i32
    return %c0_i32, %c0_i32_0 : i32, i32
  }
  func.func @transform_4(%arg0: i32) -> (i32, i32) {
    %c0_i32 = arith.constant 0 : i32
    %c0_i32_0 = arith.constant 0 : i32
    %c0_i32_1 = arith.constant 0 : i32
    return %c0_i32, %c0_i32_0 : i32, i32
  }
  func.func @transform_5(%arg0: i32) -> (i32, i32) {
    %c0_i32 = arith.constant 0 : i32
    %c0_i32_0 = arith.constant 0 : i32
    %c0_i32_1 = arith.constant 0 : i32
    return %c0_i32, %c0_i32_0 : i32, i32
  }
  func.func @transform_6(%arg0: i32) -> (i32, i32) {
    %c0_i32 = arith.constant 0 : i32
    %c0_i32_0 = arith.constant 0 : i32
    %c0_i32_1 = arith.constant 0 : i32
    return %c0_i32, %c0_i32_0 : i32, i32
  }
  func.func @transform_7(%arg0: i32) -> (i32, i32) {
    %c0_i32 = arith.constant 0 : i32
    %c0_i32_0 = arith.constant 0 : i32
    %c0_i32_1 = arith.constant 0 : i32
    return %c0_i32, %c0_i32_0 : i32, i32
  }
  func.func @transform_8(%arg0: i32) -> (i32, i32) {
    %c0_i32 = arith.constant 0 : i32
    %c0_i32_0 = arith.constant 0 : i32
    %c0_i32_1 = arith.constant 0 : i32
    return %c0_i32, %c0_i32_0 : i32, i32
  }
  func.func @transform_9(%arg0: i32) -> (i32, i32) {
    %c0_i32 = arith.constant 0 : i32
    %c0_i32_0 = arith.constant 0 : i32
    %c0_i32_1 = arith.constant 0 : i32
    return %c0_i32, %c0_i32_0 : i32, i32
  }
  func.func @transform_10(%arg0: i32) -> (i32, i32) {
    %c0_i32 = arith.constant 0 : i32
    %c0_i32_0 = arith.constant 0 : i32
    %c0_i32_1 = arith.constant 0 : i32
    return %c0_i32, %c0_i32_0 : i32, i32
  }
  func.func @transform_11(%arg0: i32) -> (i32, i32) {
    %c0_i32 = arith.constant 0 : i32
    %c0_i32_0 = arith.constant 0 : i32
    return %arg0, %c0_i32 : i32, i32
  }
}

</mosaic_0001>

<llo_original>
// kernel: dqnas_forward.1
$region0: #{dqnas_forward.1}
  #allocation0 [shape = 'u32[]', space=smem, size = 0x4, offset = 0x4, fixed_abs, tag = 'smem constant byte address 0x4 - core index']
  #allocation1 [shape = 'u32[144,128]{1,0:T(1,128)}', space=vmem, size = 0x12000, scoped, tag = 'internal scratch']
  %s0 = inlined_call_operand.vmem [shape: f32[8,32], index: 0, kind: input, shape index: {}]
  %s1 = inlined_call_operand.vmem [shape: f32[32,24], index: 1, kind: input, shape index: {}]
  %s2 = inlined_call_operand.vmem [shape: f32[1,24], index: 2, kind: input, shape index: {}]
  %s3 = inlined_call_operand.vmem [shape: bf16[24,1024], index: 3, kind: input, shape index: {}]
  %s4 = inlined_call_operand.vmem [shape: f32[1,1024], index: 4, kind: input, shape index: {}]
  %s5 = inlined_call_operand.vmem [shape: bf16[512,640], index: 5, kind: input, shape index: {}]
  %s6 = inlined_call_operand.vmem [shape: bf16[512,64], index: 6, kind: input, shape index: {}]
  %s7 = inlined_call_operand.hbm [shape: f32[64,640], index: 7, kind: input, shape index: {}]
  %s8 = inlined_call_operand.vmem [shape: f32[1,640], index: 8, kind: input, shape index: {}]
  %s9 = inlined_call_operand.vmem [shape: f32[640,10], index: 9, kind: input, shape index: {}]
  %s10 = inlined_call_operand.hbm [shape: f32[10,640], index: 10, kind: input, shape index: {}]
  %s11 = inlined_call_operand.vmem [shape: f32[8,640], index: 11, kind: output, shape index: {}]
  %s12 = sld [smem:[#allocation0]]
  $region62: #{dqnas_forward.1} parent=0
    _
  %s14 = ssub.s32 1, %s12
  %s15 = scalar_select 0, %s14, %s12
  $region1: #{dqnas_forward.1} parent=0
    #allocation2 [shape = 'u8[163840]{0}', space=vmem, size = 0x28000, scoped, tag = 'input window, operand 7, single buffered']
    #allocation3 [shape = 's32[1]{0}', space=sflag, size = 0x4, scoped, tag = 'scoped memory for dqnas_forward.1']
    #allocation4 [shape = 'u8[40960]{0}', space=vmem, size = 0xa000, scoped, tag = 'input window, operand 10, single buffered']
    #allocation5 [shape = 's32[1]{0}', space=sflag, size = 0x4, scoped, tag = 'scoped memory for dqnas_forward.1']
    %16 = vsyncpa [#allocation3], 0
    %17 = vsyncpa [#allocation5], 0
    // Predicated region
    $region2: #{dqnas_forward.1} parent=1 // pred_check
      _
    $region3: #{dqnas_forward.1} parent=1 // pred_check_branch
      %19 = sbr.rel (0) target = $region5
    $region4: #{dqnas_forward.1} parent=1 // pred_region
      _
    $region5: #{dqnas_forward.1} parent=1 // pred_fallthru
      _
    // Predicated region
    $region6: #{dqnas_forward.1} parent=1 // pred_check
      _
    $region7: #{dqnas_forward.1} parent=1 // pred_check_branch
      %21 = sbr.rel (0) target = $region9
    $region8: #{dqnas_forward.1} parent=1 // pred_region
      _
    $region9: #{dqnas_forward.1} parent=1 // pred_fallthru
      _
    // Predicated region
    $region10: #{dqnas_forward.1} parent=1 // pred_check
      _
    $region11: #{dqnas_forward.1} parent=1 // pred_check_branch
      %23 = sbr.rel (0) target = $region13
    $region12: #{dqnas_forward.1} parent=1 // pred_region
      _
    $region13: #{dqnas_forward.1} parent=1 // pred_fallthru
      _
    // Predicated region
    $region14: #{dqnas_forward.1} parent=1 // pred_check
      _
    $region15: #{dqnas_forward.1} parent=1 // pred_check_branch
      %25 = sbr.rel (0) target = $region17
    $region16: #{dqnas_forward.1} parent=1 // pred_region
      _
    $region17: #{dqnas_forward.1} parent=1 // pred_fallthru
      _
    // Predicated region
    $region18: #{dqnas_forward.1} parent=1 // pred_check
      _
    $region19: #{dqnas_forward.1} parent=1 // pred_check_branch
      %27 = sbr.rel (0) target = $region21
    $region20: #{dqnas_forward.1} parent=1 // pred_region
      _
    $region21: #{dqnas_forward.1} parent=1 // pred_fallthru
      _
    // Predicated region
    $region22: #{dqnas_forward.1} parent=1 // pred_check
      _
    $region23: #{dqnas_forward.1} parent=1 // pred_check_branch
      %29 = sbr.rel (0) target = $region25
    $region24: #{dqnas_forward.1} parent=1 // pred_region
      _
    $region25: #{dqnas_forward.1} parent=1 // pred_fallthru
      _
    // Predicated region
    $region26: #{dqnas_forward.1} parent=1 // pred_check
      _
    $region27: #{dqnas_forward.1} parent=1 // pred_check_branch
      %31 = sbr.rel (0) target = $region29
    $region28: #{dqnas_forward.1} parent=1 // pred_region
      _
    $region29: #{dqnas_forward.1} parent=1 // pred_fallthru
      _
    // Predicated region
    $region30: #{dqnas_forward.1} parent=1 // pred_check
      _
    $region31: #{dqnas_forward.1} parent=1 // pred_check_branch
      %33 = sbr.rel (0) target = $region33
    $region32: #{dqnas_forward.1} parent=1 // pred_region
      %s35 = ssub.s32 5120, 5120
      %36 = vsyncadd [#allocation3], %s35
      %s37 = sshll.u32 [#allocation2], 4
      %s38 = int_to_ptr.vmem [resolvable:$true] %s37
      %43 = dma.hbm_to_vmem [thread:$0]  %s7, 5120, %s38, [#allocation3], 640, 640, 40
    $region33: #{dqnas_forward.1} parent=1 // pred_fallthru
      _
    // Predicated region
    $region34: #{dqnas_forward.1} parent=1 // pred_check
      _
    $region35: #{dqnas_forward.1} parent=1 // pred_check_branch
      %45 = sbr.rel (0) target = $region37
    $region36: #{dqnas_forward.1} parent=1 // pred_region
      _
    $region37: #{dqnas_forward.1} parent=1 // pred_fallthru
      _
    // Predicated region
    $region38: #{dqnas_forward.1} parent=1 // pred_check
      _
    $region39: #{dqnas_forward.1} parent=1 // pred_check_branch
      %47 = sbr.rel (0) target = $region41
    $region40: #{dqnas_forward.1} parent=1 // pred_region
      _
    $region41: #{dqnas_forward.1} parent=1 // pred_fallthru
      _
    // Predicated region
    $region42: #{dqnas_forward.1} parent=1 // pred_check
      _
    $region43: #{dqnas_forward.1} parent=1 // pred_check_branch
      %49 = sbr.rel (0) target = $region45
    $region44: #{dqnas_forward.1} parent=1 // pred_region
      %s51 = ssub.s32 1280, 1280
      %52 = vsyncadd [#allocation5], %s51
      %s53 = sshll.u32 [#allocation4], 4
      %s54 = int_to_ptr.vmem [resolvable:$true] %s53
      %59 = dma.hbm_to_vmem [thread:$0]  %s10, 1280, %s54, [#allocation5], 640, 640, 40
    $region45: #{dqnas_forward.1} parent=1 // pred_fallthru
      _
    // Predicated region
    $region46: #{dqnas_forward.1} parent=1 // pred_check
      _
    $region47: #{dqnas_forward.1} parent=1 // pred_check_branch
      %61 = sbr.rel (0) target = $region49
    $region48: #{dqnas_forward.1} parent=1 // pred_region
      %62 = dma.done [#allocation3], 5120
    $region49: #{dqnas_forward.1} parent=1 // pred_fallthru
      _
    // Predicated region
    $region50: #{dqnas_forward.1} parent=1 // pred_check
      _
    $region51: #{dqnas_forward.1} parent=1 // pred_check_branch
      %64 = sbr.rel (0) target = $region53
    $region52: #{dqnas_forward.1} parent=1 // pred_region
      %65 = dma.done [#allocation5], 1280
    $region53: #{dqnas_forward.1} parent=1 // pred_fallthru
      _
    %v67 = vld [vmem:[%s0] sm:$0xff]
    %v68 = vld [vmem:[%s1] sm:$0xff]
    %v69 = vld [vmem:[%s1 + $0x8] sm:$0xff]
    %v70 = vld [vmem:[%s1 + $0x10] sm:$0xff]
    %v71 = vld [vmem:[%s1 + $0x18] sm:$0xff]
    %v72 = vld [vmem:[%s2] sm:$0x1]
    %v74 = vlaneseq
    %v75 = vshrl.u32 %v74, 7
    %v76 = vsub.s32 0, %v75
    %v77 = vrot.slane %v72, %v76
    %vm79 = vcmask 261120
    %v81 = vsel %vm79, %v67, 0
    %83 = vmatprep.subr.mxu0 0.0
    %84 = vmatpush1.msra.mxu0 0.0
    %85 = vmatprep.subr.mxu0 0.0
    %86 = vmatpush1.msra.mxu0 0.0
    %87 = vmatprep.subr.mxu0 0.0
    %88 = vmatpush1.msra.mxu0 0.0
    %89 = vmatprep.subr.mxu0 0.0
    %90 = vmatpush1.msra.mxu0 0.0
    %91 = vmatprep.subr.mxu0 0.0
    %92 = vmatpush1.msra.mxu0 0.0
    %93 = vmatprep.subr.mxu0 0.0
    %94 = vmatpush1.msra.mxu0 0.0
    %95 = vmatprep.subr.mxu0 0.0
    %96 = vmatpush1.msra.mxu0 0.0
    %97 = vmatprep.subr.mxu0 0.0
    %98 = vmatpush1.msra.mxu0 0.0
    %99 = vmatprep.subr.mxu0 0.0
    %100 = vmatpush1.msra.mxu0 0.0
    %101 = vmatprep.subr.mxu0 0.0
    %102 = vmatpush1.msra.mxu0 0.0
    %103 = vmatprep.subr.mxu0 0.0
    %104 = vmatpush1.msra.mxu0 0.0
    %105 = vmatprep.subr.mxu0 0.0
    %106 = vmatpush1.msra.mxu0 0.0
    %107 = vmatprep.subr.mxu0 0.0
    %108 = vmatpush1.msra.mxu0 %v71
    %109 = vmatprep.subr.mxu0 0.0
    %110 = vmatpush1.msra.mxu0 %v70
    %111 = vmatprep.subr.mxu0 0.0
    %112 = vmatpush1.msra.mxu0 %v69
    %113 = vmatprep.subr.mxu0 0.0
    %114 = vmatpush1.msra.mxu0 %v68
    %115 = vmatprep.subr.mxu0 0.0
    %116 = vmatpush2.msra.mxu0 0.0
    %117 = vmatprep.subr.mxu0 0.0
    %118 = vmatpush2.msra.mxu0 0.0
    %119 = vmatprep.subr.mxu0 0.0
    %120 = vmatpush2.msra.mxu0 0.0
    %121 = vmatprep.subr.mxu0 0.0
    %122 = vmatpush2.msra.mxu0 0.0
    %123 = vmatprep.subr.mxu0 0.0
    %124 = vmatpush2.msra.mxu0 0.0
    %125 = vmatprep.subr.mxu0 0.0
    %126 = vmatpush2.msra.mxu0 0.0
    %127 = vmatprep.subr.mxu0 0.0
    %128 = vmatpush2.msra.mxu0 0.0
    %129 = vmatprep.subr.mxu0 0.0
    %130 = vmatpush2.msra.mxu0 0.0
    %131 = vmatprep.subr.mxu0 0.0
    %132 = vmatpush2.msra.mxu0 0.0
    %133 = vmatprep.subr.mxu0 0.0
    %134 = vmatpush2.msra.mxu0 0.0
    %135 = vmatprep.subr.mxu0 0.0
    %136 = vmatpush2.msra.mxu0 0.0
    %137 = vmatprep.subr.mxu0 0.0
    %138 = vmatpush2.msra.mxu0 0.0
    %139 = vmatprep.subr.mxu0 0.0
    %140 = vmatpush2.msra.mxu0 0.0
    %141 = vmatprep.subr.mxu0 0.0
    %142 = vmatpush2.msra.mxu0 0.0
    %143 = vmatprep.subr.mxu0 0.0
    %144 = vmatpush2.msra.mxu0 0.0
    %145 = vmatprep.subr.mxu0 0.0
    %146 = vmatpush2.msra.mxu0 0.0
    %147 = vmatprep.mubr.f32.mxu0 0.0
    %148 = vmatmul.mubr.f32.gmra.mxu0 %v81
    %v149 = vpop.f32.mrf.mxu0
    %v150 = vadd.f32 %v77, %v149
    %v151 = vpop.f32.mrf.mxu0
    %152 = vdwg.mxu0
    %v153 = vpack.c.bf16 %v150, %v150
    %v154 = vld [vmem:[%s3] sm:$0xff]
    %v155 = vld [vmem:[%s3 + $0x8] sm:$0xff]
    %v156 = vld [vmem:[%s3 + $0x10] sm:$0xff]
    %v157 = vld [vmem:[%s3 + $0x18] sm:$0xff]
    %v158 = vld [vmem:[%s3 + $0x20] sm:$0xff]
    %v159 = vld [vmem:[%s3 + $0x28] sm:$0xff]
    %v160 = vld [vmem:[%s3 + $0x30] sm:$0xff]
    %v161 = vld [vmem:[%s3 + $0x38] sm:$0xff]
    %v162 = vld [vmem:[%s3 + $0x40] sm:$0xff]
    %v163 = vld [vmem:[%s3 + $0x48] sm:$0xff]
    %v164 = vld [vmem:[%s3 + $0x50] sm:$0xff]
    %v165 = vld [vmem:[%s3 + $0x58] sm:$0xff]
    %v166 = vld [vmem:[%s4] sm:$0xff]
    %v168 = vlaneseq
    %v169 = vshrl.u32 %v168, 7
    %v170 = vsub.s32 0, %v169
    %v171 = vrot.slane %v166, %v170
    %v172 = vlaneseq
    %v173 = vshrl.u32 %v172, 7
    %v174 = vsub.s32 1, %v173
    %v175 = vrot.slane %v166, %v174
    %v176 = vlaneseq
    %v177 = vshrl.u32 %v176, 7
    %v178 = vsub.s32 2, %v177
    %v179 = vrot.slane %v166, %v178
    %v180 = vlaneseq
    %v181 = vshrl.u32 %v180, 7
    %v182 = vsub.s32 3, %v181
    %v183 = vrot.slane %v166, %v182
    %v184 = vlaneseq
    %v185 = vshrl.u32 %v184, 7
    %v186 = vsub.s32 4, %v185
    %v187 = vrot.slane %v166, %v186
    %v188 = vlaneseq
    %v189 = vshrl.u32 %v188, 7
    %v190 = vsub.s32 5, %v189
    %v191 = vrot.slane %v166, %v190
    %v192 = vlaneseq
    %v193 = vshrl.u32 %v192, 7
    %v194 = vsub.s32 6, %v193
    %v195 = vrot.slane %v166, %v194
    %v196 = vlaneseq
    %v197 = vshrl.u32 %v196, 7
    %v198 = vsub.s32 7, %v197
    %v199 = vrot.slane %v166, %v198
    %v220 = vunpack.c.l.b16 %v154
    %v221 = vunpack.c.h.b16 %v154
    %v222 = vunpack.c.l.b16 %v155
    %v223 = vunpack.c.h.b16 %v155
    %v224 = vunpack.c.l.b16 %v156
    %v225 = vunpack.c.h.b16 %v156
    %v226 = vunpack.c.l.b16 %v157
    %v227 = vunpack.c.h.b16 %v157
    %v228 = vunpack.c.l.b16 %v158
    %v229 = vunpack.c.h.b16 %v158
    %v230 = vunpack.c.l.b16 %v159
    %v231 = vunpack.c.h.b16 %v159
    %v232 = vunpack.c.l.b16 %v160
    %v233 = vunpack.c.h.b16 %v160
    %v234 = vunpack.c.l.b16 %v161
    %v235 = vunpack.c.h.b16 %v161
    %v236 = vunpack.c.l.b16 %v162
    %v237 = vunpack.c.h.b16 %v162
    %v238 = vunpack.c.l.b16 %v163
    %v239 = vunpack.c.h.b16 %v163
    %v240 = vunpack.c.l.b16 %v164
    %v241 = vunpack.c.h.b16 %v164
    %v242 = vunpack.c.l.b16 %v165
    %v243 = vunpack.c.h.b16 %v165
    %v244 = vpack.c.b16 %v228, %v220
    %v245 = vpack.c.b16 %v229, %v221
    %v246 = vpack.c.b16 %v230, %v222
    %v247 = vpack.c.b16 %v231, %v223
    %v248 = vpack.c.b16 %v232, %v224
    %v249 = vpack.c.b16 %v233, %v225
    %v250 = vpack.c.b16 %v234, %v226
    %v251 = vpack.c.b16 %v235, %v227
    %v252 = vpack.c.b16 %v236, %v236
    %v253 = vpack.c.b16 %v237, %v237
    %v254 = vpack.c.b16 %v238, %v238
    %v255 = vpack.c.b16 %v239, %v239
    %v256 = vpack.c.b16 %v240, %v240
    %v257 = vpack.c.b16 %v241, %v241
    %v258 = vpack.c.b16 %v242, %v242
    %v259 = vpack.c.b16 %v243, %v243
    %vm268 = vcmask 195584
    %v270 = vsel %vm268, %v153, 0
    %vm272 = vcmask 1043456
    %v274 = vsel %vm272, %v252, 0
    %v277 = vsel %vm272, %v253, 0
    %v280 = vsel %vm272, %v254, 0
    %v283 = vsel %vm272, %v255, 0
    %v286 = vsel %vm272, %v256, 0
    %v289 = vsel %vm272, %v257, 0
    %v292 = vsel %vm272, %v258, 0
    %v295 = vsel %vm272, %v259, 0
    %297 = vmatprep.subr.bf16.mxu0 0
    %298 = vmatpush1.bf16.msra.mxu0 0
    %299 = vmatprep.subr.bf16.mxu0 0
    %300 = vmatpush1.bf16.msra.mxu0 0
    %301 = vmatprep.subr.bf16.mxu0 0
    %302 = vmatpush1.bf16.msra.mxu0 0
    %303 = vmatprep.subr.bf16.mxu0 0
    %304 = vmatpush1.bf16.msra.mxu0 0
    %305 = vmatprep.subr.bf16.mxu0 0
    %306 = vmatpush1.bf16.msra.mxu0 0
    %307 = vmatprep.subr.bf16.mxu0 0
    %308 = vmatpush1.bf16.msra.mxu0 0
    %309 = vmatprep.subr.bf16.mxu0 %v277
    %310 = vmatpush1.bf16.msra.mxu0 %v274
    %311 = vmatprep.subr.bf16.mxu0 %v245
    %312 = vmatpush1.bf16.msra.mxu0 %v244
    %313 = vmatprep.subr.bf16.mxu0 0
    %314 = vmatpush2.bf16.msra.mxu0 0
    %315 = vmatprep.subr.bf16.mxu0 0
    %316 = vmatpush2.bf16.msra.mxu0 0
    %317 = vmatprep.subr.bf16.mxu0 0
    %318 = vmatpush2.bf16.msra.mxu0 0
    %319 = vmatprep.subr.bf16.mxu0 0
    %320 = vmatpush2.bf16.msra.mxu0 0
    %321 = vmatprep.subr.bf16.mxu0 0
    %322 = vmatpush2.bf16.msra.mxu0 0
    %323 = vmatprep.subr.bf16.mxu0 0
    %324 = vmatpush2.bf16.msra.mxu0 0
    %325 = vmatprep.subr.bf16.mxu0 0
    %326 = vmatpush2.bf16.msra.mxu0 0
    %327 = vmatprep.subr.bf16.mxu0 0
    %328 = vmatpush2.bf16.msra.mxu0 0
    %329 = vmatprep.mubr.bf16.mxu0 0
    %330 = vmatmul.mubr.bf16.gmra.mxu0 %v270
    %v331 = vpop.f32.mrf.mxu0
    %v332 = vadd.f32 %v171, %v331
    %v333 = vpop.f32.mrf.mxu0
    %v334 = vadd.f32 %v175, %v333
    %v335 = vpop.f32.mrf.mxu0
    %v336 = vpop.f32.mrf.mxu0
    %337 = vdwg.mxu0
    %338 = vmatprep.subr.bf16.mxu0 0
    %339 = vmatpush1.bf16.msra.mxu0 0
    %340 = vmatprep.subr.bf16.mxu0 0
    %341 = vmatpush1.bf16.msra.mxu0 0
    %342 = vmatprep.subr.bf16.mxu0 0
    %343 = vmatpush1.bf16.msra.mxu0 0
    %344 = vmatprep.subr.bf16.mxu0 0
    %345 = vmatpush1.bf16.msra.mxu0 0
    %346 = vmatprep.subr.bf16.mxu0 0
    %347 = vmatpush1.bf16.msra.mxu0 0
    %348 = vmatprep.subr.bf16.mxu0 0
    %349 = vmatpush1.bf16.msra.mxu0 0
    %350 = vmatprep.subr.bf16.mxu0 %v283
    %351 = vmatpush1.bf16.msra.mxu0 %v280
    %352 = vmatprep.subr.bf16.mxu0 %v247
    %353 = vmatpush1.bf16.msra.mxu0 %v246
    %354 = vmatprep.subr.bf16.mxu0 0
    %355 = vmatpush2.bf16.msra.mxu0 0
    %356 = vmatprep.subr.bf16.mxu0 0
    %357 = vmatpush2.bf16.msra.mxu0 0
    %358 = vmatprep.subr.bf16.mxu0 0
    %359 = vmatpush2.bf16.msra.mxu0 0
    %360 = vmatprep.subr.bf16.mxu0 0
    %361 = vmatpush2.bf16.msra.mxu0 0
    %362 = vmatprep.subr.bf16.mxu0 0
    %363 = vmatpush2.bf16.msra.mxu0 0
    %364 = vmatprep.subr.bf16.mxu0 0
    %365 = vmatpush2.bf16.msra.mxu0 0
    %366 = vmatprep.subr.bf16.mxu0 0
    %367 = vmatpush2.bf16.msra.mxu0 0
    %368 = vmatprep.subr.bf16.mxu0 0
    %369 = vmatpush2.bf16.msra.mxu0 0
    %370 = vmatprep.mubr.bf16.mxu0 0
    %371 = vmatmul.mubr.bf16.gmra.mxu0 %v270
    %v372 = vpop.f32.mrf.mxu0
    %v373 = vadd.f32 %v179, %v372
    %v374 = vpop.f32.mrf.mxu0
    %v375 = vadd.f32 %v183, %v374
    %v376 = vpop.f32.mrf.mxu0
    %v377 = vpop.f32.mrf.mxu0
    %378 = vdwg.mxu0
    %379 = vmatprep.subr.bf16.mxu0 0
    %380 = vmatpush1.bf16.msra.mxu0 0
    %381 = vmatprep.subr.bf16.mxu0 0
    %382 = vmatpush1.bf16.msra.mxu0 0
    %383 = vmatprep.subr.bf16.mxu0 0
    %384 = vmatpush1.bf16.msra.mxu0 0
    %385 = vmatprep.subr.bf16.mxu0 0
    %386 = vmatpush1.bf16.msra.mxu0 0
    %387 = vmatprep.subr.bf16.mxu0 0
    %388 = vmatpush1.bf16.msra.mxu0 0
    %389 = vmatprep.subr.bf16.mxu0 0
    %390 = vmatpush1.bf16.msra.mxu0 0
    %391 = vmatprep.subr.bf16.mxu0 %v289
    %392 = vmatpush1.bf16.msra.mxu0 %v286
    %393 = vmatprep.subr.bf16.mxu0 %v249
    %394 = vmatpush1.bf16.msra.mxu0 %v248
    %395 = vmatprep.subr.bf16.mxu0 0
    %396 = vmatpush2.bf16.msra.mxu0 0
    %397 = vmatprep.subr.bf16.mxu0 0
    %398 = vmatpush2.bf16.msra.mxu0 0
    %399 = vmatprep.subr.bf16.mxu0 0
    %400 = vmatpush2.bf16.msra.mxu0 0
    %401 = vmatprep.subr.bf16.mxu0 0
    %402 = vmatpush2.bf16.msra.mxu0 0
    %403 = vmatprep.subr.bf16.mxu0 0
    %404 = vmatpush2.bf16.msra.mxu0 0
    %405 = vmatprep.subr.bf16.mxu0 0
    %406 = vmatpush2.bf16.msra.mxu0 0
    %407 = vmatprep.subr.bf16.mxu0 0
    %408 = vmatpush2.bf16.msra.mxu0 0
    %409 = vmatprep.subr.bf16.mxu0 0
    %410 = vmatpush2.bf16.msra.mxu0 0
    %411 = vmatprep.mubr.bf16.mxu0 0
    %412 = vmatmul.mubr.bf16.gmra.mxu0 %v270
    %v413 = vpop.f32.mrf.mxu0
    %v414 = vadd.f32 %v187, %v413
    %v415 = vpop.f32.mrf.mxu0
    %v416 = vadd.f32 %v191, %v415
    %v417 = vpop.f32.mrf.mxu0
    %v418 = vpop.f32.mrf.mxu0
    %419 = vdwg.mxu0
    %420 = vmatprep.subr.bf16.mxu0 0
    %421 = vmatpush1.bf16.msra.mxu0 0
    %422 = vmatprep.subr.bf16.mxu0 0
    %423 = vmatpush1.bf16.msra.mxu0 0
    %424 = vmatprep.subr.bf16.mxu0 0
    %425 = vmatpush1.bf16.msra.mxu0 0
    %426 = vmatprep.subr.bf16.mxu0 0
    %427 = vmatpush1.bf16.msra.mxu0 0
    %428 = vmatprep.subr.bf16.mxu0 0
    %429 = vmatpush1.bf16.msra.mxu0 0
    %430 = vmatprep.subr.bf16.mxu0 0
    %431 = vmatpush1.bf16.msra.mxu0 0
    %432 = vmatprep.subr.bf16.mxu0 %v295
    %433 = vmatpush1.bf16.msra.mxu0 %v292
    %434 = vmatprep.subr.bf16.mxu0 %v251
    %435 = vmatpush1.bf16.msra.mxu0 %v250
    %436 = vmatprep.subr.bf16.mxu0 0
    %437 = vmatpush2.bf16.msra.mxu0 0
    %438 = vmatprep.subr.bf16.mxu0 0
    %439 = vmatpush2.bf16.msra.mxu0 0
    %440 = vmatprep.subr.bf16.mxu0 0
    %441 = vmatpush2.bf16.msra.mxu0 0
    %442 = vmatprep.subr.bf16.mxu0 0
    %443 = vmatpush2.bf16.msra.mxu0 0
    %444 = vmatprep.subr.bf16.mxu0 0
    %445 = vmatpush2.bf16.msra.mxu0 0
    %446 = vmatprep.subr.bf16.mxu0 0
    %447 = vmatpush2.bf16.msra.mxu0 0
    %448 = vmatprep.subr.bf16.mxu0 0
    %449 = vmatpush2.bf16.msra.mxu0 0
    %450 = vmatprep.subr.bf16.mxu0 0
    %451 = vmatpush2.bf16.msra.mxu0 0
    %452 = vmatprep.mubr.bf16.mxu0 0
    %453 = vmatmul.mubr.bf16.gmra.mxu0 %v270
    %v454 = vpop.f32.mrf.mxu0
    %v455 = vadd.f32 %v195, %v454
    %v456 = vpop.f32.mrf.mxu0
    %v457 = vadd.f32 %v199, %v456
    %v458 = vpop.f32.mrf.mxu0
    %v459 = vpop.f32.mrf.mxu0
    %460 = vdwg.mxu0
    %v461 = vmax.f32 %v332, 0.0
    %v462 = vmax.f32 %v334, 0.0
    %v463 = vmax.f32 %v373, 0.0
    %v464 = vmax.f32 %v375, 0.0
    %v465 = vmax.f32 %v414, 0.0
    %v466 = vmax.f32 %v416, 0.0
    %v467 = vmax.f32 %v455, 0.0
    %v468 = vmax.f32 %v457, 0.0
    %v469 = vpack.c.bf16 %v461, %v461
    %v470 = vpack.c.bf16 %v462, %v462
    %v471 = vpack.c.bf16 %v463, %v463
    %v472 = vpack.c.bf16 %v464, %v464
    %v473 = vpack.c.bf16 %v465, %v465
    %v474 = vpack.c.bf16 %v466, %v466
    %v475 = vpack.c.bf16 %v467, %v467
    %v476 = vpack.c.bf16 %v468, %v468
    %v477 = vld [vmem:[%s5] sm:$0xff]
    %v478 = vld [vmem:[%s5 + $0x8] sm:$0xff]
    %v479 = vld [vmem:[%s5 + $0x10] sm:$0xf]
    %v480 = vld [vmem:[%s5 + $0x14] sm:$0xff]
    %v481 = vld [vmem:[%s5 + $0x1c] sm:$0xff]
    %v482 = vld [vmem:[%s5 + $0x24] sm:$0xf]
    %v483 = vld [vmem:[%s5 + $0x28] sm:$0xff]
    %v484 = vld [vmem:[%s5 + $0x30] sm:$0xff]
    %v485 = vld [vmem:[%s5 + $0x38] sm:$0xf]
    %v486 = vld [vmem:[%s5 + $0x3c] sm:$0xff]
    %v487 = vld [vmem:[%s5 + $0x44] sm:$0xff]
    %v488 = vld [vmem:[%s5 + $0x4c] sm:$0xf]
    %v489 = vld [vmem:[%s5 + $0x50] sm:$0xff]
    %v490 = vld [vmem:[%s5 + $0x58] sm:$0xff]
    %v491 = vld [vmem:[%s5 + $0x60] sm:$0xf]
    %v492 = vld [vmem:[%s5 + $0x64] sm:$0xff]
    %v493 = vld [vmem:[%s5 + $0x6c] sm:$0xff]
    %v494 = vld [vmem:[%s5 + $0x74] sm:$0xf]
    %v495 = vld [vmem:[%s5 + $0x78] sm:$0xff]
    %v496 = vld [vmem:[%s5 + $0x80] sm:$0xff]
    %v497 = vld [vmem:[%s5 + $0x88] sm:$0xf]
    %v498 = vld [vmem:[%s5 + $0x8c] sm:$0xff]
    %v499 = vld [vmem:[%s5 + $0x94] sm:$0xff]
    %v500 = vld [vmem:[%s5 + $0x9c] sm:$0xf]
    %v501 = vld [vmem:[%s5 + $0xa0] sm:$0xff]
    %v502 = vld [vmem:[%s5 + $0xa8] sm:$0xff]
    %v503 = vld [vmem:[%s5 + $0xb0] sm:$0xf]
    %v504 = vld [vmem:[%s5 + $0xb4] sm:$0xff]
    %v505 = vld [vmem:[%s5 + $0xbc] sm:$0xff]
    %v506 = vld [vmem:[%s5 + $0xc4] sm:$0xf]
    %v507 = vld [vmem:[%s5 + $0xc8] sm:$0xff]
    %v508 = vld [vmem:[%s5 + $0xd0] sm:$0xff]
    %v509 = vld [vmem:[%s5 + $0xd8] sm:$0xf]
    %v510 = vld [vmem:[%s5 + $0xdc] sm:$0xff]
    %v511 = vld [vmem:[%s5 + $0xe4] sm:$0xff]
    %v512 = vld [vmem:[%s5 + $0xec] sm:$0xf]
    %v513 = vld [vmem:[%s5 + $0xf0] sm:$0xff]
    %v514 = vld [vmem:[%s5 + $0xf8] sm:$0xff]
    %v515 = vld [vmem:[%s5 + $0x100] sm:$0xf]
    %v516 = vld [vmem:[%s5 + $0x104] sm:$0xff]
    %v517 = vld [vmem:[%s5 + $0x10c] sm:$0xff]
    %v518 = vld [vmem:[%s5 + $0x114] sm:$0xf]
    %v519 = vld [vmem:[%s5 + $0x118] sm:$0xff]
    %v520 = vld [vmem:[%s5 + $0x120] sm:$0xff]
    %v521 = vld [vmem:[%s5 + $0x128] sm:$0xf]
    %v522 = vld [vmem:[%s5 + $0x12c] sm:$0xff]
    %v523 = vld [vmem:[%s5 + $0x134] sm:$0xff]
    %v524 = vld [vmem:[%s5 + $0x13c] sm:$0xf]
    %v525 = vld [vmem:[%s5 + $0x140] sm:$0xff]
    %v526 = vld [vmem:[%s5 + $0x148] sm:$0xff]
    %v527 = vld [vmem:[%s5 + $0x150] sm:$0xf]
    %v528 = vld [vmem:[%s5 + $0x154] sm:$0xff]
    %v529 = vld [vmem:[%s5 + $0x15c] sm:$0xff]
    %v530 = vld [vmem:[%s5 + $0x164] sm:$0xf]
    %v531 = vld [vmem:[%s5 + $0x168] sm:$0xff]
    %v532 = vld [vmem:[%s5 + $0x170] sm:$0xff]
    %v533 = vld [vmem:[%s5 + $0x178] sm:$0xf]
    %v534 = vld [vmem:[%s5 + $0x17c] sm:$0xff]
    %v535 = vld [vmem:[%s5 + $0x184] sm:$0xff]
    %v536 = vld [vmem:[%s5 + $0x18c] sm:$0xf]
    %v537 = vld [vmem:[%s5 + $0x190] sm:$0xff]
    %v538 = vld [vmem:[%s5 + $0x198] sm:$0xff]
    %v539 = vld [vmem:[%s5 + $0x1a0] sm:$0xf]
    %v540 = vld [vmem:[%s5 + $0x1a4] sm:$0xff]
    %v541 = vld [vmem:[%s5 + $0x1ac] sm:$0xff]
    %v542 = vld [vmem:[%s5 + $0x1b4] sm:$0xf]
    %v543 = vld [vmem:[%s5 + $0x1b8] sm:$0xff]
    %v544 = vld [vmem:[%s5 + $0x1c0] sm:$0xff]
    %v545 = vld [vmem:[%s5 + $0x1c8] sm:$0xf]
    %v546 = vld [vmem:[%s5 + $0x1cc] sm:$0xff]
    %v547 = vld [vmem:[%s5 + $0x1d4] sm:$0xff]
    %v548 = vld [vmem:[%s5 + $0x1dc] sm:$0xf]
    %v549 = vld [vmem:[%s5 + $0x1e0] sm:$0xff]
    %v550 = vld [vmem:[%s5 + $0x1e8] sm:$0xff]
    %v551 = vld [vmem:[%s5 + $0x1f0] sm:$0xf]
    %v552 = vld [vmem:[%s5 + $0x1f4] sm:$0xff]
    %v553 = vld [vmem:[%s5 + $0x1fc] sm:$0xff]
    %v554 = vld [vmem:[%s5 + $0x204] sm:$0xf]
    %v555 = vld [vmem:[%s5 + $0x208] sm:$0xff]
    %v556 = vld [vmem:[%s5 + $0x210] sm:$0xff]
    %v557 = vld [vmem:[%s5 + $0x218] sm:$0xf]
    %v558 = vld [vmem:[%s5 + $0x21c] sm:$0xff]
    %v559 = vld [vmem:[%s5 + $0x224] sm:$0xff]
    %v560 = vld [vmem:[%s5 + $0x22c] sm:$0xf]
    %v561 = vld [vmem:[%s5 + $0x230] sm:$0xff]
    %v562 = vld [vmem:[%s5 + $0x238] sm:$0xff]
    %v563 = vld [vmem:[%s5 + $0x240] sm:$0xf]
    %v564 = vld [vmem:[%s5 + $0x244] sm:$0xff]
    %v565 = vld [vmem:[%s5 + $0x24c] sm:$0xff]
    %v566 = vld [vmem:[%s5 + $0x254] sm:$0xf]
    %v567 = vld [vmem:[%s5 + $0x258] sm:$0xff]
    %v568 = vld [vmem:[%s5 + $0x260] sm:$0xff]
    %v569 = vld [vmem:[%s5 + $0x268] sm:$0xf]
    %v570 = vld [vmem:[%s5 + $0x26c] sm:$0xff]
    %v571 = vld [vmem:[%s5 + $0x274] sm:$0xff]
    %v572 = vld [vmem:[%s5 + $0x27c] sm:$0xf]
    %v573 = vld [vmem:[%s5 + $0x280] sm:$0xff]
    %v574 = vld [vmem:[%s5 + $0x288] sm:$0xff]
    %v575 = vld [vmem:[%s5 + $0x290] sm:$0xf]
    %v576 = vld [vmem:[%s5 + $0x294] sm:$0xff]
    %v577 = vld [vmem:[%s5 + $0x29c] sm:$0xff]
    %v578 = vld [vmem:[%s5 + $0x2a4] sm:$0xf]
    %v579 = vld [vmem:[%s5 + $0x2a8] sm:$0xff]
    %v580 = vld [vmem:[%s5 + $0x2b0] sm:$0xff]
    %v581 = vld [vmem:[%s5 + $0x2b8] sm:$0xf]
    %v582 = vld [vmem:[%s5 + $0x2bc] sm:$0xff]
    %v583 = vld [vmem:[%s5 + $0x2c4] sm:$0xff]
    %v584 = vld [vmem:[%s5 + $0x2cc] sm:$0xf]
    %v585 = vld [vmem:[%s5 + $0x2d0] sm:$0xff]
    %v586 = vld [vmem:[%s5 + $0x2d8] sm:$0xff]
    %v587 = vld [vmem:[%s5 + $0x2e0] sm:$0xf]
    %v588 = vld [vmem:[%s5 + $0x2e4] sm:$0xff]
    %v589 = vld [vmem:[%s5 + $0x2ec] sm:$0xff]
    %v590 = vld [vmem:[%s5 + $0x2f4] sm:$0xf]
    %v591 = vld [vmem:[%s5 + $0x2f8] sm:$0xff]
    %v592 = vld [vmem:[%s5 + $0x300] sm:$0xff]
    %v593 = vld [vmem:[%s5 + $0x308] sm:$0xf]
    %v594 = vld [vmem:[%s5 + $0x30c] sm:$0xff]
    %v595 = vld [vmem:[%s5 + $0x314] sm:$0xff]
    %v596 = vld [vmem:[%s5 + $0x31c] sm:$0xf]
    %v597 = vld [vmem:[%s5 + $0x320] sm:$0xff]
    %v598 = vld [vmem:[%s5 + $0x328] sm:$0xff]
    %v599 = vld [vmem:[%s5 + $0x330] sm:$0xf]
    %v600 = vld [vmem:[%s5 + $0x334] sm:$0xff]
    %v601 = vld [vmem:[%s5 + $0x33c] sm:$0xff]
    %v602 = vld [vmem:[%s5 + $0x344] sm:$0xf]
    %v603 = vld [vmem:[%s5 + $0x348] sm:$0xff]
    %v604 = vld [vmem:[%s5 + $0x350] sm:$0xff]
    %v605 = vld [vmem:[%s5 + $0x358] sm:$0xf]
    %v606 = vld [vmem:[%s5 + $0x35c] sm:$0xff]
    %v607 = vld [vmem:[%s5 + $0x364] sm:$0xff]
    %v608 = vld [vmem:[%s5 + $0x36c] sm:$0xf]
    %v609 = vld [vmem:[%s5 + $0x370] sm:$0xff]
    %v610 = vld [vmem:[%s5 + $0x378] sm:$0xff]
    %v611 = vld [vmem:[%s5 + $0x380] sm:$0xf]
    %v612 = vld [vmem:[%s5 + $0x384] sm:$0xff]
    %v613 = vld [vmem:[%s5 + $0x38c] sm:$0xff]
    %v614 = vld [vmem:[%s5 + $0x394] sm:$0xf]
    %v615 = vld [vmem:[%s5 + $0x398] sm:$0xff]
    %v616 = vld [vmem:[%s5 + $0x3a0] sm:$0xff]
    %v617 = vld [vmem:[%s5 + $0x3a8] sm:$0xf]
    %v618 = vld [vmem:[%s5 + $0x3ac] sm:$0xff]
    %v619 = vld [vmem:[%s5 + $0x3b4] sm:$0xff]
    %v620 = vld [vmem:[%s5 + $0x3bc] sm:$0xf]
    %v621 = vld [vmem:[%s5 + $0x3c0] sm:$0xff]
    %v622 = vld [vmem:[%s5 + $0x3c8] sm:$0xff]
    %v623 = vld [vmem:[%s5 + $0x3d0] sm:$0xf]
    %v624 = vld [vmem:[%s5 + $0x3d4] sm:$0xff]
    %v625 = vld [vmem:[%s5 + $0x3dc] sm:$0xff]
    %v626 = vld [vmem:[%s5 + $0x3e4] sm:$0xf]
    %v627 = vld [vmem:[%s5 + $0x3e8] sm:$0xff]
    %v628 = vld [vmem:[%s5 + $0x3f0] sm:$0xff]
    %v629 = vld [vmem:[%s5 + $0x3f8] sm:$0xf]
    %v630 = vld [vmem:[%s5 + $0x3fc] sm:$0xff]
    %v631 = vld [vmem:[%s5 + $0x404] sm:$0xff]
    %v632 = vld [vmem:[%s5 + $0x40c] sm:$0xf]
    %v633 = vld [vmem:[%s5 + $0x410] sm:$0xff]
    %v634 = vld [vmem:[%s5 + $0x418] sm:$0xff]
    %v635 = vld [vmem:[%s5 + $0x420] sm:$0xf]
    %v636 = vld [vmem:[%s5 + $0x424] sm:$0xff]
    %v637 = vld [vmem:[%s5 + $0x42c] sm:$0xff]
    %v638 = vld [vmem:[%s5 + $0x434] sm:$0xf]
    %v639 = vld [vmem:[%s5 + $0x438] sm:$0xff]
    %v640 = vld [vmem:[%s5 + $0x440] sm:$0xff]
    %v641 = vld [vmem:[%s5 + $0x448] sm:$0xf]
    %v642 = vld [vmem:[%s5 + $0x44c] sm:$0xff]
    %v643 = vld [vmem:[%s5 + $0x454] sm:$0xff]
    %v644 = vld [vmem:[%s5 + $0x45c] sm:$0xf]
    %v645 = vld [vmem:[%s5 + $0x460] sm:$0xff]
    %v646 = vld [vmem:[%s5 + $0x468] sm:$0xff]
    %v647 = vld [vmem:[%s5 + $0x470] sm:$0xf]
    %v648 = vld [vmem:[%s5 + $0x474] sm:$0xff]
    %v649 = vld [vmem:[%s5 + $0x47c] sm:$0xff]
    %v650 = vld [vmem:[%s5 + $0x484] sm:$0xf]
    %v651 = vld [vmem:[%s5 + $0x488] sm:$0xff]
    %v652 = vld [vmem:[%s5 + $0x490] sm:$0xff]
    %v653 = vld [vmem:[%s5 + $0x498] sm:$0xf]
    %v654 = vld [vmem:[%s5 + $0x49c] sm:$0xff]
    %v655 = vld [vmem:[%s5 + $0x4a4] sm:$0xff]
    %v656 = vld [vmem:[%s5 + $0x4ac] sm:$0xf]
    %v657 = vld [vmem:[%s5 + $0x4b0] sm:$0xff]
    %v658 = vld [vmem:[%s5 + $0x4b8] sm:$0xff]
    %v659 = vld [vmem:[%s5 + $0x4c0] sm:$0xf]
    %v660 = vld [vmem:[%s5 + $0x4c4] sm:$0xff]
    %v661 = vld [vmem:[%s5 + $0x4cc] sm:$0xff]
    %v662 = vld [vmem:[%s5 + $0x4d4] sm:$0xf]
    %v663 = vld [vmem:[%s5 + $0x4d8] sm:$0xff]
    %v664 = vld [vmem:[%s5 + $0x4e0] sm:$0xff]
    %v665 = vld [vmem:[%s5 + $0x4e8] sm:$0xf]
    %v666 = vld [vmem:[%s5 + $0x4ec] sm:$0xff]
    %v667 = vld [vmem:[%s5 + $0x4f4] sm:$0xff]
    %v668 = vld [vmem:[%s5 + $0x4fc] sm:$0xf]
    %v669 = vld [vmem:[%s6] sm:$0xf]
    %v670 = vld [vmem:[%s6 + $0x4] sm:$0xf]
    %v671 = vld [vmem:[%s6 + $0x8] sm:$0xf]
    %v672 = vld [vmem:[%s6 + $0xc] sm:$0xf]
    %v673 = vld [vmem:[%s6 + $0x10] sm:$0xf]
    %v674 = vld [vmem:[%s6 + $0x14] sm:$0xf]
    %v675 = vld [vmem:[%s6 + $0x18] sm:$0xf]
    %v676 = vld [vmem:[%s6 + $0x1c] sm:$0xf]
    %v677 = vld [vmem:[%s6 + $0x20] sm:$0xf]
    %v678 = vld [vmem:[%s6 + $0x24] sm:$0xf]
    %v679 = vld [vmem:[%s6 + $0x28] sm:$0xf]
    %v680 = vld [vmem:[%s6 + $0x2c] sm:$0xf]
    %v681 = vld [vmem:[%s6 + $0x30] sm:$0xf]
    %v682 = vld [vmem:[%s6 + $0x34] sm:$0xf]
    %v683 = vld [vmem:[%s6 + $0x38] sm:$0xf]
    %v684 = vld [vmem:[%s6 + $0x3c] sm:$0xf]
    %v685 = vld [vmem:[%s6 + $0x40] sm:$0xf]
    %v686 = vld [vmem:[%s6 + $0x44] sm:$0xf]
    %v687 = vld [vmem:[%s6 + $0x48] sm:$0xf]
    %v688 = vld [vmem:[%s6 + $0x4c] sm:$0xf]
    %v689 = vld [vmem:[%s6 + $0x50] sm:$0xf]
    %v690 = vld [vmem:[%s6 + $0x54] sm:$0xf]
    %v691 = vld [vmem:[%s6 + $0x58] sm:$0xf]
    %v692 = vld [vmem:[%s6 + $0x5c] sm:$0xf]
    %v693 = vld [vmem:[%s6 + $0x60] sm:$0xf]
    %v694 = vld [vmem:[%s6 + $0x64] sm:$0xf]
    %v695 = vld [vmem:[%s6 + $0x68] sm:$0xf]
    %v696 = vld [vmem:[%s6 + $0x6c] sm:$0xf]
    %v697 = vld [vmem:[%s6 + $0x70] sm:$0xf]
    %v698 = vld [vmem:[%s6 + $0x74] sm:$0xf]
    %v699 = vld [vmem:[%s6 + $0x78] sm:$0xf]
    %v700 = vld [vmem:[%s6 + $0x7c] sm:$0xf]
    %v701 = vld [vmem:[%s6 + $0x80] sm:$0xf]
    %v702 = vld [vmem:[%s6 + $0x84] sm:$0xf]
    %v703 = vld [vmem:[%s6 + $0x88] sm:$0xf]
    %v704 = vld [vmem:[%s6 + $0x8c] sm:$0xf]
    %v705 = vld [vmem:[%s6 + $0x90] sm:$0xf]
    %v706 = vld [vmem:[%s6 + $0x94] sm:$0xf]
    %v707 = vld [vmem:[%s6 + $0x98] sm:$0xf]
    %v708 = vld [vmem:[%s6 + $0x9c] sm:$0xf]
    %v709 = vld [vmem:[%s6 + $0xa0] sm:$0xf]
    %v710 = vld [vmem:[%s6 + $0xa4] sm:$0xf]
    %v711 = vld [vmem:[%s6 + $0xa8] sm:$0xf]
    %v712 = vld [vmem:[%s6 + $0xac] sm:$0xf]
    %v713 = vld [vmem:[%s6 + $0xb0] sm:$0xf]
    %v714 = vld [vmem:[%s6 + $0xb4] sm:$0xf]
    %v715 = vld [vmem:[%s6 + $0xb8] sm:$0xf]
    %v716 = vld [vmem:[%s6 + $0xbc] sm:$0xf]
    %v717 = vld [vmem:[%s6 + $0xc0] sm:$0xf]
    %v718 = vld [vmem:[%s6 + $0xc4] sm:$0xf]
    %v719 = vld [vmem:[%s6 + $0xc8] sm:$0xf]
    %v720 = vld [vmem:[%s6 + $0xcc] sm:$0xf]
    %v721 = vld [vmem:[%s6 + $0xd0] sm:$0xf]
    %v722 = vld [vmem:[%s6 + $0xd4] sm:$0xf]
    %v723 = vld [vmem:[%s6 + $0xd8] sm:$0xf]
    %v724 = vld [vmem:[%s6 + $0xdc] sm:$0xf]
    %v725 = vld [vmem:[%s6 + $0xe0] sm:$0xf]
    %v726 = vld [vmem:[%s6 + $0xe4] sm:$0xf]
    %v727 = vld [vmem:[%s6 + $0xe8] sm:$0xf]
    %v728 = vld [vmem:[%s6 + $0xec] sm:$0xf]
    %v729 = vld [vmem:[%s6 + $0xf0] sm:$0xf]
    %v730 = vld [vmem:[%s6 + $0xf4] sm:$0xf]
    %v731 = vld [vmem:[%s6 + $0xf8] sm:$0xf]
    %v732 = vld [vmem:[%s6 + $0xfc] sm:$0xf]
    %v797 = vunpack.c.l.b16 %v669
    %v798 = vunpack.c.l.b16 %v670
    %v799 = vunpack.c.l.b16 %v671
    %v800 = vunpack.c.l.b16 %v672
    %v801 = vunpack.c.l.b16 %v673
    %v802 = vunpack.c.l.b16 %v674
    %v803 = vunpack.c.l.b16 %v675
    %v804 = vunpack.c.l.b16 %v676
    %v805 = vunpack.c.l.b16 %v677
    %v806 = vunpack.c.l.b16 %v678
    %v807 = vunpack.c.l.b16 %v679
    %v808 = vunpack.c.l.b16 %v680
    %v809 = vunpack.c.l.b16 %v681
    %v810 = vunpack.c.l.b16 %v682
    %v811 = vunpack.c.l.b16 %v683
    %v812 = vunpack.c.l.b16 %v684
    %v813 = vunpack.c.l.b16 %v685
    %v814 = vunpack.c.l.b16 %v686
    %v815 = vunpack.c.l.b16 %v687
    %v816 = vunpack.c.l.b16 %v688
    %v817 = vunpack.c.l.b16 %v689
    %v818 = vunpack.c.l.b16 %v690
    %v819 = vunpack.c.l.b16 %v691
    %v820 = vunpack.c.l.b16 %v692
    %v821 = vunpack.c.l.b16 %v693
    %v822 = vunpack.c.l.b16 %v694
    %v823 = vunpack.c.l.b16 %v695
    %v824 = vunpack.c.l.b16 %v696
    %v825 = vunpack.c.l.b16 %v697
    %v826 = vunpack.c.l.b16 %v698
    %v827 = vunpack.c.l.b16 %v699
    %v828 = vunpack.c.l.b16 %v700
    %v829 = vunpack.c.l.b16 %v701
    %v830 = vunpack.c.l.b16 %v702
    %v831 = vunpack.c.l.b16 %v703
    %v832 = vunpack.c.l.b16 %v704
    %v833 = vunpack.c.l.b16 %v705
    %v834 = vunpack.c.l.b16 %v706
    %v835 = vunpack.c.l.b16 %v707
    %v836 = vunpack.c.l.b16 %v708
    %v837 = vunpack.c.l.b16 %v709
    %v838 = vunpack.c.l.b16 %v710
    %v839 = vunpack.c.l.b16 %v711
    %v840 = vunpack.c.l.b16 %v712
    %v841 = vunpack.c.l.b16 %v713
    %v842 = vunpack.c.l.b16 %v714
    %v843 = vunpack.c.l.b16 %v715
    %v844 = vunpack.c.l.b16 %v716
    %v845 = vunpack.c.l.b16 %v717
    %v846 = vunpack.c.l.b16 %v718
    %v847 = vunpack.c.l.b16 %v719
    %v848 = vunpack.c.l.b16 %v720
    %v849 = vunpack.c.l.b16 %v721
    %v850 = vunpack.c.l.b16 %v722
    %v851 = vunpack.c.l.b16 %v723
    %v852 = vunpack.c.l.b16 %v724
    %v853 = vunpack.c.l.b16 %v725
    %v854 = vunpack.c.l.b16 %v726
    %v855 = vunpack.c.l.b16 %v727
    %v856 = vunpack.c.l.b16 %v728
    %v857 = vunpack.c.l.b16 %v729
    %v858 = vunpack.c.l.b16 %v730
    %v859 = vunpack.c.l.b16 %v731
    %v860 = vunpack.c.l.b16 %v732
    %v861 = vpack.c.b16 %v798, %v797
    %v862 = vpack.c.b16 %v800, %v799
    %v863 = vpack.c.b16 %v802, %v801
    %v864 = vpack.c.b16 %v804, %v803
    %v865 = vpack.c.b16 %v806, %v805
    %v866 = vpack.c.b16 %v808, %v807
    %v867 = vpack.c.b16 %v810, %v809
    %v868 = vpack.c.b16 %v812, %v811
    %v869 = vpack.c.b16 %v814, %v813
    %v870 = vpack.c.b16 %v816, %v815
    %v871 = vpack.c.b16 %v818, %v817
    %v872 = vpack.c.b16 %v820, %v819
    %v873 = vpack.c.b16 %v822, %v821
    %v874 = vpack.c.b16 %v824, %v823
    %v875 = vpack.c.b16 %v826, %v825
    %v876 = vpack.c.b16 %v828, %v827
    %v877 = vpack.c.b16 %v830, %v829
    %v878 = vpack.c.b16 %v832, %v831
    %v879 = vpack.c.b16 %v834, %v833
    %v880 = vpack.c.b16 %v836, %v835
    %v881 = vpack.c.b16 %v838, %v837
    %v882 = vpack.c.b16 %v840, %v839
    %v883 = vpack.c.b16 %v842, %v841
    %v884 = vpack.c.b16 %v844, %v843
    %v885 = vpack.c.b16 %v846, %v845
    %v886 = vpack.c.b16 %v848, %v847
    %v887 = vpack.c.b16 %v850, %v849
    %v888 = vpack.c.b16 %v852, %v851
    %v889 = vpack.c.b16 %v854, %v853
    %v890 = vpack.c.b16 %v856, %v855
    %v891 = vpack.c.b16 %v858, %v857
    %v892 = vpack.c.b16 %v860, %v859
    %925 = vmatprep.subr.bf16.mxu0 0
    %926 = vmatpush1.bf16.msra.mxu0 %v868
    %927 = vmatprep.subr.bf16.mxu0 0
    %928 = vmatpush1.bf16.msra.mxu0 %v867
    %929 = vmatprep.subr.bf16.mxu0 0
    %930 = vmatpush1.bf16.msra.mxu0 %v866
    %931 = vmatprep.subr.bf16.mxu0 0
    %932 = vmatpush1.bf16.msra.mxu0 %v865
    %933 = vmatprep.subr.bf16.mxu0 0
    %934 = vmatpush1.bf16.msra.mxu0 %v864
    %935 = vmatprep.subr.bf16.mxu0 0
    %936 = vmatpush1.bf16.msra.mxu0 %v863
    %937 = vmatprep.subr.bf16.mxu0 0
    %938 = vmatpush1.bf16.msra.mxu0 %v862
    %939 = vmatprep.subr.bf16.mxu0 0
    %940 = vmatpush1.bf16.msra.mxu0 %v861
    %941 = vmatprep.subr.bf16.mxu0 0
    %942 = vmatpush2.bf16.msra.mxu0 %v876
    %943 = vmatprep.subr.bf16.mxu0 0
    %944 = vmatpush2.bf16.msra.mxu0 %v875
    %945 = vmatprep.subr.bf16.mxu0 0
    %946 = vmatpush2.bf16.msra.mxu0 %v874
    %947 = vmatprep.subr.bf16.mxu0 0
    %948 = vmatpush2.bf16.msra.mxu0 %v873
    %949 = vmatprep.subr.bf16.mxu0 0
    %950 = vmatpush2.bf16.msra.mxu0 %v872
    %951 = vmatprep.subr.bf16.mxu0 0
    %952 = vmatpush2.bf16.msra.mxu0 %v871
    %953 = vmatprep.subr.bf16.mxu0 0
    %954 = vmatpush2.bf16.msra.mxu0 %v870
    %955 = vmatprep.subr.bf16.mxu0 0
    %956 = vmatpush2.bf16.msra.mxu0 %v869
    %957 = vmatprep.mubr.bf16.mxu0 %v470
    %958 = vmatmul.mubr.bf16.gmra.mxu0 %v469
    %v959 = vpop.f32.mrf.mxu0
    %v960 = vadd.f32 0.0, %v959
    %v961 = vpop.f32.mrf.mxu0
    %v962 = vpop.f32.mrf.mxu0
    %v963 = vpop.f32.mrf.mxu0
    %964 = vdwg.mxu0
    %965 = vmatprep.subr.bf16.mxu0 0
    %966 = vmatpush1.bf16.msra.mxu0 %v884
    %967 = vmatprep.subr.bf16.mxu0 0
    %968 = vmatpush1.bf16.msra.mxu0 %v883
    %969 = vmatprep.subr.bf16.mxu0 0
    %970 = vmatpush1.bf16.msra.mxu0 %v882
    %971 = vmatprep.subr.bf16.mxu0 0
    %972 = vmatpush1.bf16.msra.mxu0 %v881
    %973 = vmatprep.subr.bf16.mxu0 0
    %974 = vmatpush1.bf16.msra.mxu0 %v880
    %975 = vmatprep.subr.bf16.mxu0 0
    %976 = vmatpush1.bf16.msra.mxu0 %v879
    %977 = vmatprep.subr.bf16.mxu0 0
    %978 = vmatpush1.bf16.msra.mxu0 %v878
    %979 = vmatprep.subr.bf16.mxu0 0
    %980 = vmatpush1.bf16.msra.mxu0 %v877
    %981 = vmatprep.subr.bf16.mxu0 0
    %982 = vmatpush2.bf16.msra.mxu0 %v892
    %983 = vmatprep.subr.bf16.mxu0 0
    %984 = vmatpush2.bf16.msra.mxu0 %v891
    %985 = vmatprep.subr.bf16.mxu0 0
    %986 = vmatpush2.bf16.msra.mxu0 %v890
    %987 = vmatprep.subr.bf16.mxu0 0
    %988 = vmatpush2.bf16.msra.mxu0 %v889
    %989 = vmatprep.subr.bf16.mxu0 0
    %990 = vmatpush2.bf16.msra.mxu0 %v888
    %991 = vmatprep.subr.bf16.mxu0 0
    %992 = vmatpush2.bf16.msra.mxu0 %v887
    %993 = vmatprep.subr.bf16.mxu0 0
    %994 = vmatpush2.bf16.msra.mxu0 %v886
    %995 = vmatprep.subr.bf16.mxu0 0
    %996 = vmatpush2.bf16.msra.mxu0 %v885
    %997 = vmatprep.mubr.bf16.mxu0 %v472
    %998 = vmatmul.mubr.bf16.gmra.mxu0 %v471
    %v999 = vpop.f32.mrf.mxu0
    %v1000 = vadd.f32 %v960, %v999
    %v1001 = vpop.f32.mrf.mxu0
    %v1002 = vpop.f32.mrf.mxu0
    %v1003 = vpop.f32.mrf.mxu0
    %1004 = vdwg.mxu0
    %v1005 = vld [vmem:[#allocation2] sm:$0xff]
    %v1006 = vld [vmem:[#allocation2 + $0x8] sm:$0xff]
    %v1007 = vld [vmem:[#allocation2 + $0x10] sm:$0xff]
    %v1008 = vld [vmem:[#allocation2 + $0x18] sm:$0xff]
    %v1009 = vld [vmem:[#allocation2 + $0x20] sm:$0xff]
    %v1010 = vld [vmem:[#allocation2 + $0x28] sm:$0xff]
    %v1011 = vld [vmem:[#allocation2 + $0x30] sm:$0xff]
    %v1012 = vld [vmem:[#allocation2 + $0x38] sm:$0xff]
    %v1013 = vld [vmem:[#allocation2 + $0x40] sm:$0xff]
    %v1014 = vld [vmem:[#allocation2 + $0x48] sm:$0xff]
    %v1015 = vld [vmem:[#allocation2 + $0x50] sm:$0xff]
    %v1016 = vld [vmem:[#allocation2 + $0x58] sm:$0xff]
    %v1017 = vld [vmem:[#allocation2 + $0x60] sm:$0xff]
    %v1018 = vld [vmem:[#allocation2 + $0x68] sm:$0xff]
    %v1019 = vld [vmem:[#allocation2 + $0x70] sm:$0xff]
    %v1020 = vld [vmem:[#allocation2 + $0x78] sm:$0xff]
    %v1021 = vld [vmem:[#allocation2 + $0x80] sm:$0xff]
    %v1022 = vld [vmem:[#allocation2 + $0x88] sm:$0xff]
    %v1023 = vld [vmem:[#allocation2 + $0x90] sm:$0xff]
    %v1024 = vld [vmem:[#allocation2 + $0x98] sm:$0xff]
    %v1025 = vld [vmem:[#allocation2 + $0xa0] sm:$0xff]
    %v1026 = vld [vmem:[#allocation2 + $0xa8] sm:$0xff]
    %v1027 = vld [vmem:[#allocation2 + $0xb0] sm:$0xff]
    %v1028 = vld [vmem:[#allocation2 + $0xb8] sm:$0xff]
    %v1029 = vld [vmem:[#allocation2 + $0xc0] sm:$0xff]
    %v1030 = vld [vmem:[#allocation2 + $0xc8] sm:$0xff]
    %v1031 = vld [vmem:[#allocation2 + $0xd0] sm:$0xff]
    %v1032 = vld [vmem:[#allocation2 + $0xd8] sm:$0xff]
    %v1033 = vld [vmem:[#allocation2 + $0xe0] sm:$0xff]
    %v1034 = vld [vmem:[#allocation2 + $0xe8] sm:$0xff]
    %v1035 = vld [vmem:[#allocation2 + $0xf0] sm:$0xff]
    %v1036 = vld [vmem:[#allocation2 + $0xf8] sm:$0xff]
    %v1037 = vld [vmem:[#allocation2 + $0x100] sm:$0xff]
    %v1038 = vld [vmem:[#allocation2 + $0x108] sm:$0xff]
    %v1039 = vld [vmem:[#allocation2 + $0x110] sm:$0xff]
    %v1040 = vld [vmem:[#allocation2 + $0x118] sm:$0xff]
    %v1041 = vld [vmem:[#allocation2 + $0x120] sm:$0xff]
    %v1042 = vld [vmem:[#allocation2 + $0x128] sm:$0xff]
    %v1043 = vld [vmem:[#allocation2 + $0x130] sm:$0xff]
    %v1044 = vld [vmem:[#allocation2 + $0x138] sm:$0xff]
    %vm1045 = vcmask 523264
    %v1047 = vsel %vm1045, %v1000, 0
    %1049 = vmatprep.subr.mxu0 0.0
    %1050 = vmatpush1.msra.mxu0 0.0
    %1051 = vmatprep.subr.mxu0 0.0
    %1052 = vmatpush1.msra.mxu0 0.0
    %1053 = vmatprep.subr.mxu0 0.0
    %1054 = vmatpush1.msra.mxu0 0.0
    %1055 = vmatprep.subr.mxu0 0.0
    %1056 = vmatpush1.msra.mxu0 0.0
    %1057 = vmatprep.subr.mxu0 0.0
    %1058 = vmatpush1.msra.mxu0 0.0
    %1059 = vmatprep.subr.mxu0 0.0
    %1060 = vmatpush1.msra.mxu0 0.0
    %1061 = vmatprep.subr.mxu0 0.0
    %1062 = vmatpush1.msra.mxu0 0.0
    %1063 = vmatprep.subr.mxu0 0.0
    %1064 = vmatpush1.msra.mxu0 0.0
    %1065 = vmatprep.subr.mxu0 %v1041
    %1066 = vmatpush1.msra.mxu0 %v1040
    %1067 = vmatprep.subr.mxu0 %v1036
    %1068 = vmatpush1.msra.mxu0 %v1035
    %1069 = vmatprep.subr.mxu0 %v1031
    %1070 = vmatpush1.msra.mxu0 %v1030
    %1071 = vmatprep.subr.mxu0 %v1026
    %1072 = vmatpush1.msra.mxu0 %v1025
    %1073 = vmatprep.subr.mxu0 %v1021
    %1074 = vmatpush1.msra.mxu0 %v1020
    %1075 = vmatprep.subr.mxu0 %v1016
    %1076 = vmatpush1.msra.mxu0 %v1015
    %1077 = vmatprep.subr.mxu0 %v1011
    %1078 = vmatpush1.msra.mxu0 %v1010
    %1079 = vmatprep.subr.mxu0 %v1006
    %1080 = vmatpush1.msra.mxu0 %v1005
    %1081 = vmatprep.subr.mxu0 0.0
    %1082 = vmatpush2.msra.mxu0 0.0
    %1083 = vmatprep.subr.mxu0 0.0
    %1084 = vmatpush2.msra.mxu0 0.0
    %1085 = vmatprep.subr.mxu0 0.0
    %1086 = vmatpush2.msra.mxu0 0.0
    %1087 = vmatprep.subr.mxu0 0.0
    %1088 = vmatpush2.msra.mxu0 0.0
    %1089 = vmatprep.subr.mxu0 0.0
    %1090 = vmatpush2.msra.mxu0 0.0
    %1091 = vmatprep.subr.mxu0 0.0
    %1092 = vmatpush2.msra.mxu0 0.0
    %1093 = vmatprep.subr.mxu0 0.0
    %1094 = vmatpush2.msra.mxu0 0.0
    %1095 = vmatprep.subr.mxu0 0.0
    %1096 = vmatpush2.msra.mxu0 0.0
    %1097 = vmatprep.subr.mxu0 0.0
    %1098 = vmatpush2.msra.mxu0 0.0
    %1099 = vmatprep.subr.mxu0 0.0
    %1100 = vmatpush2.msra.mxu0 0.0
    %1101 = vmatprep.subr.mxu0 0.0
    %1102 = vmatpush2.msra.mxu0 0.0
    %1103 = vmatprep.subr.mxu0 0.0
    %1104 = vmatpush2.msra.mxu0 0.0
    %1105 = vmatprep.subr.mxu0 0.0
    %1106 = vmatpush2.msra.mxu0 0.0
    %1107 = vmatprep.subr.mxu0 0.0
    %1108 = vmatpush2.msra.mxu0 0.0
    %1109 = vmatprep.subr.mxu0 0.0
    %1110 = vmatpush2.msra.mxu0 0.0
    %1111 = vmatprep.subr.mxu0 0.0
    %1112 = vmatpush2.msra.mxu0 0.0
    %1113 = vmatprep.mubr.f32.mxu0 0.0
    %1114 = vmatmul.mubr.f32.gmra.mxu0 %v1047
    %v1115 = vpop.f32.mrf.mxu0
    %v1116 = vadd.f32 0.0, %v1115
    %v1117 = vpop.f32.mrf.mxu0
    %v1118 = vadd.f32 0.0, %v1117
    %1119 = vdwg.mxu0
    %1120 = vmatprep.subr.mxu0 0.0
    %1121 = vmatpush1.msra.mxu0 0.0
    %1122 = vmatprep.subr.mxu0 0.0
    %1123 = vmatpush1.msra.mxu0 0.0
    %1124 = vmatprep.subr.mxu0 0.0
    %1125 = vmatpush1.msra.mxu0 0.0
    %1126 = vmatprep.subr.mxu0 0.0
    %1127 = vmatpush1.msra.mxu0 0.0
    %1128 = vmatprep.subr.mxu0 0.0
    %1129 = vmatpush1.msra.mxu0 0.0
    %1130 = vmatprep.subr.mxu0 0.0
    %1131 = vmatpush1.msra.mxu0 0.0
    %1132 = vmatprep.subr.mxu0 0.0
    %1133 = vmatpush1.msra.mxu0 0.0
    %1134 = vmatprep.subr.mxu0 0.0
    %1135 = vmatpush1.msra.mxu0 0.0
    %1136 = vmatprep.subr.mxu0 %v1043
    %1137 = vmatpush1.msra.mxu0 %v1042
    %1138 = vmatprep.subr.mxu0 %v1038
    %1139 = vmatpush1.msra.mxu0 %v1037
    %1140 = vmatprep.subr.mxu0 %v1033
    %1141 = vmatpush1.msra.mxu0 %v1032
    %1142 = vmatprep.subr.mxu0 %v1028
    %1143 = vmatpush1.msra.mxu0 %v1027
    %1144 = vmatprep.subr.mxu0 %v1023
    %1145 = vmatpush1.msra.mxu0 %v1022
    %1146 = vmatprep.subr.mxu0 %v1018
    %1147 = vmatpush1.msra.mxu0 %v1017
    %1148 = vmatprep.subr.mxu0 %v1013
    %1149 = vmatpush1.msra.mxu0 %v1012
    %1150 = vmatprep.subr.mxu0 %v1008
    %1151 = vmatpush1.msra.mxu0 %v1007
    %1152 = vmatprep.subr.mxu0 0.0
    %1153 = vmatpush2.msra.mxu0 0.0
    %1154 = vmatprep.subr.mxu0 0.0
    %1155 = vmatpush2.msra.mxu0 0.0
    %1156 = vmatprep.subr.mxu0 0.0
    %1157 = vmatpush2.msra.mxu0 0.0
    %1158 = vmatprep.subr.mxu0 0.0
    %1159 = vmatpush2.msra.mxu0 0.0
    %1160 = vmatprep.subr.mxu0 0.0
    %1161 = vmatpush2.msra.mxu0 0.0
    %1162 = vmatprep.subr.mxu0 0.0
    %1163 = vmatpush2.msra.mxu0 0.0
    %1164 = vmatprep.subr.mxu0 0.0
    %1165 = vmatpush2.msra.mxu0 0.0
    %1166 = vmatprep.subr.mxu0 0.0
    %1167 = vmatpush2.msra.mxu0 0.0
    %1168 = vmatprep.subr.mxu0 0.0
    %1169 = vmatpush2.msra.mxu0 0.0
    %1170 = vmatprep.subr.mxu0 0.0
    %1171 = vmatpush2.msra.mxu0 0.0
    %1172 = vmatprep.subr.mxu0 0.0
    %1173 = vmatpush2.msra.mxu0 0.0
    %1174 = vmatprep.subr.mxu0 0.0
    %1175 = vmatpush2.msra.mxu0 0.0
    %1176 = vmatprep.subr.mxu0 0.0
    %1177 = vmatpush2.msra.mxu0 0.0
    %1178 = vmatprep.subr.mxu0 0.0
    %1179 = vmatpush2.msra.mxu0 0.0
    %1180 = vmatprep.subr.mxu0 0.0
    %1181 = vmatpush2.msra.mxu0 0.0
    %1182 = vmatprep.subr.mxu0 0.0
    %1183 = vmatpush2.msra.mxu0 0.0
    %1184 = vmatprep.mubr.f32.mxu0 0.0
    %1185 = vmatmul.mubr.f32.gmra.mxu0 %v1047
    %v1186 = vpop.f32.mrf.mxu0
    %v1187 = vadd.f32 0.0, %v1186
    %v1188 = vpop.f32.mrf.mxu0
    %v1189 = vadd.f32 0.0, %v1188
    %1190 = vdwg.mxu0
    %1191 = vmatprep.subr.mxu0 0.0
    %1192 = vmatpush1.msra.mxu0 0.0
    %1193 = vmatprep.subr.mxu0 0.0
    %1194 = vmatpush1.msra.mxu0 0.0
    %1195 = vmatprep.subr.mxu0 0.0
    %1196 = vmatpush1.msra.mxu0 0.0
    %1197 = vmatprep.subr.mxu0 0.0
    %1198 = vmatpush1.msra.mxu0 0.0
    %1199 = vmatprep.subr.mxu0 0.0
    %1200 = vmatpush1.msra.mxu0 0.0
    %1201 = vmatprep.subr.mxu0 0.0
    %1202 = vmatpush1.msra.mxu0 0.0
    %1203 = vmatprep.subr.mxu0 0.0
    %1204 = vmatpush1.msra.mxu0 0.0
    %1205 = vmatprep.subr.mxu0 0.0
    %1206 = vmatpush1.msra.mxu0 0.0
    %1207 = vmatprep.subr.mxu0 0.0
    %1208 = vmatpush1.msra.mxu0 %v1044
    %1209 = vmatprep.subr.mxu0 0.0
    %1210 = vmatpush1.msra.mxu0 %v1039
    %1211 = vmatprep.subr.mxu0 0.0
    %1212 = vmatpush1.msra.mxu0 %v1034
    %1213 = vmatprep.subr.mxu0 0.0
    %1214 = vmatpush1.msra.mxu0 %v1029
    %1215 = vmatprep.subr.mxu0 0.0
    %1216 = vmatpush1.msra.mxu0 %v1024
    %1217 = vmatprep.subr.mxu0 0.0
    %1218 = vmatpush1.msra.mxu0 %v1019
    %1219 = vmatprep.subr.mxu0 0.0
    %1220 = vmatpush1.msra.mxu0 %v1014
    %1221 = vmatprep.subr.mxu0 0.0
    %1222 = vmatpush1.msra.mxu0 %v1009
    %1223 = vmatprep.subr.mxu0 0.0
    %1224 = vmatpush2.msra.mxu0 0.0
    %1225 = vmatprep.subr.mxu0 0.0
    %1226 = vmatpush2.msra.mxu0 0.0
    %1227 = vmatprep.subr.mxu0 0.0
    %1228 = vmatpush2.msra.mxu0 0.0
    %1229 = vmatprep.subr.mxu0 0.0
    %1230 = vmatpush2.msra.mxu0 0.0
    %1231 = vmatprep.subr.mxu0 0.0
    %1232 = vmatpush2.msra.mxu0 0.0
    %1233 = vmatprep.subr.mxu0 0.0
    %1234 = vmatpush2.msra.mxu0 0.0
    %1235 = vmatprep.subr.mxu0 0.0
    %1236 = vmatpush2.msra.mxu0 0.0
    %1237 = vmatprep.subr.mxu0 0.0
    %1238 = vmatpush2.msra.mxu0 0.0
    %1239 = vmatprep.subr.mxu0 0.0
    %1240 = vmatpush2.msra.mxu0 0.0
    %1241 = vmatprep.subr.mxu0 0.0
    %1242 = vmatpush2.msra.mxu0 0.0
    %1243 = vmatprep.subr.mxu0 0.0
    %1244 = vmatpush2.msra.mxu0 0.0
    %1245 = vmatprep.subr.mxu0 0.0
    %1246 = vmatpush2.msra.mxu0 0.0
    %1247 = vmatprep.subr.mxu0 0.0
    %1248 = vmatpush2.msra.mxu0 0.0
    %1249 = vmatprep.subr.mxu0 0.0
    %1250 = vmatpush2.msra.mxu0 0.0
    %1251 = vmatprep.subr.mxu0 0.0
    %1252 = vmatpush2.msra.mxu0 0.0
    %1253 = vmatprep.subr.mxu0 0.0
    %1254 = vmatpush2.msra.mxu0 0.0
    %1255 = vmatprep.mubr.f32.mxu0 0.0
    %1256 = vmatmul.mubr.f32.gmra.mxu0 %v1047
    %v1257 = vpop.f32.mrf.mxu0
    %v1258 = vadd.f32 0.0, %v1257
    %v1259 = vpop.f32.mrf.mxu0
    %1260 = vdwg.mxu0
    %v1453 = vunpack.c.l.b16 %v477
    %v1454 = vunpack.c.h.b16 %v477
    %v1455 = vunpack.c.l.b16 %v478
    %v1456 = vunpack.c.h.b16 %v478
    %v1457 = vunpack.c.l.b16 %v479
    %v1458 = vunpack.c.l.b16 %v480
    %v1459 = vunpack.c.h.b16 %v480
    %v1460 = vunpack.c.l.b16 %v481
    %v1461 = vunpack.c.h.b16 %v481
    %v1462 = vunpack.c.l.b16 %v482
    %v1463 = vunpack.c.l.b16 %v483
    %v1464 = vunpack.c.h.b16 %v483
    %v1465 = vunpack.c.l.b16 %v484
    %v1466 = vunpack.c.h.b16 %v484
    %v1467 = vunpack.c.l.b16 %v485
    %v1468 = vunpack.c.l.b16 %v486
    %v1469 = vunpack.c.h.b16 %v486
    %v1470 = vunpack.c.l.b16 %v487
    %v1471 = vunpack.c.h.b16 %v487
    %v1472 = vunpack.c.l.b16 %v488
    %v1473 = vunpack.c.l.b16 %v489
    %v1474 = vunpack.c.h.b16 %v489
    %v1475 = vunpack.c.l.b16 %v490
    %v1476 = vunpack.c.h.b16 %v490
    %v1477 = vunpack.c.l.b16 %v491
    %v1478 = vunpack.c.l.b16 %v492
    %v1479 = vunpack.c.h.b16 %v492
    %v1480 = vunpack.c.l.b16 %v493
    %v1481 = vunpack.c.h.b16 %v493
    %v1482 = vunpack.c.l.b16 %v494
    %v1483 = vunpack.c.l.b16 %v495
    %v1484 = vunpack.c.h.b16 %v495
    %v1485 = vunpack.c.l.b16 %v496
    %v1486 = vunpack.c.h.b16 %v496
    %v1487 = vunpack.c.l.b16 %v497
    %v1488 = vunpack.c.l.b16 %v498
    %v1489 = vunpack.c.h.b16 %v498
    %v1490 = vunpack.c.l.b16 %v499
    %v1491 = vunpack.c.h.b16 %v499
    %v1492 = vunpack.c.l.b16 %v500
    %v1493 = vunpack.c.l.b16 %v501
    %v1494 = vunpack.c.h.b16 %v501
    %v1495 = vunpack.c.l.b16 %v502
    %v1496 = vunpack.c.h.b16 %v502
    %v1497 = vunpack.c.l.b16 %v503
    %v1498 = vunpack.c.l.b16 %v504
    %v1499 = vunpack.c.h.b16 %v504
    %v1500 = vunpack.c.l.b16 %v505
    %v1501 = vunpack.c.h.b16 %v505
    %v1502 = vunpack.c.l.b16 %v506
    %v1503 = vunpack.c.l.b16 %v507
    %v1504 = vunpack.c.h.b16 %v507
    %v1505 = vunpack.c.l.b16 %v508
    %v1506 = vunpack.c.h.b16 %v508
    %v1507 = vunpack.c.l.b16 %v509
    %v1508 = vunpack.c.l.b16 %v510
    %v1509 = vunpack.c.h.b16 %v510
    %v1510 = vunpack.c.l.b16 %v511
    %v1511 = vunpack.c.h.b16 %v511
    %v1512 = vunpack.c.l.b16 %v512
    %v1513 = vunpack.c.l.b16 %v513
    %v1514 = vunpack.c.h.b16 %v513
    %v1515 = vunpack.c.l.b16 %v514
    %v1516 = vunpack.c.h.b16 %v514
    %v1517 = vunpack.c.l.b16 %v515
    %v1518 = vunpack.c.l.b16 %v516
    %v1519 = vunpack.c.h.b16 %v516
    %v1520 = vunpack.c.l.b16 %v517
    %v1521 = vunpack.c.h.b16 %v517
    %v1522 = vunpack.c.l.b16 %v518
    %v1523 = vunpack.c.l.b16 %v519
    %v1524 = vunpack.c.h.b16 %v519
    %v1525 = vunpack.c.l.b16 %v520
    %v1526 = vunpack.c.h.b16 %v520
    %v1527 = vunpack.c.l.b16 %v521
    %v1528 = vunpack.c.l.b16 %v522
    %v1529 = vunpack.c.h.b16 %v522
    %v1530 = vunpack.c.l.b16 %v523
    %v1531 = vunpack.c.h.b16 %v523
    %v1532 = vunpack.c.l.b16 %v524
    %v1533 = vunpack.c.l.b16 %v525
    %v1534 = vunpack.c.h.b16 %v525
    %v1535 = vunpack.c.l.b16 %v526
    %v1536 = vunpack.c.h.b16 %v526
    %v1537 = vunpack.c.l.b16 %v527
    %v1538 = vunpack.c.l.b16 %v528
    %v1539 = vunpack.c.h.b16 %v528
    %v1540 = vunpack.c.l.b16 %v529
    %v1541 = vunpack.c.h.b16 %v529
    %v1542 = vunpack.c.l.b16 %v530
    %v1543 = vunpack.c.l.b16 %v531
    %v1544 = vunpack.c.h.b16 %v531
    %v1545 = vunpack.c.l.b16 %v532
    %v1546 = vunpack.c.h.b16 %v532
    %v1547 = vunpack.c.l.b16 %v533
    %v1548 = vunpack.c.l.b16 %v534
    %v1549 = vunpack.c.h.b16 %v534
    %v1550 = vunpack.c.l.b16 %v535
    %v1551 = vunpack.c.h.b16 %v535
    %v1552 = vunpack.c.l.b16 %v536
    %v1553 = vunpack.c.l.b16 %v537
    %v1554 = vunpack.c.h.b16 %v537
    %v1555 = vunpack.c.l.b16 %v538
    %v1556 = vunpack.c.h.b16 %v538
    %v1557 = vunpack.c.l.b16 %v539
    %v1558 = vunpack.c.l.b16 %v540
    %v1559 = vunpack.c.h.b16 %v540
    %v1560 = vunpack.c.l.b16 %v541
    %v1561 = vunpack.c.h.b16 %v541
    %v1562 = vunpack.c.l.b16 %v542
    %v1563 = vunpack.c.l.b16 %v543
    %v1564 = vunpack.c.h.b16 %v543
    %v1565 = vunpack.c.l.b16 %v544
    %v1566 = vunpack.c.h.b16 %v544
    %v1567 = vunpack.c.l.b16 %v545
    %v1568 = vunpack.c.l.b16 %v546
    %v1569 = vunpack.c.h.b16 %v546
    %v1570 = vunpack.c.l.b16 %v547
    %v1571 = vunpack.c.h.b16 %v547
    %v1572 = vunpack.c.l.b16 %v548
    %v1573 = vunpack.c.l.b16 %v549
    %v1574 = vunpack.c.h.b16 %v549
    %v1575 = vunpack.c.l.b16 %v550
    %v1576 = vunpack.c.h.b16 %v550
    %v1577 = vunpack.c.l.b16 %v551
    %v1578 = vunpack.c.l.b16 %v552
    %v1579 = vunpack.c.h.b16 %v552
    %v1580 = vunpack.c.l.b16 %v553
    %v1581 = vunpack.c.h.b16 %v553
    %v1582 = vunpack.c.l.b16 %v554
    %v1583 = vunpack.c.l.b16 %v555
    %v1584 = vunpack.c.h.b16 %v555
    %v1585 = vunpack.c.l.b16 %v556
    %v1586 = vunpack.c.h.b16 %v556
    %v1587 = vunpack.c.l.b16 %v557
    %v1588 = vunpack.c.l.b16 %v558
    %v1589 = vunpack.c.h.b16 %v558
    %v1590 = vunpack.c.l.b16 %v559
    %v1591 = vunpack.c.h.b16 %v559
    %v1592 = vunpack.c.l.b16 %v560
    %v1593 = vunpack.c.l.b16 %v561
    %v1594 = vunpack.c.h.b16 %v561
    %v1595 = vunpack.c.l.b16 %v562
    %v1596 = vunpack.c.h.b16 %v562
    %v1597 = vunpack.c.l.b16 %v563
    %v1598 = vunpack.c.l.b16 %v564
    %v1599 = vunpack.c.h.b16 %v564
    %v1600 = vunpack.c.l.b16 %v565
    %v1601 = vunpack.c.h.b16 %v565
    %v1602 = vunpack.c.l.b16 %v566
    %v1603 = vunpack.c.l.b16 %v567
    %v1604 = vunpack.c.h.b16 %v567
    %v1605 = vunpack.c.l.b16 %v568
    %v1606 = vunpack.c.h.b16 %v568
    %v1607 = vunpack.c.l.b16 %v569
    %v1608 = vunpack.c.l.b16 %v570
    %v1609 = vunpack.c.h.b16 %v570
    %v1610 = vunpack.c.l.b16 %v571
    %v1611 = vunpack.c.h.b16 %v571
    %v1612 = vunpack.c.l.b16 %v572
    %v1613 = vunpack.c.l.b16 %v573
    %v1614 = vunpack.c.h.b16 %v573
    %v1615 = vunpack.c.l.b16 %v574
    %v1616 = vunpack.c.h.b16 %v574
    %v1617 = vunpack.c.l.b16 %v575
    %v1618 = vunpack.c.l.b16 %v576
    %v1619 = vunpack.c.h.b16 %v576
    %v1620 = vunpack.c.l.b16 %v577
    %v1621 = vunpack.c.h.b16 %v577
    %v1622 = vunpack.c.l.b16 %v578
    %v1623 = vunpack.c.l.b16 %v579
    %v1624 = vunpack.c.h.b16 %v579
    %v1625 = vunpack.c.l.b16 %v580
    %v1626 = vunpack.c.h.b16 %v580
    %v1627 = vunpack.c.l.b16 %v581
    %v1628 = vunpack.c.l.b16 %v582
    %v1629 = vunpack.c.h.b16 %v582
    %v1630 = vunpack.c.l.b16 %v583
    %v1631 = vunpack.c.h.b16 %v583
    %v1632 = vunpack.c.l.b16 %v584
    %v1633 = vunpack.c.l.b16 %v585
    %v1634 = vunpack.c.h.b16 %v585
    %v1635 = vunpack.c.l.b16 %v586
    %v1636 = vunpack.c.h.b16 %v586
    %v1637 = vunpack.c.l.b16 %v587
    %v1638 = vunpack.c.l.b16 %v588
    %v1639 = vunpack.c.h.b16 %v588
    %v1640 = vunpack.c.l.b16 %v589
    %v1641 = vunpack.c.h.b16 %v589
    %v1642 = vunpack.c.l.b16 %v590
    %v1643 = vunpack.c.l.b16 %v591
    %v1644 = vunpack.c.h.b16 %v591
    %v1645 = vunpack.c.l.b16 %v592
    %v1646 = vunpack.c.h.b16 %v592
    %v1647 = vunpack.c.l.b16 %v593
    %v1648 = vunpack.c.l.b16 %v594
    %v1649 = vunpack.c.h.b16 %v594
    %v1650 = vunpack.c.l.b16 %v595
    %v1651 = vunpack.c.h.b16 %v595
    %v1652 = vunpack.c.l.b16 %v596
    %v1653 = vunpack.c.l.b16 %v597
    %v1654 = vunpack.c.h.b16 %v597
    %v1655 = vunpack.c.l.b16 %v598
    %v1656 = vunpack.c.h.b16 %v598
    %v1657 = vunpack.c.l.b16 %v599
    %v1658 = vunpack.c.l.b16 %v600
    %v1659 = vunpack.c.h.b16 %v600
    %v1660 = vunpack.c.l.b16 %v601
    %v1661 = vunpack.c.h.b16 %v601
    %v1662 = vunpack.c.l.b16 %v602
    %v1663 = vunpack.c.l.b16 %v603
    %v1664 = vunpack.c.h.b16 %v603
    %v1665 = vunpack.c.l.b16 %v604
    %v1666 = vunpack.c.h.b16 %v604
    %v1667 = vunpack.c.l.b16 %v605
    %v1668 = vunpack.c.l.b16 %v606
    %v1669 = vunpack.c.h.b16 %v606
    %v1670 = vunpack.c.l.b16 %v607
    %v1671 = vunpack.c.h.b16 %v607
    %v1672 = vunpack.c.l.b16 %v608
    %v1673 = vunpack.c.l.b16 %v609
    %v1674 = vunpack.c.h.b16 %v609
    %v1675 = vunpack.c.l.b16 %v610
    %v1676 = vunpack.c.h.b16 %v610
    %v1677 = vunpack.c.l.b16 %v611
    %v1678 = vunpack.c.l.b16 %v612
    %v1679 = vunpack.c.h.b16 %v612
    %v1680 = vunpack.c.l.b16 %v613
    %v1681 = vunpack.c.h.b16 %v613
    %v1682 = vunpack.c.l.b16 %v614
    %v1683 = vunpack.c.l.b16 %v615
    %v1684 = vunpack.c.h.b16 %v615
    %v1685 = vunpack.c.l.b16 %v616
    %v1686 = vunpack.c.h.b16 %v616
    %v1687 = vunpack.c.l.b16 %v617
    %v1688 = vunpack.c.l.b16 %v618
    %v1689 = vunpack.c.h.b16 %v618
    %v1690 = vunpack.c.l.b16 %v619
    %v1691 = vunpack.c.h.b16 %v619
    %v1692 = vunpack.c.l.b16 %v620
    %v1693 = vunpack.c.l.b16 %v621
    %v1694 = vunpack.c.h.b16 %v621
    %v1695 = vunpack.c.l.b16 %v622
    %v1696 = vunpack.c.h.b16 %v622
    %v1697 = vunpack.c.l.b16 %v623
    %v1698 = vunpack.c.l.b16 %v624
    %v1699 = vunpack.c.h.b16 %v624
    %v1700 = vunpack.c.l.b16 %v625
    %v1701 = vunpack.c.h.b16 %v625
    %v1702 = vunpack.c.l.b16 %v626
    %v1703 = vunpack.c.l.b16 %v627
    %v1704 = vunpack.c.h.b16 %v627
    %v1705 = vunpack.c.l.b16 %v628
    %v1706 = vunpack.c.h.b16 %v628
    %v1707 = vunpack.c.l.b16 %v629
    %v1708 = vunpack.c.l.b16 %v630
    %v1709 = vunpack.c.h.b16 %v630
    %v1710 = vunpack.c.l.b16 %v631
    %v1711 = vunpack.c.h.b16 %v631
    %v1712 = vunpack.c.l.b16 %v632
    %v1713 = vunpack.c.l.b16 %v633
    %v1714 = vunpack.c.h.b16 %v633
    %v1715 = vunpack.c.l.b16 %v634
    %v1716 = vunpack.c.h.b16 %v634
    %v1717 = vunpack.c.l.b16 %v635
    %v1718 = vunpack.c.l.b16 %v636
    %v1719 = vunpack.c.h.b16 %v636
    %v1720 = vunpack.c.l.b16 %v637
    %v1721 = vunpack.c.h.b16 %v637
    %v1722 = vunpack.c.l.b16 %v638
    %v1723 = vunpack.c.l.b16 %v639
    %v1724 = vunpack.c.h.b16 %v639
    %v1725 = vunpack.c.l.b16 %v640
    %v1726 = vunpack.c.h.b16 %v640
    %v1727 = vunpack.c.l.b16 %v641
    %v1728 = vunpack.c.l.b16 %v642
    %v1729 = vunpack.c.h.b16 %v642
    %v1730 = vunpack.c.l.b16 %v643
    %v1731 = vunpack.c.h.b16 %v643
    %v1732 = vunpack.c.l.b16 %v644
    %v1733 = vunpack.c.l.b16 %v645
    %v1734 = vunpack.c.h.b16 %v645
    %v1735 = vunpack.c.l.b16 %v646
    %v1736 = vunpack.c.h.b16 %v646
    %v1737 = vunpack.c.l.b16 %v647
    %v1738 = vunpack.c.l.b16 %v648
    %v1739 = vunpack.c.h.b16 %v648
    %v1740 = vunpack.c.l.b16 %v649
    %v1741 = vunpack.c.h.b16 %v649
    %v1742 = vunpack.c.l.b16 %v650
    %v1743 = vunpack.c.l.b16 %v651
    %v1744 = vunpack.c.h.b16 %v651
    %v1745 = vunpack.c.l.b16 %v652
    %v1746 = vunpack.c.h.b16 %v652
    %v1747 = vunpack.c.l.b16 %v653
    %v1748 = vunpack.c.l.b16 %v654
    %v1749 = vunpack.c.h.b16 %v654
    %v1750 = vunpack.c.l.b16 %v655
    %v1751 = vunpack.c.h.b16 %v655
    %v1752 = vunpack.c.l.b16 %v656
    %v1753 = vunpack.c.l.b16 %v657
    %v1754 = vunpack.c.h.b16 %v657
    %v1755 = vunpack.c.l.b16 %v658
    %v1756 = vunpack.c.h.b16 %v658
    %v1757 = vunpack.c.l.b16 %v659
    %v1758 = vunpack.c.l.b16 %v660
    %v1759 = vunpack.c.h.b16 %v660
    %v1760 = vunpack.c.l.b16 %v661
    %v1761 = vunpack.c.h.b16 %v661
    %v1762 = vunpack.c.l.b16 %v662
    %v1763 = vunpack.c.l.b16 %v663
    %v1764 = vunpack.c.h.b16 %v663
    %v1765 = vunpack.c.l.b16 %v664
    %v1766 = vunpack.c.h.b16 %v664
    %v1767 = vunpack.c.l.b16 %v665
    %v1768 = vunpack.c.l.b16 %v666
    %v1769 = vunpack.c.h.b16 %v666
    %v1770 = vunpack.c.l.b16 %v667
    %v1771 = vunpack.c.h.b16 %v667
    %v1772 = vunpack.c.l.b16 %v668
    %v1773 = vpack.c.b16 %v1458, %v1453
    %v1774 = vpack.c.b16 %v1459, %v1454
    %v1775 = vpack.c.b16 %v1460, %v1455
    %v1776 = vpack.c.b16 %v1461, %v1456
    %v1777 = vpack.c.b16 %v1462, %v1457
    %v1778 = vpack.c.b16 %v1468, %v1463
    %v1779 = vpack.c.b16 %v1469, %v1464
    %v1780 = vpack.c.b16 %v1470, %v1465
    %v1781 = vpack.c.b16 %v1471, %v1466
    %v1782 = vpack.c.b16 %v1472, %v1467
    %v1783 = vpack.c.b16 %v1478, %v1473
    %v1784 = vpack.c.b16 %v1479, %v1474
    %v1785 = vpack.c.b16 %v1480, %v1475
    %v1786 = vpack.c.b16 %v1481, %v1476
    %v1787 = vpack.c.b16 %v1482, %v1477
    %v1788 = vpack.c.b16 %v1488, %v1483
    %v1789 = vpack.c.b16 %v1489, %v1484
    %v1790 = vpack.c.b16 %v1490, %v1485
    %v1791 = vpack.c.b16 %v1491, %v1486
    %v1792 = vpack.c.b16 %v1492, %v1487
    %v1793 = vpack.c.b16 %v1498, %v1493
    %v1794 = vpack.c.b16 %v1499, %v1494
    %v1795 = vpack.c.b16 %v1500, %v1495
    %v1796 = vpack.c.b16 %v1501, %v1496
    %v1797 = vpack.c.b16 %v1502, %v1497
    %v1798 = vpack.c.b16 %v1508, %v1503
    %v1799 = vpack.c.b16 %v1509, %v1504
    %v1800 = vpack.c.b16 %v1510, %v1505
    %v1801 = vpack.c.b16 %v1511, %v1506
    %v1802 = vpack.c.b16 %v1512, %v1507
    %v1803 = vpack.c.b16 %v1518, %v1513
    %v1804 = vpack.c.b16 %v1519, %v1514
    %v1805 = vpack.c.b16 %v1520, %v1515
    %v1806 = vpack.c.b16 %v1521, %v1516
    %v1807 = vpack.c.b16 %v1522, %v1517
    %v1808 = vpack.c.b16 %v1528, %v1523
    %v1809 = vpack.c.b16 %v1529, %v1524
    %v1810 = vpack.c.b16 %v1530, %v1525
    %v1811 = vpack.c.b16 %v1531, %v1526
    %v1812 = vpack.c.b16 %v1532, %v1527
    %v1813 = vpack.c.b16 %v1538, %v1533
    %v1814 = vpack.c.b16 %v1539, %v1534
    %v1815 = vpack.c.b16 %v1540, %v1535
    %v1816 = vpack.c.b16 %v1541, %v1536
    %v1817 = vpack.c.b16 %v1542, %v1537
    %v1818 = vpack.c.b16 %v1548, %v1543
    %v1819 = vpack.c.b16 %v1549, %v1544
    %v1820 = vpack.c.b16 %v1550, %v1545
    %v1821 = vpack.c.b16 %v1551, %v1546
    %v1822 = vpack.c.b16 %v1552, %v1547
    %v1823 = vpack.c.b16 %v1558, %v1553
    %v1824 = vpack.c.b16 %v1559, %v1554
    %v1825 = vpack.c.b16 %v1560, %v1555
    %v1826 = vpack.c.b16 %v1561, %v1556
    %v1827 = vpack.c.b16 %v1562, %v1557
    %v1828 = vpack.c.b16 %v1568, %v1563
    %v1829 = vpack.c.b16 %v1569, %v1564
    %v1830 = vpack.c.b16 %v1570, %v1565
    %v1831 = vpack.c.b16 %v1571, %v1566
    %v1832 = vpack.c.b16 %v1572, %v1567
    %v1833 = vpack.c.b16 %v1578, %v1573
    %v1834 = vpack.c.b16 %v1579, %v1574
    %v1835 = vpack.c.b16 %v1580, %v1575
    %v1836 = vpack.c.b16 %v1581, %v1576
    %v1837 = vpack.c.b16 %v1582, %v1577
    %v1838 = vpack.c.b16 %v1588, %v1583
    %v1839 = vpack.c.b16 %v1589, %v1584
    %v1840 = vpack.c.b16 %v1590, %v1585
    %v1841 = vpack.c.b16 %v1591, %v1586
    %v1842 = vpack.c.b16 %v1592, %v1587
    %v1843 = vpack.c.b16 %v1598, %v1593
    %v1844 = vpack.c.b16 %v1599, %v1594
    %v1845 = vpack.c.b16 %v1600, %v1595
    %v1846 = vpack.c.b16 %v1601, %v1596
    %v1847 = vpack.c.b16 %v1602, %v1597
    %v1848 = vpack.c.b16 %v1608, %v1603
    %v1849 = vpack.c.b16 %v1609, %v1604
    %v1850 = vpack.c.b16 %v1610, %v1605
    %v1851 = vpack.c.b16 %v1611, %v1606
    %v1852 = vpack.c.b16 %v1612, %v1607
    %v1853 = vpack.c.b16 %v1618, %v1613
    %v1854 = vpack.c.b16 %v1619, %v1614
    %v1855 = vpack.c.b16 %v1620, %v1615
    %v1856 = vpack.c.b16 %v1621, %v1616
    %v1857 = vpack.c.b16 %v1622, %v1617
    %v1858 = vpack.c.b16 %v1628, %v1623
    %v1859 = vpack.c.b16 %v1629, %v1624
    %v1860 = vpack.c.b16 %v1630, %v1625
    %v1861 = vpack.c.b16 %v1631, %v1626
    %v1862 = vpack.c.b16 %v1632, %v1627
    %v1863 = vpack.c.b16 %v1638, %v1633
    %v1864 = vpack.c.b16 %v1639, %v1634
    %v1865 = vpack.c.b16 %v1640, %v1635
    %v1866 = vpack.c.b16 %v1641, %v1636
    %v1867 = vpack.c.b16 %v1642, %v1637
    %v1868 = vpack.c.b16 %v1648, %v1643
    %v1869 = vpack.c.b16 %v1649, %v1644
    %v1870 = vpack.c.b16 %v1650, %v1645
    %v1871 = vpack.c.b16 %v1651, %v1646
    %v1872 = vpack.c.b16 %v1652, %v1647
    %v1873 = vpack.c.b16 %v1658, %v1653
    %v1874 = vpack.c.b16 %v1659, %v1654
    %v1875 = vpack.c.b16 %v1660, %v1655
    %v1876 = vpack.c.b16 %v1661, %v1656
    %v1877 = vpack.c.b16 %v1662, %v1657
    %v1878 = vpack.c.b16 %v1668, %v1663
    %v1879 = vpack.c.b16 %v1669, %v1664
    %v1880 = vpack.c.b16 %v1670, %v1665
    %v1881 = vpack.c.b16 %v1671, %v1666
    %v1882 = vpack.c.b16 %v1672, %v1667
    %v1883 = vpack.c.b16 %v1678, %v1673
    %v1884 = vpack.c.b16 %v1679, %v1674
    %v1885 = vpack.c.b16 %v1680, %v1675
    %v1886 = vpack.c.b16 %v1681, %v1676
    %v1887 = vpack.c.b16 %v1682, %v1677
    %v1888 = vpack.c.b16 %v1688, %v1683
    %v1889 = vpack.c.b16 %v1689, %v1684
    %v1890 = vpack.c.b16 %v1690, %v1685
    %v1891 = vpack.c.b16 %v1691, %v1686
    %v1892 = vpack.c.b16 %v1692, %v1687
    %v1893 = vpack.c.b16 %v1698, %v1693
    %v1894 = vpack.c.b16 %v1699, %v1694
    %v1895 = vpack.c.b16 %v1700, %v1695
    %v1896 = vpack.c.b16 %v1701, %v1696
    %v1897 = vpack.c.b16 %v1702, %v1697
    %v1898 = vpack.c.b16 %v1708, %v1703
    %v1899 = vpack.c.b16 %v1709, %v1704
    %v1900 = vpack.c.b16 %v1710, %v1705
    %v1901 = vpack.c.b16 %v1711, %v1706
    %v1902 = vpack.c.b16 %v1712, %v1707
    %v1903 = vpack.c.b16 %v1718, %v1713
    %v1904 = vpack.c.b16 %v1719, %v1714
    %v1905 = vpack.c.b16 %v1720, %v1715
    %v1906 = vpack.c.b16 %v1721, %v1716
    %v1907 = vpack.c.b16 %v1722, %v1717
    %v1908 = vpack.c.b16 %v1728, %v1723
    %v1909 = vpack.c.b16 %v1729, %v1724
    %v1910 = vpack.c.b16 %v1730, %v1725
    %v1911 = vpack.c.b16 %v1731, %v1726
    %v1912 = vpack.c.b16 %v1732, %v1727
    %v1913 = vpack.c.b16 %v1738, %v1733
    %v1914 = vpack.c.b16 %v1739, %v1734
    %v1915 = vpack.c.b16 %v1740, %v1735
    %v1916 = vpack.c.b16 %v1741, %v1736
    %v1917 = vpack.c.b16 %v1742, %v1737
    %v1918 = vpack.c.b16 %v1748, %v1743
    %v1919 = vpack.c.b16 %v1749, %v1744
    %v1920 = vpack.c.b16 %v1750, %v1745
    %v1921 = vpack.c.b16 %v1751, %v1746
    %v1922 = vpack.c.b16 %v1752, %v1747
    %v1923 = vpack.c.b16 %v1758, %v1753
    %v1924 = vpack.c.b16 %v1759, %v1754
    %v1925 = vpack.c.b16 %v1760, %v1755
    %v1926 = vpack.c.b16 %v1761, %v1756
    %v1927 = vpack.c.b16 %v1762, %v1757
    %v1928 = vpack.c.b16 %v1768, %v1763
    %v1929 = vpack.c.b16 %v1769, %v1764
    %v1930 = vpack.c.b16 %v1770, %v1765
    %v1931 = vpack.c.b16 %v1771, %v1766
    %v1932 = vpack.c.b16 %v1772, %v1767
    %2093 = vmatprep.subr.bf16.mxu0 %v1809
    %2094 = vmatpush1.bf16.msra.mxu0 %v1808
    %2095 = vmatprep.subr.bf16.mxu0 %v1804
    %2096 = vmatpush1.bf16.msra.mxu0 %v1803
    %2097 = vmatprep.subr.bf16.mxu0 %v1799
    %2098 = vmatpush1.bf16.msra.mxu0 %v1798
    %2099 = vmatprep.subr.bf16.mxu0 %v1794
    %2100 = vmatpush1.bf16.msra.mxu0 %v1793
    %2101 = vmatprep.subr.bf16.mxu0 %v1789
    %2102 = vmatpush1.bf16.msra.mxu0 %v1788
    %2103 = vmatprep.subr.bf16.mxu0 %v1784
    %2104 = vmatpush1.bf16.msra.mxu0 %v1783
    %2105 = vmatprep.subr.bf16.mxu0 %v1779
    %2106 = vmatpush1.bf16.msra.mxu0 %v1778
    %2107 = vmatprep.subr.bf16.mxu0 %v1774
    %2108 = vmatpush1.bf16.msra.mxu0 %v1773
    %2109 = vmatprep.subr.bf16.mxu0 %v1849
    %2110 = vmatpush2.bf16.msra.mxu0 %v1848
    %2111 = vmatprep.subr.bf16.mxu0 %v1844
    %2112 = vmatpush2.bf16.msra.mxu0 %v1843
    %2113 = vmatprep.subr.bf16.mxu0 %v1839
    %2114 = vmatpush2.bf16.msra.mxu0 %v1838
    %2115 = vmatprep.subr.bf16.mxu0 %v1834
    %2116 = vmatpush2.bf16.msra.mxu0 %v1833
    %2117 = vmatprep.subr.bf16.mxu0 %v1829
    %2118 = vmatpush2.bf16.msra.mxu0 %v1828
    %2119 = vmatprep.subr.bf16.mxu0 %v1824
    %2120 = vmatpush2.bf16.msra.mxu0 %v1823
    %2121 = vmatprep.subr.bf16.mxu0 %v1819
    %2122 = vmatpush2.bf16.msra.mxu0 %v1818
    %2123 = vmatprep.subr.bf16.mxu0 %v1814
    %2124 = vmatpush2.bf16.msra.mxu0 %v1813
    %2125 = vmatprep.mubr.bf16.mxu0 %v474
    %2126 = vmatmul.mubr.bf16.gmra.mxu0 %v473
    %v2127 = vpop.f32.mrf.mxu0
    %v2128 = vadd.f32 %v1116, %v2127
    %v2129 = vpop.f32.mrf.mxu0
    %v2130 = vadd.f32 %v1118, %v2129
    %v2131 = vpop.f32.mrf.mxu0
    %v2132 = vpop.f32.mrf.mxu0
    %2133 = vdwg.mxu0
    %2134 = vmatprep.subr.bf16.mxu0 %v1889
    %2135 = vmatpush1.bf16.msra.mxu0 %v1888
    %2136 = vmatprep.subr.bf16.mxu0 %v1884
    %2137 = vmatpush1.bf16.msra.mxu0 %v1883
    %2138 = vmatprep.subr.bf16.mxu0 %v1879
    %2139 = vmatpush1.bf16.msra.mxu0 %v1878
    %2140 = vmatprep.subr.bf16.mxu0 %v1874
    %2141 = vmatpush1.bf16.msra.mxu0 %v1873
    %2142 = vmatprep.subr.bf16.mxu0 %v1869
    %2143 = vmatpush1.bf16.msra.mxu0 %v1868
    %2144 = vmatprep.subr.bf16.mxu0 %v1864
    %2145 = vmatpush1.bf16.msra.mxu0 %v1863
    %2146 = vmatprep.subr.bf16.mxu0 %v1859
    %2147 = vmatpush1.bf16.msra.mxu0 %v1858
    %2148 = vmatprep.subr.bf16.mxu0 %v1854
    %2149 = vmatpush1.bf16.msra.mxu0 %v1853
    %2150 = vmatprep.subr.bf16.mxu0 %v1929
    %2151 = vmatpush2.bf16.msra.mxu0 %v1928
    %2152 = vmatprep.subr.bf16.mxu0 %v1924
    %2153 = vmatpush2.bf16.msra.mxu0 %v1923
    %2154 = vmatprep.subr.bf16.mxu0 %v1919
    %2155 = vmatpush2.bf16.msra.mxu0 %v1918
    %2156 = vmatprep.subr.bf16.mxu0 %v1914
    %2157 = vmatpush2.bf16.msra.mxu0 %v1913
    %2158 = vmatprep.subr.bf16.mxu0 %v1909
    %2159 = vmatpush2.bf16.msra.mxu0 %v1908
    %2160 = vmatprep.subr.bf16.mxu0 %v1904
    %2161 = vmatpush2.bf16.msra.mxu0 %v1903
    %2162 = vmatprep.subr.bf16.mxu0 %v1899
    %2163 = vmatpush2.bf16.msra.mxu0 %v1898
    %2164 = vmatprep.subr.bf16.mxu0 %v1894
    %2165 = vmatpush2.bf16.msra.mxu0 %v1893
    %2166 = vmatprep.mubr.bf16.mxu0 %v476
    %2167 = vmatmul.mubr.bf16.gmra.mxu0 %v475
    %v2168 = vpop.f32.mrf.mxu0
    %v2169 = vadd.f32 %v2128, %v2168
    %v2170 = vpop.f32.mrf.mxu0
    %v2171 = vadd.f32 %v2130, %v2170
    %v2172 = vpop.f32.mrf.mxu0
    %v2173 = vpop.f32.mrf.mxu0
    %2174 = vdwg.mxu0
    %2175 = vmatprep.subr.bf16.mxu0 %v1811
    %2176 = vmatpush1.bf16.msra.mxu0 %v1810
    %2177 = vmatprep.subr.bf16.mxu0 %v1806
    %2178 = vmatpush1.bf16.msra.mxu0 %v1805
    %2179 = vmatprep.subr.bf16.mxu0 %v1801
    %2180 = vmatpush1.bf16.msra.mxu0 %v1800
    %2181 = vmatprep.subr.bf16.mxu0 %v1796
    %2182 = vmatpush1.bf16.msra.mxu0 %v1795
    %2183 = vmatprep.subr.bf16.mxu0 %v1791
    %2184 = vmatpush1.bf16.msra.mxu0 %v1790
    %2185 = vmatprep.subr.bf16.mxu0 %v1786
    %2186 = vmatpush1.bf16.msra.mxu0 %v1785
    %2187 = vmatprep.subr.bf16.mxu0 %v1781
    %2188 = vmatpush1.bf16.msra.mxu0 %v1780
    %2189 = vmatprep.subr.bf16.mxu0 %v1776
    %2190 = vmatpush1.bf16.msra.mxu0 %v1775
    %2191 = vmatprep.subr.bf16.mxu0 %v1851
    %2192 = vmatpush2.bf16.msra.mxu0 %v1850
    %2193 = vmatprep.subr.bf16.mxu0 %v1846
    %2194 = vmatpush2.bf16.msra.mxu0 %v1845
    %2195 = vmatprep.subr.bf16.mxu0 %v1841
    %2196 = vmatpush2.bf16.msra.mxu0 %v1840
    %2197 = vmatprep.subr.bf16.mxu0 %v1836
    %2198 = vmatpush2.bf16.msra.mxu0 %v1835
    %2199 = vmatprep.subr.bf16.mxu0 %v1831
    %2200 = vmatpush2.bf16.msra.mxu0 %v1830
    %2201 = vmatprep.subr.bf16.mxu0 %v1826
    %2202 = vmatpush2.bf16.msra.mxu0 %v1825
    %2203 = vmatprep.subr.bf16.mxu0 %v1821
    %2204 = vmatpush2.bf16.msra.mxu0 %v1820
    %2205 = vmatprep.subr.bf16.mxu0 %v1816
    %2206 = vmatpush2.bf16.msra.mxu0 %v1815
    %2207 = vmatprep.mubr.bf16.mxu0 %v474
    %2208 = vmatmul.mubr.bf16.gmra.mxu0 %v473
    %v2209 = vpop.f32.mrf.mxu0
    %v2210 = vadd.f32 %v1187, %v2209
    %v2211 = vpop.f32.mrf.mxu0
    %v2212 = vadd.f32 %v1189, %v2211
    %v2213 = vpop.f32.mrf.mxu0
    %v2214 = vpop.f32.mrf.mxu0
    %2215 = vdwg.mxu0
    %2216 = vmatprep.subr.bf16.mxu0 %v1891
    %2217 = vmatpush1.bf16.msra.mxu0 %v1890
    %2218 = vmatprep.subr.bf16.mxu0 %v1886
    %2219 = vmatpush1.bf16.msra.mxu0 %v1885
    %2220 = vmatprep.subr.bf16.mxu0 %v1881
    %2221 = vmatpush1.bf16.msra.mxu0 %v1880
    %2222 = vmatprep.subr.bf16.mxu0 %v1876
    %2223 = vmatpush1.bf16.msra.mxu0 %v1875
    %2224 = vmatprep.subr.bf16.mxu0 %v1871
    %2225 = vmatpush1.bf16.msra.mxu0 %v1870
    %2226 = vmatprep.subr.bf16.mxu0 %v1866
    %2227 = vmatpush1.bf16.msra.mxu0 %v1865
    %2228 = vmatprep.subr.bf16.mxu0 %v1861
    %2229 = vmatpush1.bf16.msra.mxu0 %v1860
    %2230 = vmatprep.subr.bf16.mxu0 %v1856
    %2231 = vmatpush1.bf16.msra.mxu0 %v1855
    %2232 = vmatprep.subr.bf16.mxu0 %v1931
    %2233 = vmatpush2.bf16.msra.mxu0 %v1930
    %2234 = vmatprep.subr.bf16.mxu0 %v1926
    %2235 = vmatpush2.bf16.msra.mxu0 %v1925
    %2236 = vmatprep.subr.bf16.mxu0 %v1921
    %2237 = vmatpush2.bf16.msra.mxu0 %v1920
    %2238 = vmatprep.subr.bf16.mxu0 %v1916
    %2239 = vmatpush2.bf16.msra.mxu0 %v1915
    %2240 = vmatprep.subr.bf16.mxu0 %v1911
    %2241 = vmatpush2.bf16.msra.mxu0 %v1910
    %2242 = vmatprep.subr.bf16.mxu0 %v1906
    %2243 = vmatpush2.bf16.msra.mxu0 %v1905
    %2244 = vmatprep.subr.bf16.mxu0 %v1901
    %2245 = vmatpush2.bf16.msra.mxu0 %v1900
    %2246 = vmatprep.subr.bf16.mxu0 %v1896
    %2247 = vmatpush2.bf16.msra.mxu0 %v1895
    %2248 = vmatprep.mubr.bf16.mxu0 %v476
    %2249 = vmatmul.mubr.bf16.gmra.mxu0 %v475
    %v2250 = vpop.f32.mrf.mxu0
    %v2251 = vadd.f32 %v2210, %v2250
    %v2252 = vpop.f32.mrf.mxu0
    %v2253 = vadd.f32 %v2212, %v2252
    %v2254 = vpop.f32.mrf.mxu0
    %v2255 = vpop.f32.mrf.mxu0
    %2256 = vdwg.mxu0
    %2257 = vmatprep.subr.bf16.mxu0 0
    %2258 = vmatpush1.bf16.msra.mxu0 %v1812
    %2259 = vmatprep.subr.bf16.mxu0 0
    %2260 = vmatpush1.bf16.msra.mxu0 %v1807
    %2261 = vmatprep.subr.bf16.mxu0 0
    %2262 = vmatpush1.bf16.msra.mxu0 %v1802
    %2263 = vmatprep.subr.bf16.mxu0 0
    %2264 = vmatpush1.bf16.msra.mxu0 %v1797
    %2265 = vmatprep.subr.bf16.mxu0 0
    %2266 = vmatpush1.bf16.msra.mxu0 %v1792
    %2267 = vmatprep.subr.bf16.mxu0 0
    %2268 = vmatpush1.bf16.msra.mxu0 %v1787
    %2269 = vmatprep.subr.bf16.mxu0 0
    %2270 = vmatpush1.bf16.msra.mxu0 %v1782
    %2271 = vmatprep.subr.bf16.mxu0 0
    %2272 = vmatpush1.bf16.msra.mxu0 %v1777
    %2273 = vmatprep.subr.bf16.mxu0 0
    %2274 = vmatpush2.bf16.msra.mxu0 %v1852
    %2275 = vmatprep.subr.bf16.mxu0 0
    %2276 = vmatpush2.bf16.msra.mxu0 %v1847
    %2277 = vmatprep.subr.bf16.mxu0 0
    %2278 = vmatpush2.bf16.msra.mxu0 %v1842
    %2279 = vmatprep.subr.bf16.mxu0 0
    %2280 = vmatpush2.bf16.msra.mxu0 %v1837
    %2281 = vmatprep.subr.bf16.mxu0 0
    %2282 = vmatpush2.bf16.msra.mxu0 %v1832
    %2283 = vmatprep.subr.bf16.mxu0 0
    %2284 = vmatpush2.bf16.msra.mxu0 %v1827
    %2285 = vmatprep.subr.bf16.mxu0 0
    %2286 = vmatpush2.bf16.msra.mxu0 %v1822
    %2287 = vmatprep.subr.bf16.mxu0 0
    %2288 = vmatpush2.bf16.msra.mxu0 %v1817
    %2289 = vmatprep.mubr.bf16.mxu0 %v474
    %2290 = vmatmul.mubr.bf16.gmra.mxu0 %v473
    %v2291 = vpop.f32.mrf.mxu0
    %v2292 = vadd.f32 %v1258, %v2291
    %v2293 = vpop.f32.mrf.mxu0
    %v2294 = vpop.f32.mrf.mxu0
    %v2295 = vpop.f32.mrf.mxu0
    %2296 = vdwg.mxu0
    %2297 = vmatprep.subr.bf16.mxu0 0
    %2298 = vmatpush1.bf16.msra.mxu0 %v1892
    %2299 = vmatprep.subr.bf16.mxu0 0
    %2300 = vmatpush1.bf16.msra.mxu0 %v1887
    %2301 = vmatprep.subr.bf16.mxu0 0
    %2302 = vmatpush1.bf16.msra.mxu0 %v1882
    %2303 = vmatprep.subr.bf16.mxu0 0
    %2304 = vmatpush1.bf16.msra.mxu0 %v1877
    %2305 = vmatprep.subr.bf16.mxu0 0
    %2306 = vmatpush1.bf16.msra.mxu0 %v1872
    %2307 = vmatprep.subr.bf16.mxu0 0
    %2308 = vmatpush1.bf16.msra.mxu0 %v1867
    %2309 = vmatprep.subr.bf16.mxu0 0
    %2310 = vmatpush1.bf16.msra.mxu0 %v1862
    %2311 = vmatprep.subr.bf16.mxu0 0
    %2312 = vmatpush1.bf16.msra.mxu0 %v1857
    %2313 = vmatprep.subr.bf16.mxu0 0
    %2314 = vmatpush2.bf16.msra.mxu0 %v1932
    %2315 = vmatprep.subr.bf16.mxu0 0
    %2316 = vmatpush2.bf16.msra.mxu0 %v1927
    %2317 = vmatprep.subr.bf16.mxu0 0
    %2318 = vmatpush2.bf16.msra.mxu0 %v1922
    %2319 = vmatprep.subr.bf16.mxu0 0
    %2320 = vmatpush2.bf16.msra.mxu0 %v1917
    %2321 = vmatprep.subr.bf16.mxu0 0
    %2322 = vmatpush2.bf16.msra.mxu0 %v1912
    %2323 = vmatprep.subr.bf16.mxu0 0
    %2324 = vmatpush2.bf16.msra.mxu0 %v1907
    %2325 = vmatprep.subr.bf16.mxu0 0
    %2326 = vmatpush2.bf16.msra.mxu0 %v1902
    %2327 = vmatprep.subr.bf16.mxu0 0
    %2328 = vmatpush2.bf16.msra.mxu0 %v1897
    %2329 = vmatprep.mubr.bf16.mxu0 %v476
    %2330 = vmatmul.mubr.bf16.gmra.mxu0 %v475
    %v2331 = vpop.f32.mrf.mxu0
    %v2332 = vadd.f32 %v2292, %v2331
    %v2333 = vpop.f32.mrf.mxu0
    %v2334 = vpop.f32.mrf.mxu0
    %v2335 = vpop.f32.mrf.mxu0
    %2336 = vdwg.mxu0
    %v2337 = vld [vmem:[%s8] sm:$0x1f]
    %v2339 = vlaneseq
    %v2340 = vshrl.u32 %v2339, 7
    %v2341 = vsub.s32 0, %v2340
    %v2342 = vrot.slane %v2337, %v2341
    %v2343 = vlaneseq
    %v2344 = vshrl.u32 %v2343, 7
    %v2345 = vsub.s32 1, %v2344
    %v2346 = vrot.slane %v2337, %v2345
    %v2347 = vlaneseq
    %v2348 = vshrl.u32 %v2347, 7
    %v2349 = vsub.s32 2, %v2348
    %v2350 = vrot.slane %v2337, %v2349
    %v2351 = vlaneseq
    %v2352 = vshrl.u32 %v2351, 7
    %v2353 = vsub.s32 3, %v2352
    %v2354 = vrot.slane %v2337, %v2353
    %v2355 = vlaneseq
    %v2356 = vshrl.u32 %v2355, 7
    %v2357 = vsub.s32 4, %v2356
    %v2358 = vrot.slane %v2337, %v2357
    %v2364 = vadd.f32 %v2169, %v2342
    %v2365 = vadd.f32 %v2171, %v2346
    %v2366 = vadd.f32 %v2251, %v2350
    %v2367 = vadd.f32 %v2253, %v2354
    %v2368 = vadd.f32 %v2332, %v2358
    %v2369 = vld [vmem:[#allocation4] sm:$0xff]
    %v2370 = vld [vmem:[#allocation4 + $0x8] sm:$0xff]
    %v2371 = vld [vmem:[#allocation4 + $0x10] sm:$0xff]
    %v2372 = vld [vmem:[#allocation4 + $0x18] sm:$0xff]
    %v2373 = vld [vmem:[#allocation4 + $0x20] sm:$0xff]
    %v2374 = vld [vmem:[#allocation4 + $0x28] sm:$0x3]
    %v2375 = vld [vmem:[#allocation4 + $0x30] sm:$0x3]
    %v2376 = vld [vmem:[#allocation4 + $0x38] sm:$0x3]
    %v2377 = vld [vmem:[#allocation4 + $0x40] sm:$0x3]
    %v2378 = vld [vmem:[#allocation4 + $0x48] sm:$0x3]
    %v2379 = vsel %vm1045, %v2364, -inf
    %2380 = vmax.xlane.f32.xlu0 %v2379
    %v2381 = vpop.xlane.xlu0 %2380
    %v2382 = vlaneseq
    %v2383 = vshrl.u32 %v2382, 7
    %v2384 = vsub.s32 0, %v2383
    %v2385 = vrot.slane %v2369, %v2384
    %v2386 = vlaneseq
    %v2387 = vshrl.u32 %v2386, 7
    %v2388 = vsub.s32 0, %v2387
    %v2389 = vrot.slane %v2370, %v2388
    %v2390 = vlaneseq
    %v2391 = vshrl.u32 %v2390, 7
    %v2392 = vsub.s32 0, %v2391
    %v2393 = vrot.slane %v2371, %v2392
    %v2394 = vlaneseq
    %v2395 = vshrl.u32 %v2394, 7
    %v2396 = vsub.s32 0, %v2395
    %v2397 = vrot.slane %v2372, %v2396
    %v2398 = vlaneseq
    %v2399 = vshrl.u32 %v2398, 7
    %v2400 = vsub.s32 0, %v2399
    %v2401 = vrot.slane %v2373, %v2400
    %v2402 = vmul.f32 %v2381, %v2385
    %v2403 = vmul.f32 %v2381, %v2389
    %v2404 = vmul.f32 %v2381, %v2393
    %v2405 = vmul.f32 %v2381, %v2397
    %v2406 = vmul.f32 %v2381, %v2401
    %vm2407 = vcmask 1048064
    %v2408 = vsel %vm2407, %v2364, -inf
    %2409 = vmax.xlane.f32.xlu0 %v2408
    %v2410 = vpop.xlane.xlu0 %2409
    %v2411 = vlaneseq
    %v2412 = vshrl.u32 %v2411, 7
    %v2413 = vsub.s32 1, %v2412
    %v2414 = vrot.slane %v2369, %v2413
    %v2415 = vlaneseq
    %v2416 = vshrl.u32 %v2415, 7
    %v2417 = vsub.s32 1, %v2416
    %v2418 = vrot.slane %v2370, %v2417
    %v2419 = vlaneseq
    %v2420 = vshrl.u32 %v2419, 7
    %v2421 = vsub.s32 1, %v2420
    %v2422 = vrot.slane %v2371, %v2421
    %v2423 = vlaneseq
    %v2424 = vshrl.u32 %v2423, 7
    %v2425 = vsub.s32 1, %v2424
    %v2426 = vrot.slane %v2372, %v2425
    %v2427 = vlaneseq
    %v2428 = vshrl.u32 %v2427, 7
    %v2429 = vsub.s32 1, %v2428
    %v2430 = vrot.slane %v2373, %v2429
    %v2431 = vmul.f32 %v2410, %v2414
    %v2432 = vmul.f32 %v2410, %v2418
    %v2433 = vmul.f32 %v2410, %v2422
    %v2434 = vmul.f32 %v2410, %v2426
    %v2435 = vmul.f32 %v2410, %v2430
    %v2436 = vadd.f32 %v2402, %v2431
    %v2437 = vadd.f32 %v2403, %v2432
    %v2438 = vadd.f32 %v2404, %v2433
    %v2439 = vadd.f32 %v2405, %v2434
    %v2440 = vadd.f32 %v2406, %v2435
    %v2441 = vsel %vm1045, %v2365, -inf
    %2442 = vmax.xlane.f32.xlu0 %v2441
    %v2443 = vpop.xlane.xlu0 %2442
    %v2444 = vlaneseq
    %v2445 = vshrl.u32 %v2444, 7
    %v2446 = vsub.s32 2, %v2445
    %v2447 = vrot.slane %v2369, %v2446
    %v2448 = vlaneseq
    %v2449 = vshrl.u32 %v2448, 7
    %v2450 = vsub.s32 2, %v2449
    %v2451 = vrot.slane %v2370, %v2450
    %v2452 = vlaneseq
    %v2453 = vshrl.u32 %v2452, 7
    %v2454 = vsub.s32 2, %v2453
    %v2455 = vrot.slane %v2371, %v2454
    %v2456 = vlaneseq
    %v2457 = vshrl.u32 %v2456, 7
    %v2458 = vsub.s32 2, %v2457
    %v2459 = vrot.slane %v2372, %v2458
    %v2460 = vlaneseq
    %v2461 = vshrl.u32 %v2460, 7
    %v2462 = vsub.s32 2, %v2461
    %v2463 = vrot.slane %v2373, %v2462
    %v2464 = vmul.f32 %v2443, %v2447
    %v2465 = vmul.f32 %v2443, %v2451
    %v2466 = vmul.f32 %v2443, %v2455
    %v2467 = vmul.f32 %v2443, %v2459
    %v2468 = vmul.f32 %v2443, %v2463
    %v2469 = vadd.f32 %v2436, %v2464
    %v2470 = vadd.f32 %v2437, %v2465
    %v2471 = vadd.f32 %v2438, %v2466
    %v2472 = vadd.f32 %v2439, %v2467
    %v2473 = vadd.f32 %v2440, %v2468
    %v2474 = vsel %vm2407, %v2365, -inf
    %2475 = vmax.xlane.f32.xlu0 %v2474
    %v2476 = vpop.xlane.xlu0 %2475
    %v2477 = vlaneseq
    %v2478 = vshrl.u32 %v2477, 7
    %v2479 = vsub.s32 3, %v2478
    %v2480 = vrot.slane %v2369, %v2479
    %v2481 = vlaneseq
    %v2482 = vshrl.u32 %v2481, 7
    %v2483 = vsub.s32 3, %v2482
    %v2484 = vrot.slane %v2370, %v2483
    %v2485 = vlaneseq
    %v2486 = vshrl.u32 %v2485, 7
    %v2487 = vsub.s32 3, %v2486
    %v2488 = vrot.slane %v2371, %v2487
    %v2489 = vlaneseq
    %v2490 = vshrl.u32 %v2489, 7
    %v2491 = vsub.s32 3, %v2490
    %v2492 = vrot.slane %v2372, %v2491
    %v2493 = vlaneseq
    %v2494 = vshrl.u32 %v2493, 7
    %v2495 = vsub.s32 3, %v2494
    %v2496 = vrot.slane %v2373, %v2495
    %v2497 = vmul.f32 %v2476, %v2480
    %v2498 = vmul.f32 %v2476, %v2484
    %v2499 = vmul.f32 %v2476, %v2488
    %v2500 = vmul.f32 %v2476, %v2492
    %v2501 = vmul.f32 %v2476, %v2496
    %v2502 = vadd.f32 %v2469, %v2497
    %v2503 = vadd.f32 %v2470, %v2498
    %v2504 = vadd.f32 %v2471, %v2499
    %v2505 = vadd.f32 %v2472, %v2500
    %v2506 = vadd.f32 %v2473, %v2501
    %v2507 = vsel %vm1045, %v2366, -inf
    %2508 = vmax.xlane.f32.xlu0 %v2507
    %v2509 = vpop.xlane.xlu0 %2508
    %v2510 = vlaneseq
    %v2511 = vshrl.u32 %v2510, 7
    %v2512 = vsub.s32 4, %v2511
    %v2513 = vrot.slane %v2369, %v2512
    %v2514 = vlaneseq
    %v2515 = vshrl.u32 %v2514, 7
    %v2516 = vsub.s32 4, %v2515
    %v2517 = vrot.slane %v2370, %v2516
    %v2518 = vlaneseq
    %v2519 = vshrl.u32 %v2518, 7
    %v2520 = vsub.s32 4, %v2519
    %v2521 = vrot.slane %v2371, %v2520
    %v2522 = vlaneseq
    %v2523 = vshrl.u32 %v2522, 7
    %v2524 = vsub.s32 4, %v2523
    %v2525 = vrot.slane %v2372, %v2524
    %v2526 = vlaneseq
    %v2527 = vshrl.u32 %v2526, 7
    %v2528 = vsub.s32 4, %v2527
    %v2529 = vrot.slane %v2373, %v2528
    %v2530 = vmul.f32 %v2509, %v2513
    %v2531 = vmul.f32 %v2509, %v2517
    %v2532 = vmul.f32 %v2509, %v2521
    %v2533 = vmul.f32 %v2509, %v2525
    %v2534 = vmul.f32 %v2509, %v2529
    %v2535 = vadd.f32 %v2502, %v2530
    %v2536 = vadd.f32 %v2503, %v2531
    %v2537 = vadd.f32 %v2504, %v2532
    %v2538 = vadd.f32 %v2505, %v2533
    %v2539 = vadd.f32 %v2506, %v2534
    %v2540 = vsel %vm2407, %v2366, -inf
    %2541 = vmax.xlane.f32.xlu0 %v2540
    %v2542 = vpop.xlane.xlu0 %2541
    %v2543 = vlaneseq
    %v2544 = vshrl.u32 %v2543, 7
    %v2545 = vsub.s32 5, %v2544
    %v2546 = vrot.slane %v2369, %v2545
    %v2547 = vlaneseq
    %v2548 = vshrl.u32 %v2547, 7
    %v2549 = vsub.s32 5, %v2548
    %v2550 = vrot.slane %v2370, %v2549
    %v2551 = vlaneseq
    %v2552 = vshrl.u32 %v2551, 7
    %v2553 = vsub.s32 5, %v2552
    %v2554 = vrot.slane %v2371, %v2553
    %v2555 = vlaneseq
    %v2556 = vshrl.u32 %v2555, 7
    %v2557 = vsub.s32 5, %v2556
    %v2558 = vrot.slane %v2372, %v2557
    %v2559 = vlaneseq
    %v2560 = vshrl.u32 %v2559, 7
    %v2561 = vsub.s32 5, %v2560
    %v2562 = vrot.slane %v2373, %v2561
    %v2563 = vmul.f32 %v2542, %v2546
    %v2564 = vmul.f32 %v2542, %v2550
    %v2565 = vmul.f32 %v2542, %v2554
    %v2566 = vmul.f32 %v2542, %v2558
    %v2567 = vmul.f32 %v2542, %v2562
    %v2568 = vadd.f32 %v2535, %v2563
    %v2569 = vadd.f32 %v2536, %v2564
    %v2570 = vadd.f32 %v2537, %v2565
    %v2571 = vadd.f32 %v2538, %v2566
    %v2572 = vadd.f32 %v2539, %v2567
    %v2573 = vsel %vm1045, %v2367, -inf
    %2574 = vmax.xlane.f32.xlu0 %v2573
    %v2575 = vpop.xlane.xlu0 %2574
    %v2576 = vlaneseq
    %v2577 = vshrl.u32 %v2576, 7
    %v2578 = vsub.s32 6, %v2577
    %v2579 = vrot.slane %v2369, %v2578
    %v2580 = vlaneseq
    %v2581 = vshrl.u32 %v2580, 7
    %v2582 = vsub.s32 6, %v2581
    %v2583 = vrot.slane %v2370, %v2582
    %v2584 = vlaneseq
    %v2585 = vshrl.u32 %v2584, 7
    %v2586 = vsub.s32 6, %v2585
    %v2587 = vrot.slane %v2371, %v2586
    %v2588 = vlaneseq
    %v2589 = vshrl.u32 %v2588, 7
    %v2590 = vsub.s32 6, %v2589
    %v2591 = vrot.slane %v2372, %v2590
    %v2592 = vlaneseq
    %v2593 = vshrl.u32 %v2592, 7
    %v2594 = vsub.s32 6, %v2593
    %v2595 = vrot.slane %v2373, %v2594
    %v2596 = vmul.f32 %v2575, %v2579
    %v2597 = vmul.f32 %v2575, %v2583
    %v2598 = vmul.f32 %v2575, %v2587
    %v2599 = vmul.f32 %v2575, %v2591
    %v2600 = vmul.f32 %v2575, %v2595
    %v2601 = vadd.f32 %v2568, %v2596
    %v2602 = vadd.f32 %v2569, %v2597
    %v2603 = vadd.f32 %v2570, %v2598
    %v2604 = vadd.f32 %v2571, %v2599
    %v2605 = vadd.f32 %v2572, %v2600
    %v2606 = vsel %vm2407, %v2367, -inf
    %2607 = vmax.xlane.f32.xlu0 %v2606
    %v2608 = vpop.xlane.xlu0 %2607
    %v2609 = vlaneseq
    %v2610 = vshrl.u32 %v2609, 7
    %v2611 = vsub.s32 7, %v2610
    %v2612 = vrot.slane %v2369, %v2611
    %v2613 = vlaneseq
    %v2614 = vshrl.u32 %v2613, 7
    %v2615 = vsub.s32 7, %v2614
    %v2616 = vrot.slane %v2370, %v2615
    %v2617 = vlaneseq
    %v2618 = vshrl.u32 %v2617, 7
    %v2619 = vsub.s32 7, %v2618
    %v2620 = vrot.slane %v2371, %v2619
    %v2621 = vlaneseq
    %v2622 = vshrl.u32 %v2621, 7
    %v2623 = vsub.s32 7, %v2622
    %v2624 = vrot.slane %v2372, %v2623
    %v2625 = vlaneseq
    %v2626 = vshrl.u32 %v2625, 7
    %v2627 = vsub.s32 7, %v2626
    %v2628 = vrot.slane %v2373, %v2627
    %v2629 = vmul.f32 %v2608, %v2612
    %v2630 = vmul.f32 %v2608, %v2616
    %v2631 = vmul.f32 %v2608, %v2620
    %v2632 = vmul.f32 %v2608, %v2624
    %v2633 = vmul.f32 %v2608, %v2628
    %v2634 = vadd.f32 %v2601, %v2629
    %v2635 = vadd.f32 %v2602, %v2630
    %v2636 = vadd.f32 %v2603, %v2631
    %v2637 = vadd.f32 %v2604, %v2632
    %v2638 = vadd.f32 %v2605, %v2633
    %v2639 = vsel %vm1045, %v2368, -inf
    %2640 = vmax.xlane.f32.xlu0 %v2639
    %v2641 = vpop.xlane.xlu0 %2640
    %v2642 = vlaneseq
    %v2643 = vshrl.u32 %v2642, 7
    %v2644 = vsub.s32 0, %v2643
    %v2645 = vrot.slane %v2374, %v2644
    %v2646 = vlaneseq
    %v2647 = vshrl.u32 %v2646, 7
    %v2648 = vsub.s32 0, %v2647
    %v2649 = vrot.slane %v2375, %v2648
    %v2650 = vlaneseq
    %v2651 = vshrl.u32 %v2650, 7
    %v2652 = vsub.s32 0, %v2651
    %v2653 = vrot.slane %v2376, %v2652
    %v2654 = vlaneseq
    %v2655 = vshrl.u32 %v2654, 7
    %v2656 = vsub.s32 0, %v2655
    %v2657 = vrot.slane %v2377, %v2656
    %v2658 = vlaneseq
    %v2659 = vshrl.u32 %v2658, 7
    %v2660 = vsub.s32 0, %v2659
    %v2661 = vrot.slane %v2378, %v2660
    %v2662 = vmul.f32 %v2641, %v2645
    %v2663 = vmul.f32 %v2641, %v2649
    %v2664 = vmul.f32 %v2641, %v2653
    %v2665 = vmul.f32 %v2641, %v2657
    %v2666 = vmul.f32 %v2641, %v2661
    %v2667 = vadd.f32 %v2634, %v2662
    %v2668 = vadd.f32 %v2635, %v2663
    %v2669 = vadd.f32 %v2636, %v2664
    %v2670 = vadd.f32 %v2637, %v2665
    %v2671 = vadd.f32 %v2638, %v2666
    %v2672 = vsel %vm2407, %v2368, -inf
    %2673 = vmax.xlane.f32.xlu0 %v2672
    %v2674 = vpop.xlane.xlu0 %2673
    %v2675 = vlaneseq
    %v2676 = vshrl.u32 %v2675, 7
    %v2677 = vsub.s32 1, %v2676
    %v2678 = vrot.slane %v2374, %v2677
    %v2679 = vlaneseq
    %v2680 = vshrl.u32 %v2679, 7
    %v2681 = vsub.s32 1, %v2680
    %v2682 = vrot.slane %v2375, %v2681
    %v2683 = vlaneseq
    %v2684 = vshrl.u32 %v2683, 7
    %v2685 = vsub.s32 1, %v2684
    %v2686 = vrot.slane %v2376, %v2685
    %v2687 = vlaneseq
    %v2688 = vshrl.u32 %v2687, 7
    %v2689 = vsub.s32 1, %v2688
    %v2690 = vrot.slane %v2377, %v2689
    %v2691 = vlaneseq
    %v2692 = vshrl.u32 %v2691, 7
    %v2693 = vsub.s32 1, %v2692
    %v2694 = vrot.slane %v2378, %v2693
    %v2695 = vmul.f32 %v2674, %v2678
    %v2696 = vmul.f32 %v2674, %v2682
    %v2697 = vmul.f32 %v2674, %v2686
    %v2698 = vmul.f32 %v2674, %v2690
    %v2699 = vmul.f32 %v2674, %v2694
    %v2700 = vadd.f32 %v2667, %v2695
    %v2701 = vadd.f32 %v2668, %v2696
    %v2702 = vadd.f32 %v2669, %v2697
    %v2703 = vadd.f32 %v2670, %v2698
    %v2704 = vadd.f32 %v2671, %v2699
    %v2705 = vsub.f32 %v2364, %v2700
    %v2706 = vsub.f32 %v2365, %v2701
    %v2707 = vsub.f32 %v2366, %v2702
    %v2708 = vsub.f32 %v2367, %v2703
    %v2709 = vsub.f32 %v2368, %v2704
    %v2710 = vmul.f32 %v2705, 1.442695
    %v2711 = vpow.pop %v2710
    %v2712 = vmul.f32 %v2706, 1.442695
    %v2713 = vpow.pop %v2712
    %v2714 = vmul.f32 %v2707, 1.442695
    %v2715 = vpow.pop %v2714
    %v2716 = vmul.f32 %v2708, 1.442695
    %v2717 = vpow.pop %v2716
    %v2718 = vmul.f32 %v2709, 1.442695
    %v2719 = vpow.pop %v2718
    %v2720 = vld [vmem:[%s9] sm:$0xff]
    %v2721 = vld [vmem:[%s9 + $0x8] sm:$0xff]
    %v2722 = vld [vmem:[%s9 + $0x10] sm:$0xff]
    %v2723 = vld [vmem:[%s9 + $0x18] sm:$0xff]
    %v2724 = vld [vmem:[%s9 + $0x20] sm:$0xff]
    %v2725 = vld [vmem:[%s9 + $0x28] sm:$0xff]
    %v2726 = vld [vmem:[%s9 + $0x30] sm:$0xff]
    %v2727 = vld [vmem:[%s9 + $0x38] sm:$0xff]
    %v2728 = vld [vmem:[%s9 + $0x40] sm:$0xff]
    %v2729 = vld [vmem:[%s9 + $0x48] sm:$0xff]
    %v2730 = vld [vmem:[%s9 + $0x50] sm:$0xff]
    %v2731 = vld [vmem:[%s9 + $0x58] sm:$0xff]
    %v2732 = vld [vmem:[%s9 + $0x60] sm:$0xff]
    %v2733 = vld [vmem:[%s9 + $0x68] sm:$0xff]
    %v2734 = vld [vmem:[%s9 + $0x70] sm:$0xff]
    %v2735 = vld [vmem:[%s9 + $0x78] sm:$0xff]
    %v2736 = vld [vmem:[%s9 + $0x80] sm:$0xff]
    %v2737 = vld [vmem:[%s9 + $0x88] sm:$0xff]
    %v2738 = vld [vmem:[%s9 + $0x90] sm:$0xff]
    %v2739 = vld [vmem:[%s9 + $0x98] sm:$0xff]
    %v2740 = vld [vmem:[%s9 + $0xa0] sm:$0xff]
    %v2741 = vld [vmem:[%s9 + $0xa8] sm:$0xff]
    %v2742 = vld [vmem:[%s9 + $0xb0] sm:$0xff]
    %v2743 = vld [vmem:[%s9 + $0xb8] sm:$0xff]
    %v2744 = vld [vmem:[%s9 + $0xc0] sm:$0xff]
    %v2745 = vld [vmem:[%s9 + $0xc8] sm:$0xff]
    %v2746 = vld [vmem:[%s9 + $0xd0] sm:$0xff]
    %v2747 = vld [vmem:[%s9 + $0xd8] sm:$0xff]
    %v2748 = vld [vmem:[%s9 + $0xe0] sm:$0xff]
    %v2749 = vld [vmem:[%s9 + $0xe8] sm:$0xff]
    %v2750 = vld [vmem:[%s9 + $0xf0] sm:$0xff]
    %v2751 = vld [vmem:[%s9 + $0xf8] sm:$0xff]
    %v2752 = vld [vmem:[%s9 + $0x100] sm:$0xff]
    %v2753 = vld [vmem:[%s9 + $0x108] sm:$0xff]
    %v2754 = vld [vmem:[%s9 + $0x110] sm:$0xff]
    %v2755 = vld [vmem:[%s9 + $0x118] sm:$0xff]
    %v2756 = vld [vmem:[%s9 + $0x120] sm:$0xff]
    %v2757 = vld [vmem:[%s9 + $0x128] sm:$0xff]
    %v2758 = vld [vmem:[%s9 + $0x130] sm:$0xff]
    %v2759 = vld [vmem:[%s9 + $0x138] sm:$0xff]
    %v2760 = vld [vmem:[%s9 + $0x140] sm:$0xff]
    %v2761 = vld [vmem:[%s9 + $0x148] sm:$0xff]
    %v2762 = vld [vmem:[%s9 + $0x150] sm:$0xff]
    %v2763 = vld [vmem:[%s9 + $0x158] sm:$0xff]
    %v2764 = vld [vmem:[%s9 + $0x160] sm:$0xff]
    %v2765 = vld [vmem:[%s9 + $0x168] sm:$0xff]
    %v2766 = vld [vmem:[%s9 + $0x170] sm:$0xff]
    %v2767 = vld [vmem:[%s9 + $0x178] sm:$0xff]
    %v2768 = vld [vmem:[%s9 + $0x180] sm:$0xff]
    %v2769 = vld [vmem:[%s9 + $0x188] sm:$0xff]
    %v2770 = vld [vmem:[%s9 + $0x190] sm:$0xff]
    %v2771 = vld [vmem:[%s9 + $0x198] sm:$0xff]
    %v2772 = vld [vmem:[%s9 + $0x1a0] sm:$0xff]
    %v2773 = vld [vmem:[%s9 + $0x1a8] sm:$0xff]
    %v2774 = vld [vmem:[%s9 + $0x1b0] sm:$0xff]
    %v2775 = vld [vmem:[%s9 + $0x1b8] sm:$0xff]
    %v2776 = vld [vmem:[%s9 + $0x1c0] sm:$0xff]
    %v2777 = vld [vmem:[%s9 + $0x1c8] sm:$0xff]
    %v2778 = vld [vmem:[%s9 + $0x1d0] sm:$0xff]
    %v2779 = vld [vmem:[%s9 + $0x1d8] sm:$0xff]
    %v2780 = vld [vmem:[%s9 + $0x1e0] sm:$0xff]
    %v2781 = vld [vmem:[%s9 + $0x1e8] sm:$0xff]
    %v2782 = vld [vmem:[%s9 + $0x1f0] sm:$0xff]
    %v2783 = vld [vmem:[%s9 + $0x1f8] sm:$0xff]
    %v2784 = vld [vmem:[%s9 + $0x200] sm:$0xff]
    %v2785 = vld [vmem:[%s9 + $0x208] sm:$0xff]
    %v2786 = vld [vmem:[%s9 + $0x210] sm:$0xff]
    %v2787 = vld [vmem:[%s9 + $0x218] sm:$0xff]
    %v2788 = vld [vmem:[%s9 + $0x220] sm:$0xff]
    %v2789 = vld [vmem:[%s9 + $0x228] sm:$0xff]
    %v2790 = vld [vmem:[%s9 + $0x230] sm:$0xff]
    %v2791 = vld [vmem:[%s9 + $0x238] sm:$0xff]
    %v2792 = vld [vmem:[%s9 + $0x240] sm:$0xff]
    %v2793 = vld [vmem:[%s9 + $0x248] sm:$0xff]
    %v2794 = vld [vmem:[%s9 + $0x250] sm:$0xff]
    %v2795 = vld [vmem:[%s9 + $0x258] sm:$0xff]
    %v2796 = vld [vmem:[%s9 + $0x260] sm:$0xff]
    %v2797 = vld [vmem:[%s9 + $0x268] sm:$0xff]
    %v2798 = vld [vmem:[%s9 + $0x270] sm:$0xff]
    %v2799 = vld [vmem:[%s9 + $0x278] sm:$0xff]
    %2800 = vmatprep.subr.mxu0 0.0
    %2801 = vmatpush1.msra.mxu0 %v2735
    %2802 = vmatprep.subr.mxu0 0.0
    %2803 = vmatpush1.msra.mxu0 %v2734
    %2804 = vmatprep.subr.mxu0 0.0
    %2805 = vmatpush1.msra.mxu0 %v2733
    %2806 = vmatprep.subr.mxu0 0.0
    %2807 = vmatpush1.msra.mxu0 %v2732
    %2808 = vmatprep.subr.mxu0 0.0
    %2809 = vmatpush1.msra.mxu0 %v2731
    %2810 = vmatprep.subr.mxu0 0.0
    %2811 = vmatpush1.msra.mxu0 %v2730
    %2812 = vmatprep.subr.mxu0 0.0
    %2813 = vmatpush1.msra.mxu0 %v2729
    %2814 = vmatprep.subr.mxu0 0.0
    %2815 = vmatpush1.msra.mxu0 %v2728
    %2816 = vmatprep.subr.mxu0 0.0
    %2817 = vmatpush1.msra.mxu0 %v2727
    %2818 = vmatprep.subr.mxu0 0.0
    %2819 = vmatpush1.msra.mxu0 %v2726
    %2820 = vmatprep.subr.mxu0 0.0
    %2821 = vmatpush1.msra.mxu0 %v2725
    %2822 = vmatprep.subr.mxu0 0.0
    %2823 = vmatpush1.msra.mxu0 %v2724
    %2824 = vmatprep.subr.mxu0 0.0
    %2825 = vmatpush1.msra.mxu0 %v2723
    %2826 = vmatprep.subr.mxu0 0.0
    %2827 = vmatpush1.msra.mxu0 %v2722
    %2828 = vmatprep.subr.mxu0 0.0
    %2829 = vmatpush1.msra.mxu0 %v2721
    %2830 = vmatprep.subr.mxu0 0.0
    %2831 = vmatpush1.msra.mxu0 %v2720
    %2832 = vmatprep.subr.mxu0 0.0
    %2833 = vmatpush2.msra.mxu0 %v2751
    %2834 = vmatprep.subr.mxu0 0.0
    %2835 = vmatpush2.msra.mxu0 %v2750
    %2836 = vmatprep.subr.mxu0 0.0
    %2837 = vmatpush2.msra.mxu0 %v2749
    %2838 = vmatprep.subr.mxu0 0.0
    %2839 = vmatpush2.msra.mxu0 %v2748
    %2840 = vmatprep.subr.mxu0 0.0
    %2841 = vmatpush2.msra.mxu0 %v2747
    %2842 = vmatprep.subr.mxu0 0.0
    %2843 = vmatpush2.msra.mxu0 %v2746
    %2844 = vmatprep.subr.mxu0 0.0
    %2845 = vmatpush2.msra.mxu0 %v2745
    %2846 = vmatprep.subr.mxu0 0.0
    %2847 = vmatpush2.msra.mxu0 %v2744
    %2848 = vmatprep.subr.mxu0 0.0
    %2849 = vmatpush2.msra.mxu0 %v2743
    %2850 = vmatprep.subr.mxu0 0.0
    %2851 = vmatpush2.msra.mxu0 %v2742
    %2852 = vmatprep.subr.mxu0 0.0
    %2853 = vmatpush2.msra.mxu0 %v2741
    %2854 = vmatprep.subr.mxu0 0.0
    %2855 = vmatpush2.msra.mxu0 %v2740
    %2856 = vmatprep.subr.mxu0 0.0
    %2857 = vmatpush2.msra.mxu0 %v2739
    %2858 = vmatprep.subr.mxu0 0.0
    %2859 = vmatpush2.msra.mxu0 %v2738
    %2860 = vmatprep.subr.mxu0 0.0
    %2861 = vmatpush2.msra.mxu0 %v2737
    %2862 = vmatprep.subr.mxu0 0.0
    %2863 = vmatpush2.msra.mxu0 %v2736
    %2864 = vmatprep.mubr.f32.mxu0 %v2713
    %2865 = vmatmul.mubr.f32.gmra.mxu0 %v2711
    %v2866 = vpop.f32.mrf.mxu0
    %v2867 = vadd.f32 0.0, %v2866
    %v2868 = vpop.f32.mrf.mxu0
    %2869 = vdwg.mxu0
    %2870 = vmatprep.subr.mxu0 0.0
    %2871 = vmatpush1.msra.mxu0 %v2767
    %2872 = vmatprep.subr.mxu0 0.0
    %2873 = vmatpush1.msra.mxu0 %v2766
    %2874 = vmatprep.subr.mxu0 0.0
    %2875 = vmatpush1.msra.mxu0 %v2765
    %2876 = vmatprep.subr.mxu0 0.0
    %2877 = vmatpush1.msra.mxu0 %v2764
    %2878 = vmatprep.subr.mxu0 0.0
    %2879 = vmatpush1.msra.mxu0 %v2763
    %2880 = vmatprep.subr.mxu0 0.0
    %2881 = vmatpush1.msra.mxu0 %v2762
    %2882 = vmatprep.subr.mxu0 0.0
    %2883 = vmatpush1.msra.mxu0 %v2761
    %2884 = vmatprep.subr.mxu0 0.0
    %2885 = vmatpush1.msra.mxu0 %v2760
    %2886 = vmatprep.subr.mxu0 0.0
    %2887 = vmatpush1.msra.mxu0 %v2759
    %2888 = vmatprep.subr.mxu0 0.0
    %2889 = vmatpush1.msra.mxu0 %v2758
    %2890 = vmatprep.subr.mxu0 0.0
    %2891 = vmatpush1.msra.mxu0 %v2757
    %2892 = vmatprep.subr.mxu0 0.0
    %2893 = vmatpush1.msra.mxu0 %v2756
    %2894 = vmatprep.subr.mxu0 0.0
    %2895 = vmatpush1.msra.mxu0 %v2755
    %2896 = vmatprep.subr.mxu0 0.0
    %2897 = vmatpush1.msra.mxu0 %v2754
    %2898 = vmatprep.subr.mxu0 0.0
    %2899 = vmatpush1.msra.mxu0 %v2753
    %2900 = vmatprep.subr.mxu0 0.0
    %2901 = vmatpush1.msra.mxu0 %v2752
    %2902 = vmatprep.subr.mxu0 0.0
    %2903 = vmatpush2.msra.mxu0 %v2783
    %2904 = vmatprep.subr.mxu0 0.0
    %2905 = vmatpush2.msra.mxu0 %v2782
    %2906 = vmatprep.subr.mxu0 0.0
    %2907 = vmatpush2.msra.mxu0 %v2781
    %2908 = vmatprep.subr.mxu0 0.0
    %2909 = vmatpush2.msra.mxu0 %v2780
    %2910 = vmatprep.subr.mxu0 0.0
    %2911 = vmatpush2.msra.mxu0 %v2779
    %2912 = vmatprep.subr.mxu0 0.0
    %2913 = vmatpush2.msra.mxu0 %v2778
    %2914 = vmatprep.subr.mxu0 0.0
    %2915 = vmatpush2.msra.mxu0 %v2777
    %2916 = vmatprep.subr.mxu0 0.0
    %2917 = vmatpush2.msra.mxu0 %v2776
    %2918 = vmatprep.subr.mxu0 0.0
    %2919 = vmatpush2.msra.mxu0 %v2775
    %2920 = vmatprep.subr.mxu0 0.0
    %2921 = vmatpush2.msra.mxu0 %v2774
    %2922 = vmatprep.subr.mxu0 0.0
    %2923 = vmatpush2.msra.mxu0 %v2773
    %2924 = vmatprep.subr.mxu0 0.0
    %2925 = vmatpush2.msra.mxu0 %v2772
    %2926 = vmatprep.subr.mxu0 0.0
    %2927 = vmatpush2.msra.mxu0 %v2771
    %2928 = vmatprep.subr.mxu0 0.0
    %2929 = vmatpush2.msra.mxu0 %v2770
    %2930 = vmatprep.subr.mxu0 0.0
    %2931 = vmatpush2.msra.mxu0 %v2769
    %2932 = vmatprep.subr.mxu0 0.0
    %2933 = vmatpush2.msra.mxu0 %v2768
    %2934 = vmatprep.mubr.f32.mxu0 %v2717
    %2935 = vmatmul.mubr.f32.gmra.mxu0 %v2715
    %v2936 = vpop.f32.mrf.mxu0
    %v2937 = vadd.f32 %v2867, %v2936
    %v2938 = vpop.f32.mrf.mxu0
    %2939 = vdwg.mxu0
    %2940 = vmatprep.subr.mxu0 0.0
    %2941 = vmatpush1.msra.mxu0 %v2799
    %2942 = vmatprep.subr.mxu0 0.0
    %2943 = vmatpush1.msra.mxu0 %v2798
    %2944 = vmatprep.subr.mxu0 0.0
    %2945 = vmatpush1.msra.mxu0 %v2797
    %2946 = vmatprep.subr.mxu0 0.0
    %2947 = vmatpush1.msra.mxu0 %v2796
    %2948 = vmatprep.subr.mxu0 0.0
    %2949 = vmatpush1.msra.mxu0 %v2795
    %2950 = vmatprep.subr.mxu0 0.0
    %2951 = vmatpush1.msra.mxu0 %v2794
    %2952 = vmatprep.subr.mxu0 0.0
    %2953 = vmatpush1.msra.mxu0 %v2793
    %2954 = vmatprep.subr.mxu0 0.0
    %2955 = vmatpush1.msra.mxu0 %v2792
    %2956 = vmatprep.subr.mxu0 0.0
    %2957 = vmatpush1.msra.mxu0 %v2791
    %2958 = vmatprep.subr.mxu0 0.0
    %2959 = vmatpush1.msra.mxu0 %v2790
    %2960 = vmatprep.subr.mxu0 0.0
    %2961 = vmatpush1.msra.mxu0 %v2789
    %2962 = vmatprep.subr.mxu0 0.0
    %2963 = vmatpush1.msra.mxu0 %v2788
    %2964 = vmatprep.subr.mxu0 0.0
    %2965 = vmatpush1.msra.mxu0 %v2787
    %2966 = vmatprep.subr.mxu0 0.0
    %2967 = vmatpush1.msra.mxu0 %v2786
    %2968 = vmatprep.subr.mxu0 0.0
    %2969 = vmatpush1.msra.mxu0 %v2785
    %2970 = vmatprep.subr.mxu0 0.0
    %2971 = vmatpush1.msra.mxu0 %v2784
    %2972 = vmatprep.subr.mxu0 0.0
    %2973 = vmatpush2.msra.mxu0 0.0
    %2974 = vmatprep.subr.mxu0 0.0
    %2975 = vmatpush2.msra.mxu0 0.0
    %2976 = vmatprep.subr.mxu0 0.0
    %2977 = vmatpush2.msra.mxu0 0.0
    %2978 = vmatprep.subr.mxu0 0.0
    %2979 = vmatpush2.msra.mxu0 0.0
    %2980 = vmatprep.subr.mxu0 0.0
    %2981 = vmatpush2.msra.mxu0 0.0
    %2982 = vmatprep.subr.mxu0 0.0
    %2983 = vmatpush2.msra.mxu0 0.0
    %2984 = vmatprep.subr.mxu0 0.0
    %2985 = vmatpush2.msra.mxu0 0.0
    %2986 = vmatprep.subr.mxu0 0.0
    %2987 = vmatpush2.msra.mxu0 0.0
    %2988 = vmatprep.subr.mxu0 0.0
    %2989 = vmatpush2.msra.mxu0 0.0
    %2990 = vmatprep.subr.mxu0 0.0
    %2991 = vmatpush2.msra.mxu0 0.0
    %2992 = vmatprep.subr.mxu0 0.0
    %2993 = vmatpush2.msra.mxu0 0.0
    %2994 = vmatprep.subr.mxu0 0.0
    %2995 = vmatpush2.msra.mxu0 0.0
    %2996 = vmatprep.subr.mxu0 0.0
    %2997 = vmatpush2.msra.mxu0 0.0
    %2998 = vmatprep.subr.mxu0 0.0
    %2999 = vmatpush2.msra.mxu0 0.0
    %3000 = vmatprep.subr.mxu0 0.0
    %3001 = vmatpush2.msra.mxu0 0.0
    %3002 = vmatprep.subr.mxu0 0.0
    %3003 = vmatpush2.msra.mxu0 0.0
    %3004 = vmatprep.mubr.f32.mxu0 0.0
    %3005 = vmatmul.mubr.f32.gmra.mxu0 %v2719
    %v3006 = vpop.f32.mrf.mxu0
    %v3007 = vadd.f32 %v2937, %v3006
    %v3008 = vpop.f32.mrf.mxu0
    %3009 = vdwg.mxu0
    %vm3010 = vcmask 80896
    %v3012 = vsel %vm3010, %v3007, 0
    %vm3014 = vcmask 1041408
    %v3016 = vsel %vm3014, %v2374, 0
    %v3019 = vsel %vm3014, %v2375, 0
    %v3022 = vsel %vm3014, %v2376, 0
    %v3025 = vsel %vm3014, %v2377, 0
    %v3028 = vsel %vm3014, %v2378, 0
    %3030 = vmatprep.subr.mxu0 0.0
    %3031 = vmatpush1.msra.mxu0 0.0
    %3032 = vmatprep.subr.mxu0 0.0
    %3033 = vmatpush1.msra.mxu0 0.0
    %3034 = vmatprep.subr.mxu0 0.0
    %3035 = vmatpush1.msra.mxu0 0.0
    %3036 = vmatprep.subr.mxu0 0.0
    %3037 = vmatpush1.msra.mxu0 0.0
    %3038 = vmatprep.subr.mxu0 0.0
    %3039 = vmatpush1.msra.mxu0 0.0
    %3040 = vmatprep.subr.mxu0 0.0
    %3041 = vmatpush1.msra.mxu0 0.0
    %3042 = vmatprep.subr.mxu0 0.0
    %3043 = vmatpush1.msra.mxu0 0.0
    %3044 = vmatprep.subr.mxu0 0.0
    %3045 = vmatpush1.msra.mxu0 0.0
    %3046 = vmatprep.subr.mxu0 0.0
    %3047 = vmatpush1.msra.mxu0 0.0
    %3048 = vmatprep.subr.mxu0 0.0
    %3049 = vmatpush1.msra.mxu0 0.0
    %3050 = vmatprep.subr.mxu0 0.0
    %3051 = vmatpush1.msra.mxu0 0.0
    %3052 = vmatprep.subr.mxu0 0.0
    %3053 = vmatpush1.msra.mxu0 0.0
    %3054 = vmatprep.subr.mxu0 0.0
    %3055 = vmatpush1.msra.mxu0 0.0
    %3056 = vmatprep.subr.mxu0 0.0
    %3057 = vmatpush1.msra.mxu0 0.0
    %3058 = vmatprep.subr.mxu0 %v3019
    %3059 = vmatpush1.msra.mxu0 %v3016
    %3060 = vmatprep.subr.mxu0 %v2370
    %3061 = vmatpush1.msra.mxu0 %v2369
    %3062 = vmatprep.subr.mxu0 0.0
    %3063 = vmatpush2.msra.mxu0 0.0
    %3064 = vmatprep.subr.mxu0 0.0
    %3065 = vmatpush2.msra.mxu0 0.0
    %3066 = vmatprep.subr.mxu0 0.0
    %3067 = vmatpush2.msra.mxu0 0.0
    %3068 = vmatprep.subr.mxu0 0.0
    %3069 = vmatpush2.msra.mxu0 0.0
    %3070 = vmatprep.subr.mxu0 0.0
    %3071 = vmatpush2.msra.mxu0 0.0
    %3072 = vmatprep.subr.mxu0 0.0
    %3073 = vmatpush2.msra.mxu0 0.0
    %3074 = vmatprep.subr.mxu0 0.0
    %3075 = vmatpush2.msra.mxu0 0.0
    %3076 = vmatprep.subr.mxu0 0.0
    %3077 = vmatpush2.msra.mxu0 0.0
    %3078 = vmatprep.subr.mxu0 0.0
    %3079 = vmatpush2.msra.mxu0 0.0
    %3080 = vmatprep.subr.mxu0 0.0
    %3081 = vmatpush2.msra.mxu0 0.0
    %3082 = vmatprep.subr.mxu0 0.0
    %3083 = vmatpush2.msra.mxu0 0.0
    %3084 = vmatprep.subr.mxu0 0.0
    %3085 = vmatpush2.msra.mxu0 0.0
    %3086 = vmatprep.subr.mxu0 0.0
    %3087 = vmatpush2.msra.mxu0 0.0
    %3088 = vmatprep.subr.mxu0 0.0
    %3089 = vmatpush2.msra.mxu0 0.0
    %3090 = vmatprep.subr.mxu0 0.0
    %3091 = vmatpush2.msra.mxu0 0.0
    %3092 = vmatprep.subr.mxu0 0.0
    %3093 = vmatpush2.msra.mxu0 0.0
    %3094 = vmatprep.mubr.f32.mxu0 0.0
    %3095 = vmatmul.mubr.f32.gmra.mxu0 %v3012
    %v3096 = vpop.f32.mrf.mxu0
    %v3097 = vadd.f32 0.0, %v3096
    %v3098 = vpop.f32.mrf.mxu0
    %v3099 = vadd.f32 0.0, %v3098
    %3100 = vdwg.mxu0
    %3101 = vmatprep.subr.mxu0 0.0
    %3102 = vmatpush1.msra.mxu0 0.0
    %3103 = vmatprep.subr.mxu0 0.0
    %3104 = vmatpush1.msra.mxu0 0.0
    %3105 = vmatprep.subr.mxu0 0.0
    %3106 = vmatpush1.msra.mxu0 0.0
    %3107 = vmatprep.subr.mxu0 0.0
    %3108 = vmatpush1.msra.mxu0 0.0
    %3109 = vmatprep.subr.mxu0 0.0
    %3110 = vmatpush1.msra.mxu0 0.0
    %3111 = vmatprep.subr.mxu0 0.0
    %3112 = vmatpush1.msra.mxu0 0.0
    %3113 = vmatprep.subr.mxu0 0.0
    %3114 = vmatpush1.msra.mxu0 0.0
    %3115 = vmatprep.subr.mxu0 0.0
    %3116 = vmatpush1.msra.mxu0 0.0
    %3117 = vmatprep.subr.mxu0 0.0
    %3118 = vmatpush1.msra.mxu0 0.0
    %3119 = vmatprep.subr.mxu0 0.0
    %3120 = vmatpush1.msra.mxu0 0.0
    %3121 = vmatprep.subr.mxu0 0.0
    %3122 = vmatpush1.msra.mxu0 0.0
    %3123 = vmatprep.subr.mxu0 0.0
    %3124 = vmatpush1.msra.mxu0 0.0
    %3125 = vmatprep.subr.mxu0 0.0
    %3126 = vmatpush1.msra.mxu0 0.0
    %3127 = vmatprep.subr.mxu0 0.0
    %3128 = vmatpush1.msra.mxu0 0.0
    %3129 = vmatprep.subr.mxu0 %v3025
    %3130 = vmatpush1.msra.mxu0 %v3022
    %3131 = vmatprep.subr.mxu0 %v2372
    %3132 = vmatpush1.msra.mxu0 %v2371
    %3133 = vmatprep.subr.mxu0 0.0
    %3134 = vmatpush2.msra.mxu0 0.0
    %3135 = vmatprep.subr.mxu0 0.0
    %3136 = vmatpush2.msra.mxu0 0.0
    %3137 = vmatprep.subr.mxu0 0.0
    %3138 = vmatpush2.msra.mxu0 0.0
    %3139 = vmatprep.subr.mxu0 0.0
    %3140 = vmatpush2.msra.mxu0 0.0
    %3141 = vmatprep.subr.mxu0 0.0
    %3142 = vmatpush2.msra.mxu0 0.0
    %3143 = vmatprep.subr.mxu0 0.0
    %3144 = vmatpush2.msra.mxu0 0.0
    %3145 = vmatprep.subr.mxu0 0.0
    %3146 = vmatpush2.msra.mxu0 0.0
    %3147 = vmatprep.subr.mxu0 0.0
    %3148 = vmatpush2.msra.mxu0 0.0
    %3149 = vmatprep.subr.mxu0 0.0
    %3150 = vmatpush2.msra.mxu0 0.0
    %3151 = vmatprep.subr.mxu0 0.0
    %3152 = vmatpush2.msra.mxu0 0.0
    %3153 = vmatprep.subr.mxu0 0.0
    %3154 = vmatpush2.msra.mxu0 0.0
    %3155 = vmatprep.subr.mxu0 0.0
    %3156 = vmatpush2.msra.mxu0 0.0
    %3157 = vmatprep.subr.mxu0 0.0
    %3158 = vmatpush2.msra.mxu0 0.0
    %3159 = vmatprep.subr.mxu0 0.0
    %3160 = vmatpush2.msra.mxu0 0.0
    %3161 = vmatprep.subr.mxu0 0.0
    %3162 = vmatpush2.msra.mxu0 0.0
    %3163 = vmatprep.subr.mxu0 0.0
    %3164 = vmatpush2.msra.mxu0 0.0
    %3165 = vmatprep.mubr.f32.mxu0 0.0
    %3166 = vmatmul.mubr.f32.gmra.mxu0 %v3012
    %v3167 = vpop.f32.mrf.mxu0
    %v3168 = vadd.f32 0.0, %v3167
    %v3169 = vpop.f32.mrf.mxu0
    %v3170 = vadd.f32 0.0, %v3169
    %3171 = vdwg.mxu0
    %3172 = vmatprep.subr.mxu0 0.0
    %3173 = vmatpush1.msra.mxu0 0.0
    %3174 = vmatprep.subr.mxu0 0.0
    %3175 = vmatpush1.msra.mxu0 0.0
    %3176 = vmatprep.subr.mxu0 0.0
    %3177 = vmatpush1.msra.mxu0 0.0
    %3178 = vmatprep.subr.mxu0 0.0
    %3179 = vmatpush1.msra.mxu0 0.0
    %3180 = vmatprep.subr.mxu0 0.0
    %3181 = vmatpush1.msra.mxu0 0.0
    %3182 = vmatprep.subr.mxu0 0.0
    %3183 = vmatpush1.msra.mxu0 0.0
    %3184 = vmatprep.subr.mxu0 0.0
    %3185 = vmatpush1.msra.mxu0 0.0
    %3186 = vmatprep.subr.mxu0 0.0
    %3187 = vmatpush1.msra.mxu0 0.0
    %3188 = vmatprep.subr.mxu0 0.0
    %3189 = vmatpush1.msra.mxu0 0.0
    %3190 = vmatprep.subr.mxu0 0.0
    %3191 = vmatpush1.msra.mxu0 0.0
    %3192 = vmatprep.subr.mxu0 0.0
    %3193 = vmatpush1.msra.mxu0 0.0
    %3194 = vmatprep.subr.mxu0 0.0
    %3195 = vmatpush1.msra.mxu0 0.0
    %3196 = vmatprep.subr.mxu0 0.0
    %3197 = vmatpush1.msra.mxu0 0.0
    %3198 = vmatprep.subr.mxu0 0.0
    %3199 = vmatpush1.msra.mxu0 0.0
    %3200 = vmatprep.subr.mxu0 0.0
    %3201 = vmatpush1.msra.mxu0 %v3028
    %3202 = vmatprep.subr.mxu0 0.0
    %3203 = vmatpush1.msra.mxu0 %v2373
    %3204 = vmatprep.subr.mxu0 0.0
    %3205 = vmatpush2.msra.mxu0 0.0
    %3206 = vmatprep.subr.mxu0 0.0
    %3207 = vmatpush2.msra.mxu0 0.0
    %3208 = vmatprep.subr.mxu0 0.0
    %3209 = vmatpush2.msra.mxu0 0.0
    %3210 = vmatprep.subr.mxu0 0.0
    %3211 = vmatpush2.msra.mxu0 0.0
    %3212 = vmatprep.subr.mxu0 0.0
    %3213 = vmatpush2.msra.mxu0 0.0
    %3214 = vmatprep.subr.mxu0 0.0
    %3215 = vmatpush2.msra.mxu0 0.0
    %3216 = vmatprep.subr.mxu0 0.0
    %3217 = vmatpush2.msra.mxu0 0.0
    %3218 = vmatprep.subr.mxu0 0.0
    %3219 = vmatpush2.msra.mxu0 0.0
    %3220 = vmatprep.subr.mxu0 0.0
    %3221 = vmatpush2.msra.mxu0 0.0
    %3222 = vmatprep.subr.mxu0 0.0
    %3223 = vmatpush2.msra.mxu0 0.0
    %3224 = vmatprep.subr.mxu0 0.0
    %3225 = vmatpush2.msra.mxu0 0.0
    %3226 = vmatprep.subr.mxu0 0.0
    %3227 = vmatpush2.msra.mxu0 0.0
    %3228 = vmatprep.subr.mxu0 0.0
    %3229 = vmatpush2.msra.mxu0 0.0
    %3230 = vmatprep.subr.mxu0 0.0
    %3231 = vmatpush2.msra.mxu0 0.0
    %3232 = vmatprep.subr.mxu0 0.0
    %3233 = vmatpush2.msra.mxu0 0.0
    %3234 = vmatprep.subr.mxu0 0.0
    %3235 = vmatpush2.msra.mxu0 0.0
    %3236 = vmatprep.mubr.f32.mxu0 0.0
    %3237 = vmatmul.mubr.f32.gmra.mxu0 %v3012
    %v3238 = vpop.f32.mrf.mxu0
    %v3239 = vadd.f32 0.0, %v3238
    %v3240 = vpop.f32.mrf.mxu0
    %3241 = vdwg.mxu0
    %v3242 = vrcp.pop %v3097
    %v3243 = vrcp.pop %v3099
    %v3244 = vrcp.pop %v3168
    %v3245 = vrcp.pop %v3170
    %v3246 = vrcp.pop %v3239
    %v3247 = vmul.f32 %v2711, %v3242
    %v3248 = vmul.f32 %v2713, %v3243
    %v3249 = vmul.f32 %v2715, %v3244
    %v3250 = vmul.f32 %v2717, %v3245
    %v3251 = vmul.f32 %v2719, %v3246
    %3252 = vst [vmem:[%s11] sm:$0xff] %v3247
    %3253 = vst [vmem:[%s11 + $0x8] sm:$0xff] %v3248
    %3254 = vst [vmem:[%s11 + $0x10] sm:$0xff] %v3249
    %3255 = vst [vmem:[%s11 + $0x18] sm:$0xff] %v3250
    %3256 = vst [vmem:[%s11 + $0x20] sm:$0xff] %v3251
    // Predicated region
    $region54: #{dqnas_forward.1} parent=1 // pred_check
      _
    $region55: #{dqnas_forward.1} parent=1 // pred_check_branch
      %3258 = sbr.rel (0) target = $region57
    $region56: #{dqnas_forward.1} parent=1 // pred_region
      _
    $region57: #{dqnas_forward.1} parent=1 // pred_fallthru
      _
    // Predicated region
    $region58: #{dqnas_forward.1} parent=1 // pred_check
      _
    $region59: #{dqnas_forward.1} parent=1 // pred_check_branch
      %3260 = sbr.rel (0) target = $region61
    $region60: #{dqnas_forward.1} parent=1 // pred_region
      _
    $region61: #{dqnas_forward.1} parent=1 // pred_fallthru
      _
    %3261 = vsyncpa [#allocation3], 1
    %3262 = vsyncpa [#allocation5], 1

</llo_original>
